<compile_context>
chip_gen: v5e
topology: v5e:2x2
jax: 0.10.0
libtpu: 0.0.40
codegen_flags: <defaults>
</compile_context>

<pallas_src>
from functools import partial

import jax
import jax.numpy as jnp
from jax import lax
from jax.experimental import pallas as pl
from jax.experimental.pallas import tpu as pltpu

GP = 128  # per-gate lane padding: each LSTM gate gets its own 128-lane block


# ----------------------------------------------------------------------------
# Parameter preparation (run once): gate padding + constant folding.
# Invariant: all padded weight/bias columns and padded rows are EXACTLY zero,
# so sigmoid(0)=0.5 on padded gate lanes never propagates into real lanes.
# ----------------------------------------------------------------------------
def _pad_gate_cols(w, h):
    """(..., 4*h) -> (..., 4*GP): each gate block zero-padded to GP lanes."""
    lead = w.shape[:-1]
    w4 = w.reshape(lead + (4, h))
    out = jnp.zeros(lead + (4, GP), w.dtype).at[..., :h].set(w4)
    return out.reshape(lead + (4 * GP,))


def _pad_rows(w, rows):
    return jnp.zeros((rows,) + w.shape[1:], w.dtype).at[: w.shape[0]].set(w)


def prepare_params(p):
    hi = lax.Precision.HIGHEST
    H = p["whh_f"].shape[0]
    d_tok = p["we"].shape[1]
    C = p["cnn_w"].shape[2]
    assert H <= GP

    wih_f = _pad_gate_cols(p["wih_f"], H)                   # (Din, 4*GP)
    wih_b = _pad_gate_cols(p["wih_b"], H)
    wih_all = jnp.concatenate([wih_f, wih_b], axis=1)       # (Din, 8*GP)
    bias_f = _pad_gate_cols((p["b_ih_f"] + p["b_hh_f"])[None, :], H)
    bias_b = _pad_gate_cols((p["b_ih_b"] + p["b_hh_b"])[None, :], H)

    # fold token embedding table into the (hoisted) LSTM input projection
    wih_tok = jnp.dot(p["we"], wih_all[:d_tok], precision=hi)        # (V, 8*GP)
    wih_ce = wih_all[d_tok:]                                         # (Dc, 8*GP)

    # fold char embedding table into the conv taps: fused im2col table.
    # Extra sentinel row (-1e30) marks conv positions that do not exist in the
    # real (L+2)-long conv output; they lose the max-pool by construction.
    wconv = jnp.concatenate(
        [jnp.dot(p["char_emb"], p["cnn_w"][k], precision=hi) for k in range(3)],
        axis=0)                                                      # (3*CL, C)
    wconv = jnp.concatenate(
        [wconv, jnp.full((1, C), -1e30, jnp.float32)], axis=0)       # (3*CL+1, C)

    # fused-direction recurrent weight: rows 0:GP act on forward h lanes,
    # rows GP:2GP act on backward h lanes (selected by row-masked lane split).
    whh_cat = jnp.concatenate(
        [_pad_rows(_pad_gate_cols(p["whh_f"], H), GP),
         _pad_rows(_pad_gate_cols(p["whh_b"], H), GP)], axis=0)      # (2GP, 4GP)

    w1 = p["w1"]
    w3 = p["w3"]
    return dict(
        wconv=wconv,
        bconv=p["cnn_b"][None, :],
        wih_tok=wih_tok,
        wih_ce=wih_ce,
        bias_all=jnp.concatenate([bias_f, bias_b], axis=1),          # (1, 8*GP)
        whh_cat=whh_cat,                                             # (2GP, 4GP)
        w1_f=_pad_rows(w1[:H], GP),                                  # (GP, 100)
        w1_b=_pad_rows(w1[H:2 * H], GP),                             # (GP, 100)
        w1_ce=w1,                                                    # (2H, 100)
        b1=p["b1"][None, :],
        w2=p["w2"],
        b2=p["b2"][None, :],
        w3=jnp.zeros((w3.shape[0], GP), jnp.float32).at[:, : w3.shape[1]].set(w3),
        b3=jnp.zeros((1, GP), jnp.float32).at[0, : p["b3"].shape[0]].set(p["b3"]),
    )


# ----------------------------------------------------------------------------
# Fused forward: one pallas_call for the whole model.
# token_ids / char_ids are assumed to be in packed (time-major) order:
# row n corresponds to (t, b) = (n // B, n % B).
# ----------------------------------------------------------------------------
@partial(jax.jit, static_argnums=(3, 4))
def interffe_forward(token_ids, char_ids, pp, T, n_out=2):
    N = token_ids.shape[0]
    B = N // T
    L = char_ids.shape[1]
    Lo = L + 2                             # true conv output positions
    Lp = ((Lo + 7) // 8) * 8               # padded to a full sublane tile
    CL = (pp["wconv"].shape[0] - 1) // 3   # char vocab size
    W = 3 * CL + 1                         # one-hot width (+1 sentinel column)
    V = pp["wih_tok"].shape[0]             # token vocab size
    C = pp["wconv"].shape[1]               # conv out channels
    G4, G8 = 4 * GP, 8 * GP

    # --- tiny int32 index prep (only non-kernel work) -----------------------
    tok_ids = token_ids.reshape(N, 1).astype(jnp.int32)
    src = jnp.arange(Lp)[:, None] + jnp.arange(3)[None, :] - 2        # (Lp, 3)
    valid_tap = (src >= 0) & (src < L)
    valid_pos = jnp.arange(Lp) < Lo
    gath = char_ids[:, jnp.clip(src, 0, L - 1)]                       # (N, Lp, 3)
    ids = jnp.where(valid_tap[None], gath + jnp.arange(3)[None, None] * CL, -1)
    ids = jnp.where(valid_pos[None, :, None], ids, 3 * CL)            # sentinel
    conv_ids = ids.reshape(N * Lp, 3).astype(jnp.int32)

    def kernel(tok_ref, cid_ref, wconv_ref, bconv_ref, wtok_ref, wce_ref,
               bias_ref, whh_ref, w1f_ref, w1b_ref, w1c_ref,
               b1_ref, w2_ref, b2_ref, w3_ref, b3_ref, o_ref):
        f32 = jnp.float32

        # -- token one-hot (embedding table already folded into wtok) --------
        tok_oh = (tok_ref[...] ==
                  lax.broadcasted_iota(jnp.int32, (N, V), 1)).astype(f32)

        # -- char CNN: fused one-hot im2col -> single matmul -> bias -> max --
        cids = cid_ref[...]                                           # (N*Lp, 3)
        iota_c = lax.broadcasted_iota(jnp.int32, (N * Lp, W), 1)
        oh = (cids[:, 0:1] == iota_c).astype(f32)
        oh = oh + (cids[:, 1:2] == iota_c).astype(f32)
        oh = oh + (cids[:, 2:3] == iota_c).astype(f32)
        conv = jnp.dot(oh, wconv_ref[...],
                       preferred_element_type=f32) + bconv_ref[...]
        # Lp is a multiple of 8 -> tile-aligned reshape + clean sublane reduce.
        char_embed = jnp.max(conv.reshape(N, Lp, C), axis=1)          # (N, C)

        # -- hoisted LSTM input projection (both dirs, bias folded) ----------
        xproj = (jnp.dot(tok_oh, wtok_ref[...], preferred_element_type=f32)
                 + jnp.dot(char_embed, wce_ref[...], preferred_element_type=f32)
                 + bias_ref[...])                                     # (N, 8*GP)

        # -- recurrence: fwd & bwd fused into ONE matmul + ONE activation ----
        # Rows 0..B-1 carry the forward direction, rows B..2B-1 the backward.
        B2 = 2 * B
        mf = (lax.broadcasted_iota(jnp.int32, (B2, 1), 0) < B).astype(f32)
        mb = 1.0 - mf
        c = jnp.zeros((B2, GP), f32)
        h = jnp.zeros((B2, GP), f32)
        hs = []
        for s in range(T):                 # T static -> fully unrolled
            sb = T - 1 - s
            # combined x-gates: fwd uses time s / cols :G4, bwd time sb / G4:
            xg = jnp.concatenate(
                [xproj[s * B:(s + 1) * B, :G4],
                 xproj[sb * B:(sb + 1) * B, G4:]], axis=0)            # (2B, 4GP)
            # lane-split h by direction so one matmul applies whh_f / whh_b
            h_comb = jnp.concatenate([h * mf, h * mb], axis=1)        # (2B, 2GP)
            g = xg + jnp.dot(h_comb, whh_ref[...],
                             preferred_element_type=f32)              # (2B, 4GP)
            # gate order i, f, g, o; each gate on its own 128-lane block
            i_g = jax.nn.sigmoid(g[:, 0:GP])
            f_g = jax.nn.sigmoid(g[:, GP:2 * GP])
            g_g = jnp.tanh(g[:, 2 * GP:3 * GP])
            o_g = jax.nn.sigmoid(g[:, 3 * GP:])
            c = f_g * c + i_g * g_g
            h = o_g * jnp.tanh(c)
            hs.append(h)

        # reassemble time-major histories (epilogue-only sublane concat)
        hf_all = jnp.concatenate([hs[s][:B] for s in range(T)], axis=0)
        hb_all = jnp.concatenate([hs[T - 1 - t][B:] for t in range(T)], axis=0)

        # -- residual + MLP head; concat(h_f,h_b)+char_embed folded into W1 --
        z = (jnp.dot(hf_all, w1f_ref[...], preferred_element_type=f32)
             + jnp.dot(hb_all, w1b_ref[...], preferred_element_type=f32)
             + jnp.dot(char_embed, w1c_ref[...], preferred_element_type=f32)
             + b1_ref[...])
        z = jnp.maximum(z, 0.0)
        z = jnp.maximum(jnp.dot(z, w2_ref[...], preferred_element_type=f32)
                        + b2_ref[...], 0.0)
        o_ref[...] = jnp.dot(z, w3_ref[...],
                             preferred_element_type=f32) + b3_ref[...]

    vmem = lambda: pl.BlockSpec(memory_space=pltpu.MemorySpace.VMEM)
    out_pad = pl.pallas_call(
        kernel,
        out_shape=jax.ShapeDtypeStruct((N, GP), jnp.float32),   # lane-dense store
        in_specs=[vmem() for _ in range(16)],
        out_specs=vmem(),
    )(tok_ids, conv_ids, pp["wconv"], pp["bconv"], pp["wih_tok"], pp["wih_ce"],
      pp["bias_all"], pp["whh_cat"], pp["w1_f"], pp["w1_b"], pp["w1_ce"],
      pp["b1"], pp["w2"], pp["b2"], pp["w3"], pp["b3"])
    return out_pad[:, :n_out]


# ----------------------------------------------------------------------------
# Pure-JAX reference (mirrors the PyTorch forward) for correctness checking.
# ----------------------------------------------------------------------------
def reference_forward(token_ids, char_ids, p, T, B):
    hi = lax.Precision.HIGHEST
    N, L = char_ids.shape
    H = p["whh_f"].shape[0]
    C = p["cnn_w"].shape[2]

    ce = p["char_emb"][char_ids]                                  # (N, L, Dc)
    ce_pad = jnp.pad(ce, ((0, 0), (2, 2), (0, 0)))
    Lo = L + 2
    conv = jnp.zeros((N, Lo, C), jnp.float32) + p["cnn_b"]
    for k in range(3):
        conv = conv + jnp.einsum("nld,dc->nlc", ce_pad[:, k:k + Lo, :],
                                 p["cnn_w"][k], precision=hi)
    char_embed = conv.max(axis=1)                                 # (N, C)

    tok = p["we"][token_ids]                                      # (N, Dtok)
    x = jnp.concatenate([tok, char_embed], axis=1).reshape(T, B, -1)

    def run_dir(wih, whh, bias, reverse):
        def step(carry, x_t):
            h, c = carry
            g = (jnp.dot(x_t, wih, precision=hi)
                 + jnp.dot(h, whh, precision=hi) + bias)
            i = jax.nn.sigmoid(g[:, :H])
            f = jax.nn.sigmoid(g[:, H:2 * H])
            gg = jnp.tanh(g[:, 2 * H:3 * H])
            o = jax.nn.sigmoid(g[:, 3 * H:])
            c = f * c + i * gg
            h = o * jnp.tanh(c)
            return (h, c), h
        xs = x[::-1] if reverse else x
        init = (jnp.zeros((B, H), jnp.float32), jnp.zeros((B, H), jnp.float32))
        _, hs = lax.scan(step, init, xs)
        return hs[::-1] if reverse else hs

    hf = run_dir(p["wih_f"], p["whh_f"], p["b_ih_f"] + p["b_hh_f"], False)
    hb = run_dir(p["wih_b"], p["whh_b"], p["b_ih_b"] + p["b_hh_b"], True)
    out = jnp.concatenate([hf, hb], axis=-1).reshape(T * B, 2 * H)
    z = jax.nn.relu(jnp.dot(out + char_embed, p["w1"], precision=hi) + p["b1"])
    z = jax.nn.relu(jnp.dot(z, p["w2"], precision=hi) + p["b2"])
    return jnp.dot(z, p["w3"], precision=hi) + p["b3"]


if __name__ == "__main__":
    VOCAB, CHAR_LEN = 20, 30
    B, T, L = 2, 8, 5
    N = B * T
    D_TOK = 50        # token_embedding_dim (== word-embedding dim of `we`)
    D_CHAR = 50       # char_embedding_dim
    H = 25            # lstm_size = int(0.5 * 50)

    ks = jax.random.split(jax.random.PRNGKey(0), 18)
    s = 0.1
    params = {
        "we":       jax.random.normal(ks[0], (VOCAB, D_TOK), jnp.float32) * s,
        "char_emb": jax.random.normal(ks[1], (CHAR_LEN, D_CHAR), jnp.float32) * s,
        "cnn_w":    jax.random.normal(ks[2], (3, D_CHAR, D_TOK), jnp.float32) * s,
        "cnn_b":    jax.random.normal(ks[3], (D_TOK,), jnp.float32) * s,
        "wih_f":    jax.random.normal(ks[4], (2 * D_TOK, 4 * H), jnp.float32) * s,
        "whh_f":    jax.random.normal(ks[5], (H, 4 * H), jnp.float32) * s,
        "b_ih_f":   jax.random.normal(ks[6], (4 * H,), jnp.float32) * s,
        "b_hh_f":   jax.random.normal(ks[7], (4 * H,), jnp.float32) * s,
        "wih_b":    jax.random.normal(ks[8], (2 * D_TOK, 4 * H), jnp.float32) * s,
        "whh_b":    jax.random.normal(ks[9], (H, 4 * H), jnp.float32) * s,
        "b_ih_b":   jax.random.normal(ks[10], (4 * H,), jnp.float32) * s,
        "b_hh_b":   jax.random.normal(ks[11], (4 * H,), jnp.float32) * s,
        "w1":       jax.random.normal(ks[12], (2 * H, 100), jnp.float32) * s,
        "b1":       jax.random.normal(ks[13], (100,), jnp.float32) * s,
        "w2":       jax.random.normal(ks[14], (100, 30), jnp.float32) * s,
        "b2":       jax.random.normal(ks[15], (30,), jnp.float32) * s,
        "w3":       jax.random.normal(ks[16], (30, 2), jnp.float32) * s,
        "b3":       jax.random.normal(ks[17], (2,), jnp.float32) * s,
    }

    kk = jax.random.split(jax.random.PRNGKey(1), 2)
    token_ids = jax.random.randint(kk[0], (N,), 0, VOCAB, dtype=jnp.int32)
    char_ids = jax.random.randint(kk[1], (N, L), 0, CHAR_LEN, dtype=jnp.int32)

    pp = prepare_params(params)
    logits = interffe_forward(token_ids, char_ids, pp, T, 2)       # (N, 2)
    logits = jax.block_until_ready(logits)
    assert logits.shape == (N, 2) and logits.dtype == jnp.float32

    ref = jax.block_until_ready(reference_forward(token_ids, char_ids,
                                                  params, T, B))
    err = float(jnp.max(jnp.abs(logits - ref)))
    assert err < 2e-3, f"mismatch vs reference: max abs err {err}"
    print("KERNEL_OK")
</pallas_src>

<mosaic_0001>
module attributes {stable_mosaic.version = 11 : i64} {
  func.func @kernel(%arg0: memref<16x1xi32, #tpu.memory_space<vmem>>, %arg1: memref<128x3xi32, #tpu.memory_space<vmem>>, %arg2: memref<91x50xf32, #tpu.memory_space<vmem>>, %arg3: memref<1x50xf32, #tpu.memory_space<vmem>>, %arg4: memref<20x1024xf32, #tpu.memory_space<vmem>>, %arg5: memref<50x1024xf32, #tpu.memory_space<vmem>>, %arg6: memref<1x1024xf32, #tpu.memory_space<vmem>>, %arg7: memref<256x512xf32, #tpu.memory_space<vmem>>, %arg8: memref<128x100xf32, #tpu.memory_space<vmem>>, %arg9: memref<128x100xf32, #tpu.memory_space<vmem>>, %arg10: memref<50x100xf32, #tpu.memory_space<vmem>>, %arg11: memref<1x100xf32, #tpu.memory_space<vmem>>, %arg12: memref<100x30xf32, #tpu.memory_space<vmem>>, %arg13: memref<1x30xf32, #tpu.memory_space<vmem>>, %arg14: memref<30x128xf32, #tpu.memory_space<vmem>>, %arg15: memref<1x128xf32, #tpu.memory_space<vmem>>, %arg16: memref<16x128xf32, #tpu.memory_space<vmem>>) attributes {dimension_semantics = [], scalar_prefetch = 0 : i64, scratch_operands = 0 : i64, tpu.core_type = #tpu.core_type<tc>} {
    %c0 = arith.constant 0 : index
    %c0_0 = arith.constant 0 : index
    %0 = vector.load %arg0[%c0, %c0_0] : memref<16x1xi32, #tpu.memory_space<vmem>>, vector<16x1xi32>
    %1 = tpu.iota {dimensions = array<i32: 1>} : vector<16x20xi32>
    %2 = vector.broadcast %0 : vector<16x1xi32> to vector<16x20xi32>
    %3 = arith.cmpi eq, %2, %1 : vector<16x20xi32>
    %4 = arith.extui %3 : vector<16x20xi1> to vector<16x20xi32>
    %5 = arith.sitofp %4 : vector<16x20xi32> to vector<16x20xf32>
    %c0_1 = arith.constant 0 : index
    %c0_2 = arith.constant 0 : index
    %6 = vector.load %arg1[%c0_1, %c0_2] : memref<128x3xi32, #tpu.memory_space<vmem>>, vector<128x3xi32>
    %7 = tpu.iota {dimensions = array<i32: 1>} : vector<128x91xi32>
    %8 = vector.extract_strided_slice %6 {offsets = [0, 0], sizes = [128, 1], strides = [1, 1]} : vector<128x3xi32> to vector<128x1xi32>
    %9 = vector.broadcast %8 : vector<128x1xi32> to vector<128x91xi32>
    %10 = arith.cmpi eq, %9, %7 : vector<128x91xi32>
    %11 = arith.extui %10 : vector<128x91xi1> to vector<128x91xi32>
    %12 = arith.sitofp %11 : vector<128x91xi32> to vector<128x91xf32>
    %13 = vector.extract_strided_slice %6 {offsets = [0, 1], sizes = [128, 1], strides = [1, 1]} : vector<128x3xi32> to vector<128x1xi32>
    %14 = vector.broadcast %13 : vector<128x1xi32> to vector<128x91xi32>
    %15 = arith.cmpi eq, %14, %7 : vector<128x91xi32>
    %16 = arith.extui %15 : vector<128x91xi1> to vector<128x91xi32>
    %17 = arith.sitofp %16 : vector<128x91xi32> to vector<128x91xf32>
    %18 = arith.addf %12, %17 : vector<128x91xf32>
    %19 = vector.extract_strided_slice %6 {offsets = [0, 2], sizes = [128, 1], strides = [1, 1]} : vector<128x3xi32> to vector<128x1xi32>
    %20 = vector.broadcast %19 : vector<128x1xi32> to vector<128x91xi32>
    %21 = arith.cmpi eq, %20, %7 : vector<128x91xi32>
    %22 = arith.extui %21 : vector<128x91xi1> to vector<128x91xi32>
    %23 = arith.sitofp %22 : vector<128x91xi32> to vector<128x91xf32>
    %24 = arith.addf %18, %23 : vector<128x91xf32>
    %c0_3 = arith.constant 0 : index
    %c0_4 = arith.constant 0 : index
    %25 = vector.load %arg2[%c0_3, %c0_4] : memref<91x50xf32, #tpu.memory_space<vmem>>, vector<91x50xf32>
    %cst = arith.constant dense<0.000000e+00> : vector<128x50xf32>
    %26 = tpu.matmul %24, %25, %cst {dimension_numbers = #tpu.dot_dimension_numbers<[1], [0], [0], [1], [0, 0, 1, 1], [], []>} : vector<128x91xf32>, vector<91x50xf32>, vector<128x50xf32> -> vector<128x50xf32>
    %c0_5 = arith.constant 0 : index
    %c0_6 = arith.constant 0 : index
    %27 = vector.load %arg3[%c0_5, %c0_6] : memref<1x50xf32, #tpu.memory_space<vmem>>, vector<1x50xf32>
    %28 = vector.broadcast %27 : vector<1x50xf32> to vector<128x50xf32>
    %29 = arith.addf %26, %28 : vector<128x50xf32>
    %30 = vector.shape_cast %29 : vector<128x50xf32> to vector<16x8x50xf32>
    %cst_7 = arith.constant dense<0xFF800000> : vector<16x50xf32>
    %31 = vector.multi_reduction <maximumf>, %30, %cst_7 [1] : vector<16x8x50xf32> to vector<16x50xf32>
    %c0_8 = arith.constant 0 : index
    %c0_9 = arith.constant 0 : index
    %32 = vector.load %arg4[%c0_8, %c0_9] : memref<20x1024xf32, #tpu.memory_space<vmem>>, vector<20x1024xf32>
    %cst_10 = arith.constant dense<0.000000e+00> : vector<16x1024xf32>
    %33 = tpu.matmul %5, %32, %cst_10 {dimension_numbers = #tpu.dot_dimension_numbers<[1], [0], [0], [1], [0, 0, 1, 1], [], []>} : vector<16x20xf32>, vector<20x1024xf32>, vector<16x1024xf32> -> vector<16x1024xf32>
    %c0_11 = arith.constant 0 : index
    %c0_12 = arith.constant 0 : index
    %34 = vector.load %arg5[%c0_11, %c0_12] : memref<50x1024xf32, #tpu.memory_space<vmem>>, vector<50x1024xf32>
    %cst_13 = arith.constant dense<0.000000e+00> : vector<16x1024xf32>
    %35 = tpu.matmul %31, %34, %cst_13 {dimension_numbers = #tpu.dot_dimension_numbers<[1], [0], [0], [1], [0, 0, 1, 1], [], []>} : vector<16x50xf32>, vector<50x1024xf32>, vector<16x1024xf32> -> vector<16x1024xf32>
    %36 = arith.addf %33, %35 : vector<16x1024xf32>
    %c0_14 = arith.constant 0 : index
    %c0_15 = arith.constant 0 : index
    %37 = vector.load %arg6[%c0_14, %c0_15] : memref<1x1024xf32, #tpu.memory_space<vmem>>, vector<1x1024xf32>
    %38 = vector.broadcast %37 : vector<1x1024xf32> to vector<16x1024xf32>
    %39 = arith.addf %36, %38 : vector<16x1024xf32>
    %40 = tpu.iota {dimensions = array<i32: 0>} : vector<4x1xi32>
    %c2_i32 = arith.constant 2 : i32
    %41 = vector.broadcast %c2_i32 : i32 to vector<4x1xi32>
    %42 = arith.cmpi slt, %40, %41 : vector<4x1xi32>
    %43 = arith.extui %42 : vector<4x1xi1> to vector<4x1xi32>
    %44 = arith.sitofp %43 : vector<4x1xi32> to vector<4x1xf32>
    %cst_16 = arith.constant 1.000000e+00 : f32
    %45 = vector.broadcast %cst_16 : f32 to vector<4x1xf32>
    %46 = arith.subf %45, %44 : vector<4x1xf32>
    %cst_17 = arith.constant 0.000000e+00 : f32
    %47 = vector.broadcast %cst_17 : f32 to vector<4x128xf32>
    %cst_18 = arith.constant 0.000000e+00 : f32
    %48 = vector.broadcast %cst_18 : f32 to vector<4x128xf32>
    %49 = vector.extract_strided_slice %39 {offsets = [0, 0], sizes = [2, 512], strides = [1, 1]} : vector<16x1024xf32> to vector<2x512xf32>
    %50 = vector.extract_strided_slice %39 {offsets = [14, 512], sizes = [2, 512], strides = [1, 1]} : vector<16x1024xf32> to vector<2x512xf32>
    %51 = tpu.concatenate %49, %50 in 0 : vector<2x512xf32>, vector<2x512xf32> -> vector<4x512xf32>
    %52 = vector.broadcast %44 : vector<4x1xf32> to vector<4x128xf32>
    %53 = arith.mulf %48, %52 : vector<4x128xf32>
    %54 = vector.broadcast %46 : vector<4x1xf32> to vector<4x128xf32>
    %55 = arith.mulf %48, %54 : vector<4x128xf32>
    %56 = tpu.concatenate %53, %55 in 1 : vector<4x128xf32>, vector<4x128xf32> -> vector<4x256xf32>
    %c0_19 = arith.constant 0 : index
    %c0_20 = arith.constant 0 : index
    %57 = vector.load %arg7[%c0_19, %c0_20] : memref<256x512xf32, #tpu.memory_space<vmem>>, vector<256x512xf32>
    %cst_21 = arith.constant dense<0.000000e+00> : vector<4x512xf32>
    %58 = tpu.matmul %56, %57, %cst_21 {dimension_numbers = #tpu.dot_dimension_numbers<[1], [0], [0], [1], [0, 0, 1, 1], [], []>} : vector<4x256xf32>, vector<256x512xf32>, vector<4x512xf32> -> vector<4x512xf32>
    %59 = arith.addf %51, %58 : vector<4x512xf32>
    %60 = vector.extract_strided_slice %59 {offsets = [0, 0], sizes = [4, 128], strides = [1, 1]} : vector<4x512xf32> to vector<4x128xf32>
    %61 = arith.negf %60 : vector<4x128xf32>
    %62 = math.exp %61 : vector<4x128xf32>
    %cst_22 = arith.constant 1.000000e+00 : f32
    %63 = vector.broadcast %cst_22 : f32 to vector<4x128xf32>
    %64 = arith.addf %63, %62 : vector<4x128xf32>
    %65 = arith.divf %63, %64 : vector<4x128xf32>
    %66 = vector.extract_strided_slice %59 {offsets = [0, 128], sizes = [4, 128], strides = [1, 1]} : vector<4x512xf32> to vector<4x128xf32>
    %67 = arith.negf %66 : vector<4x128xf32>
    %68 = math.exp %67 : vector<4x128xf32>
    %cst_23 = arith.constant 1.000000e+00 : f32
    %69 = vector.broadcast %cst_23 : f32 to vector<4x128xf32>
    %70 = arith.addf %69, %68 : vector<4x128xf32>
    %71 = arith.divf %69, %70 : vector<4x128xf32>
    %72 = vector.extract_strided_slice %59 {offsets = [0, 256], sizes = [4, 128], strides = [1, 1]} : vector<4x512xf32> to vector<4x128xf32>
    %73 = math.tanh %72 : vector<4x128xf32>
    %74 = vector.extract_strided_slice %59 {offsets = [0, 384], sizes = [4, 128], strides = [1, 1]} : vector<4x512xf32> to vector<4x128xf32>
    %75 = arith.negf %74 : vector<4x128xf32>
    %76 = math.exp %75 : vector<4x128xf32>
    %cst_24 = arith.constant 1.000000e+00 : f32
    %77 = vector.broadcast %cst_24 : f32 to vector<4x128xf32>
    %78 = arith.addf %77, %76 : vector<4x128xf32>
    %79 = arith.divf %77, %78 : vector<4x128xf32>
    %80 = arith.mulf %71, %47 : vector<4x128xf32>
    %81 = arith.mulf %65, %73 : vector<4x128xf32>
    %82 = arith.addf %80, %81 : vector<4x128xf32>
    %83 = math.tanh %82 : vector<4x128xf32>
    %84 = arith.mulf %79, %83 : vector<4x128xf32>
    %85 = vector.extract_strided_slice %39 {offsets = [2, 0], sizes = [2, 512], strides = [1, 1]} : vector<16x1024xf32> to vector<2x512xf32>
    %86 = vector.extract_strided_slice %39 {offsets = [12, 512], sizes = [2, 512], strides = [1, 1]} : vector<16x1024xf32> to vector<2x512xf32>
    %87 = tpu.concatenate %85, %86 in 0 : vector<2x512xf32>, vector<2x512xf32> -> vector<4x512xf32>
    %88 = vector.broadcast %44 : vector<4x1xf32> to vector<4x128xf32>
    %89 = arith.mulf %84, %88 : vector<4x128xf32>
    %90 = vector.broadcast %46 : vector<4x1xf32> to vector<4x128xf32>
    %91 = arith.mulf %84, %90 : vector<4x128xf32>
    %92 = tpu.concatenate %89, %91 in 1 : vector<4x128xf32>, vector<4x128xf32> -> vector<4x256xf32>
    %c0_25 = arith.constant 0 : index
    %c0_26 = arith.constant 0 : index
    %93 = vector.load %arg7[%c0_25, %c0_26] : memref<256x512xf32, #tpu.memory_space<vmem>>, vector<256x512xf32>
    %cst_27 = arith.constant dense<0.000000e+00> : vector<4x512xf32>
    %94 = tpu.matmul %92, %93, %cst_27 {dimension_numbers = #tpu.dot_dimension_numbers<[1], [0], [0], [1], [0, 0, 1, 1], [], []>} : vector<4x256xf32>, vector<256x512xf32>, vector<4x512xf32> -> vector<4x512xf32>
    %95 = arith.addf %87, %94 : vector<4x512xf32>
    %96 = vector.extract_strided_slice %95 {offsets = [0, 0], sizes = [4, 128], strides = [1, 1]} : vector<4x512xf32> to vector<4x128xf32>
    %97 = arith.negf %96 : vector<4x128xf32>
    %98 = math.exp %97 : vector<4x128xf32>
    %cst_28 = arith.constant 1.000000e+00 : f32
    %99 = vector.broadcast %cst_28 : f32 to vector<4x128xf32>
    %100 = arith.addf %99, %98 : vector<4x128xf32>
    %101 = arith.divf %99, %100 : vector<4x128xf32>
    %102 = vector.extract_strided_slice %95 {offsets = [0, 128], sizes = [4, 128], strides = [1, 1]} : vector<4x512xf32> to vector<4x128xf32>
    %103 = arith.negf %102 : vector<4x128xf32>
    %104 = math.exp %103 : vector<4x128xf32>
    %cst_29 = arith.constant 1.000000e+00 : f32
    %105 = vector.broadcast %cst_29 : f32 to vector<4x128xf32>
    %106 = arith.addf %105, %104 : vector<4x128xf32>
    %107 = arith.divf %105, %106 : vector<4x128xf32>
    %108 = vector.extract_strided_slice %95 {offsets = [0, 256], sizes = [4, 128], strides = [1, 1]} : vector<4x512xf32> to vector<4x128xf32>
    %109 = math.tanh %108 : vector<4x128xf32>
    %110 = vector.extract_strided_slice %95 {offsets = [0, 384], sizes = [4, 128], strides = [1, 1]} : vector<4x512xf32> to vector<4x128xf32>
    %111 = arith.negf %110 : vector<4x128xf32>
    %112 = math.exp %111 : vector<4x128xf32>
    %cst_30 = arith.constant 1.000000e+00 : f32
    %113 = vector.broadcast %cst_30 : f32 to vector<4x128xf32>
    %114 = arith.addf %113, %112 : vector<4x128xf32>
    %115 = arith.divf %113, %114 : vector<4x128xf32>
    %116 = arith.mulf %107, %82 : vector<4x128xf32>
    %117 = arith.mulf %101, %109 : vector<4x128xf32>
    %118 = arith.addf %116, %117 : vector<4x128xf32>
    %119 = math.tanh %118 : vector<4x128xf32>
    %120 = arith.mulf %115, %119 : vector<4x128xf32>
    %121 = vector.extract_strided_slice %39 {offsets = [4, 0], sizes = [2, 512], strides = [1, 1]} : vector<16x1024xf32> to vector<2x512xf32>
    %122 = vector.extract_strided_slice %39 {offsets = [10, 512], sizes = [2, 512], strides = [1, 1]} : vector<16x1024xf32> to vector<2x512xf32>
    %123 = tpu.concatenate %121, %122 in 0 : vector<2x512xf32>, vector<2x512xf32> -> vector<4x512xf32>
    %124 = vector.broadcast %44 : vector<4x1xf32> to vector<4x128xf32>
    %125 = arith.mulf %120, %124 : vector<4x128xf32>
    %126 = vector.broadcast %46 : vector<4x1xf32> to vector<4x128xf32>
    %127 = arith.mulf %120, %126 : vector<4x128xf32>
    %128 = tpu.concatenate %125, %127 in 1 : vector<4x128xf32>, vector<4x128xf32> -> vector<4x256xf32>
    %c0_31 = arith.constant 0 : index
    %c0_32 = arith.constant 0 : index
    %129 = vector.load %arg7[%c0_31, %c0_32] : memref<256x512xf32, #tpu.memory_space<vmem>>, vector<256x512xf32>
    %cst_33 = arith.constant dense<0.000000e+00> : vector<4x512xf32>
    %130 = tpu.matmul %128, %129, %cst_33 {dimension_numbers = #tpu.dot_dimension_numbers<[1], [0], [0], [1], [0, 0, 1, 1], [], []>} : vector<4x256xf32>, vector<256x512xf32>, vector<4x512xf32> -> vector<4x512xf32>
    %131 = arith.addf %123, %130 : vector<4x512xf32>
    %132 = vector.extract_strided_slice %131 {offsets = [0, 0], sizes = [4, 128], strides = [1, 1]} : vector<4x512xf32> to vector<4x128xf32>
    %133 = arith.negf %132 : vector<4x128xf32>
    %134 = math.exp %133 : vector<4x128xf32>
    %cst_34 = arith.constant 1.000000e+00 : f32
    %135 = vector.broadcast %cst_34 : f32 to vector<4x128xf32>
    %136 = arith.addf %135, %134 : vector<4x128xf32>
    %137 = arith.divf %135, %136 : vector<4x128xf32>
    %138 = vector.extract_strided_slice %131 {offsets = [0, 128], sizes = [4, 128], strides = [1, 1]} : vector<4x512xf32> to vector<4x128xf32>
    %139 = arith.negf %138 : vector<4x128xf32>
    %140 = math.exp %139 : vector<4x128xf32>
    %cst_35 = arith.constant 1.000000e+00 : f32
    %141 = vector.broadcast %cst_35 : f32 to vector<4x128xf32>
    %142 = arith.addf %141, %140 : vector<4x128xf32>
    %143 = arith.divf %141, %142 : vector<4x128xf32>
    %144 = vector.extract_strided_slice %131 {offsets = [0, 256], sizes = [4, 128], strides = [1, 1]} : vector<4x512xf32> to vector<4x128xf32>
    %145 = math.tanh %144 : vector<4x128xf32>
    %146 = vector.extract_strided_slice %131 {offsets = [0, 384], sizes = [4, 128], strides = [1, 1]} : vector<4x512xf32> to vector<4x128xf32>
    %147 = arith.negf %146 : vector<4x128xf32>
    %148 = math.exp %147 : vector<4x128xf32>
    %cst_36 = arith.constant 1.000000e+00 : f32
    %149 = vector.broadcast %cst_36 : f32 to vector<4x128xf32>
    %150 = arith.addf %149, %148 : vector<4x128xf32>
    %151 = arith.divf %149, %150 : vector<4x128xf32>
    %152 = arith.mulf %143, %118 : vector<4x128xf32>
    %153 = arith.mulf %137, %145 : vector<4x128xf32>
    %154 = arith.addf %152, %153 : vector<4x128xf32>
    %155 = math.tanh %154 : vector<4x128xf32>
    %156 = arith.mulf %151, %155 : vector<4x128xf32>
    %157 = vector.extract_strided_slice %39 {offsets = [6, 0], sizes = [2, 512], strides = [1, 1]} : vector<16x1024xf32> to vector<2x512xf32>
    %158 = vector.extract_strided_slice %39 {offsets = [8, 512], sizes = [2, 512], strides = [1, 1]} : vector<16x1024xf32> to vector<2x512xf32>
    %159 = tpu.concatenate %157, %158 in 0 : vector<2x512xf32>, vector<2x512xf32> -> vector<4x512xf32>
    %160 = vector.broadcast %44 : vector<4x1xf32> to vector<4x128xf32>
    %161 = arith.mulf %156, %160 : vector<4x128xf32>
    %162 = vector.broadcast %46 : vector<4x1xf32> to vector<4x128xf32>
    %163 = arith.mulf %156, %162 : vector<4x128xf32>
    %164 = tpu.concatenate %161, %163 in 1 : vector<4x128xf32>, vector<4x128xf32> -> vector<4x256xf32>
    %c0_37 = arith.constant 0 : index
    %c0_38 = arith.constant 0 : index
    %165 = vector.load %arg7[%c0_37, %c0_38] : memref<256x512xf32, #tpu.memory_space<vmem>>, vector<256x512xf32>
    %cst_39 = arith.constant dense<0.000000e+00> : vector<4x512xf32>
    %166 = tpu.matmul %164, %165, %cst_39 {dimension_numbers = #tpu.dot_dimension_numbers<[1], [0], [0], [1], [0, 0, 1, 1], [], []>} : vector<4x256xf32>, vector<256x512xf32>, vector<4x512xf32> -> vector<4x512xf32>
    %167 = arith.addf %159, %166 : vector<4x512xf32>
    %168 = vector.extract_strided_slice %167 {offsets = [0, 0], sizes = [4, 128], strides = [1, 1]} : vector<4x512xf32> to vector<4x128xf32>
    %169 = arith.negf %168 : vector<4x128xf32>
    %170 = math.exp %169 : vector<4x128xf32>
    %cst_40 = arith.constant 1.000000e+00 : f32
    %171 = vector.broadcast %cst_40 : f32 to vector<4x128xf32>
    %172 = arith.addf %171, %170 : vector<4x128xf32>
    %173 = arith.divf %171, %172 : vector<4x128xf32>
    %174 = vector.extract_strided_slice %167 {offsets = [0, 128], sizes = [4, 128], strides = [1, 1]} : vector<4x512xf32> to vector<4x128xf32>
    %175 = arith.negf %174 : vector<4x128xf32>
    %176 = math.exp %175 : vector<4x128xf32>
    %cst_41 = arith.constant 1.000000e+00 : f32
    %177 = vector.broadcast %cst_41 : f32 to vector<4x128xf32>
    %178 = arith.addf %177, %176 : vector<4x128xf32>
    %179 = arith.divf %177, %178 : vector<4x128xf32>
    %180 = vector.extract_strided_slice %167 {offsets = [0, 256], sizes = [4, 128], strides = [1, 1]} : vector<4x512xf32> to vector<4x128xf32>
    %181 = math.tanh %180 : vector<4x128xf32>
    %182 = vector.extract_strided_slice %167 {offsets = [0, 384], sizes = [4, 128], strides = [1, 1]} : vector<4x512xf32> to vector<4x128xf32>
    %183 = arith.negf %182 : vector<4x128xf32>
    %184 = math.exp %183 : vector<4x128xf32>
    %cst_42 = arith.constant 1.000000e+00 : f32
    %185 = vector.broadcast %cst_42 : f32 to vector<4x128xf32>
    %186 = arith.addf %185, %184 : vector<4x128xf32>
    %187 = arith.divf %185, %186 : vector<4x128xf32>
    %188 = arith.mulf %179, %154 : vector<4x128xf32>
    %189 = arith.mulf %173, %181 : vector<4x128xf32>
    %190 = arith.addf %188, %189 : vector<4x128xf32>
    %191 = math.tanh %190 : vector<4x128xf32>
    %192 = arith.mulf %187, %191 : vector<4x128xf32>
    %193 = vector.extract_strided_slice %39 {offsets = [8, 0], sizes = [2, 512], strides = [1, 1]} : vector<16x1024xf32> to vector<2x512xf32>
    %194 = vector.extract_strided_slice %39 {offsets = [6, 512], sizes = [2, 512], strides = [1, 1]} : vector<16x1024xf32> to vector<2x512xf32>
    %195 = tpu.concatenate %193, %194 in 0 : vector<2x512xf32>, vector<2x512xf32> -> vector<4x512xf32>
    %196 = vector.broadcast %44 : vector<4x1xf32> to vector<4x128xf32>
    %197 = arith.mulf %192, %196 : vector<4x128xf32>
    %198 = vector.broadcast %46 : vector<4x1xf32> to vector<4x128xf32>
    %199 = arith.mulf %192, %198 : vector<4x128xf32>
    %200 = tpu.concatenate %197, %199 in 1 : vector<4x128xf32>, vector<4x128xf32> -> vector<4x256xf32>
    %c0_43 = arith.constant 0 : index
    %c0_44 = arith.constant 0 : index
    %201 = vector.load %arg7[%c0_43, %c0_44] : memref<256x512xf32, #tpu.memory_space<vmem>>, vector<256x512xf32>
    %cst_45 = arith.constant dense<0.000000e+00> : vector<4x512xf32>
    %202 = tpu.matmul %200, %201, %cst_45 {dimension_numbers = #tpu.dot_dimension_numbers<[1], [0], [0], [1], [0, 0, 1, 1], [], []>} : vector<4x256xf32>, vector<256x512xf32>, vector<4x512xf32> -> vector<4x512xf32>
    %203 = arith.addf %195, %202 : vector<4x512xf32>
    %204 = vector.extract_strided_slice %203 {offsets = [0, 0], sizes = [4, 128], strides = [1, 1]} : vector<4x512xf32> to vector<4x128xf32>
    %205 = arith.negf %204 : vector<4x128xf32>
    %206 = math.exp %205 : vector<4x128xf32>
    %cst_46 = arith.constant 1.000000e+00 : f32
    %207 = vector.broadcast %cst_46 : f32 to vector<4x128xf32>
    %208 = arith.addf %207, %206 : vector<4x128xf32>
    %209 = arith.divf %207, %208 : vector<4x128xf32>
    %210 = vector.extract_strided_slice %203 {offsets = [0, 128], sizes = [4, 128], strides = [1, 1]} : vector<4x512xf32> to vector<4x128xf32>
    %211 = arith.negf %210 : vector<4x128xf32>
    %212 = math.exp %211 : vector<4x128xf32>
    %cst_47 = arith.constant 1.000000e+00 : f32
    %213 = vector.broadcast %cst_47 : f32 to vector<4x128xf32>
    %214 = arith.addf %213, %212 : vector<4x128xf32>
    %215 = arith.divf %213, %214 : vector<4x128xf32>
    %216 = vector.extract_strided_slice %203 {offsets = [0, 256], sizes = [4, 128], strides = [1, 1]} : vector<4x512xf32> to vector<4x128xf32>
    %217 = math.tanh %216 : vector<4x128xf32>
    %218 = vector.extract_strided_slice %203 {offsets = [0, 384], sizes = [4, 128], strides = [1, 1]} : vector<4x512xf32> to vector<4x128xf32>
    %219 = arith.negf %218 : vector<4x128xf32>
    %220 = math.exp %219 : vector<4x128xf32>
    %cst_48 = arith.constant 1.000000e+00 : f32
    %221 = vector.broadcast %cst_48 : f32 to vector<4x128xf32>
    %222 = arith.addf %221, %220 : vector<4x128xf32>
    %223 = arith.divf %221, %222 : vector<4x128xf32>
    %224 = arith.mulf %215, %190 : vector<4x128xf32>
    %225 = arith.mulf %209, %217 : vector<4x128xf32>
    %226 = arith.addf %224, %225 : vector<4x128xf32>
    %227 = math.tanh %226 : vector<4x128xf32>
    %228 = arith.mulf %223, %227 : vector<4x128xf32>
    %229 = vector.extract_strided_slice %39 {offsets = [10, 0], sizes = [2, 512], strides = [1, 1]} : vector<16x1024xf32> to vector<2x512xf32>
    %230 = vector.extract_strided_slice %39 {offsets = [4, 512], sizes = [2, 512], strides = [1, 1]} : vector<16x1024xf32> to vector<2x512xf32>
    %231 = tpu.concatenate %229, %230 in 0 : vector<2x512xf32>, vector<2x512xf32> -> vector<4x512xf32>
    %232 = vector.broadcast %44 : vector<4x1xf32> to vector<4x128xf32>
    %233 = arith.mulf %228, %232 : vector<4x128xf32>
    %234 = vector.broadcast %46 : vector<4x1xf32> to vector<4x128xf32>
    %235 = arith.mulf %228, %234 : vector<4x128xf32>
    %236 = tpu.concatenate %233, %235 in 1 : vector<4x128xf32>, vector<4x128xf32> -> vector<4x256xf32>
    %c0_49 = arith.constant 0 : index
    %c0_50 = arith.constant 0 : index
    %237 = vector.load %arg7[%c0_49, %c0_50] : memref<256x512xf32, #tpu.memory_space<vmem>>, vector<256x512xf32>
    %cst_51 = arith.constant dense<0.000000e+00> : vector<4x512xf32>
    %238 = tpu.matmul %236, %237, %cst_51 {dimension_numbers = #tpu.dot_dimension_numbers<[1], [0], [0], [1], [0, 0, 1, 1], [], []>} : vector<4x256xf32>, vector<256x512xf32>, vector<4x512xf32> -> vector<4x512xf32>
    %239 = arith.addf %231, %238 : vector<4x512xf32>
    %240 = vector.extract_strided_slice %239 {offsets = [0, 0], sizes = [4, 128], strides = [1, 1]} : vector<4x512xf32> to vector<4x128xf32>
    %241 = arith.negf %240 : vector<4x128xf32>
    %242 = math.exp %241 : vector<4x128xf32>
    %cst_52 = arith.constant 1.000000e+00 : f32
    %243 = vector.broadcast %cst_52 : f32 to vector<4x128xf32>
    %244 = arith.addf %243, %242 : vector<4x128xf32>
    %245 = arith.divf %243, %244 : vector<4x128xf32>
    %246 = vector.extract_strided_slice %239 {offsets = [0, 128], sizes = [4, 128], strides = [1, 1]} : vector<4x512xf32> to vector<4x128xf32>
    %247 = arith.negf %246 : vector<4x128xf32>
    %248 = math.exp %247 : vector<4x128xf32>
    %cst_53 = arith.constant 1.000000e+00 : f32
    %249 = vector.broadcast %cst_53 : f32 to vector<4x128xf32>
    %250 = arith.addf %249, %248 : vector<4x128xf32>
    %251 = arith.divf %249, %250 : vector<4x128xf32>
    %252 = vector.extract_strided_slice %239 {offsets = [0, 256], sizes = [4, 128], strides = [1, 1]} : vector<4x512xf32> to vector<4x128xf32>
    %253 = math.tanh %252 : vector<4x128xf32>
    %254 = vector.extract_strided_slice %239 {offsets = [0, 384], sizes = [4, 128], strides = [1, 1]} : vector<4x512xf32> to vector<4x128xf32>
    %255 = arith.negf %254 : vector<4x128xf32>
    %256 = math.exp %255 : vector<4x128xf32>
    %cst_54 = arith.constant 1.000000e+00 : f32
    %257 = vector.broadcast %cst_54 : f32 to vector<4x128xf32>
    %258 = arith.addf %257, %256 : vector<4x128xf32>
    %259 = arith.divf %257, %258 : vector<4x128xf32>
    %260 = arith.mulf %251, %226 : vector<4x128xf32>
    %261 = arith.mulf %245, %253 : vector<4x128xf32>
    %262 = arith.addf %260, %261 : vector<4x128xf32>
    %263 = math.tanh %262 : vector<4x128xf32>
    %264 = arith.mulf %259, %263 : vector<4x128xf32>
    %265 = vector.extract_strided_slice %39 {offsets = [12, 0], sizes = [2, 512], strides = [1, 1]} : vector<16x1024xf32> to vector<2x512xf32>
    %266 = vector.extract_strided_slice %39 {offsets = [2, 512], sizes = [2, 512], strides = [1, 1]} : vector<16x1024xf32> to vector<2x512xf32>
    %267 = tpu.concatenate %265, %266 in 0 : vector<2x512xf32>, vector<2x512xf32> -> vector<4x512xf32>
    %268 = vector.broadcast %44 : vector<4x1xf32> to vector<4x128xf32>
    %269 = arith.mulf %264, %268 : vector<4x128xf32>
    %270 = vector.broadcast %46 : vector<4x1xf32> to vector<4x128xf32>
    %271 = arith.mulf %264, %270 : vector<4x128xf32>
    %272 = tpu.concatenate %269, %271 in 1 : vector<4x128xf32>, vector<4x128xf32> -> vector<4x256xf32>
    %c0_55 = arith.constant 0 : index
    %c0_56 = arith.constant 0 : index
    %273 = vector.load %arg7[%c0_55, %c0_56] : memref<256x512xf32, #tpu.memory_space<vmem>>, vector<256x512xf32>
    %cst_57 = arith.constant dense<0.000000e+00> : vector<4x512xf32>
    %274 = tpu.matmul %272, %273, %cst_57 {dimension_numbers = #tpu.dot_dimension_numbers<[1], [0], [0], [1], [0, 0, 1, 1], [], []>} : vector<4x256xf32>, vector<256x512xf32>, vector<4x512xf32> -> vector<4x512xf32>
    %275 = arith.addf %267, %274 : vector<4x512xf32>
    %276 = vector.extract_strided_slice %275 {offsets = [0, 0], sizes = [4, 128], strides = [1, 1]} : vector<4x512xf32> to vector<4x128xf32>
    %277 = arith.negf %276 : vector<4x128xf32>
    %278 = math.exp %277 : vector<4x128xf32>
    %cst_58 = arith.constant 1.000000e+00 : f32
    %279 = vector.broadcast %cst_58 : f32 to vector<4x128xf32>
    %280 = arith.addf %279, %278 : vector<4x128xf32>
    %281 = arith.divf %279, %280 : vector<4x128xf32>
    %282 = vector.extract_strided_slice %275 {offsets = [0, 128], sizes = [4, 128], strides = [1, 1]} : vector<4x512xf32> to vector<4x128xf32>
    %283 = arith.negf %282 : vector<4x128xf32>
    %284 = math.exp %283 : vector<4x128xf32>
    %cst_59 = arith.constant 1.000000e+00 : f32
    %285 = vector.broadcast %cst_59 : f32 to vector<4x128xf32>
    %286 = arith.addf %285, %284 : vector<4x128xf32>
    %287 = arith.divf %285, %286 : vector<4x128xf32>
    %288 = vector.extract_strided_slice %275 {offsets = [0, 256], sizes = [4, 128], strides = [1, 1]} : vector<4x512xf32> to vector<4x128xf32>
    %289 = math.tanh %288 : vector<4x128xf32>
    %290 = vector.extract_strided_slice %275 {offsets = [0, 384], sizes = [4, 128], strides = [1, 1]} : vector<4x512xf32> to vector<4x128xf32>
    %291 = arith.negf %290 : vector<4x128xf32>
    %292 = math.exp %291 : vector<4x128xf32>
    %cst_60 = arith.constant 1.000000e+00 : f32
    %293 = vector.broadcast %cst_60 : f32 to vector<4x128xf32>
    %294 = arith.addf %293, %292 : vector<4x128xf32>
    %295 = arith.divf %293, %294 : vector<4x128xf32>
    %296 = arith.mulf %287, %262 : vector<4x128xf32>
    %297 = arith.mulf %281, %289 : vector<4x128xf32>
    %298 = arith.addf %296, %297 : vector<4x128xf32>
    %299 = math.tanh %298 : vector<4x128xf32>
    %300 = arith.mulf %295, %299 : vector<4x128xf32>
    %301 = vector.extract_strided_slice %39 {offsets = [14, 0], sizes = [2, 512], strides = [1, 1]} : vector<16x1024xf32> to vector<2x512xf32>
    %302 = vector.extract_strided_slice %39 {offsets = [0, 512], sizes = [2, 512], strides = [1, 1]} : vector<16x1024xf32> to vector<2x512xf32>
    %303 = tpu.concatenate %301, %302 in 0 : vector<2x512xf32>, vector<2x512xf32> -> vector<4x512xf32>
    %304 = vector.broadcast %44 : vector<4x1xf32> to vector<4x128xf32>
    %305 = arith.mulf %300, %304 : vector<4x128xf32>
    %306 = vector.broadcast %46 : vector<4x1xf32> to vector<4x128xf32>
    %307 = arith.mulf %300, %306 : vector<4x128xf32>
    %308 = tpu.concatenate %305, %307 in 1 : vector<4x128xf32>, vector<4x128xf32> -> vector<4x256xf32>
    %c0_61 = arith.constant 0 : index
    %c0_62 = arith.constant 0 : index
    %309 = vector.load %arg7[%c0_61, %c0_62] : memref<256x512xf32, #tpu.memory_space<vmem>>, vector<256x512xf32>
    %cst_63 = arith.constant dense<0.000000e+00> : vector<4x512xf32>
    %310 = tpu.matmul %308, %309, %cst_63 {dimension_numbers = #tpu.dot_dimension_numbers<[1], [0], [0], [1], [0, 0, 1, 1], [], []>} : vector<4x256xf32>, vector<256x512xf32>, vector<4x512xf32> -> vector<4x512xf32>
    %311 = arith.addf %303, %310 : vector<4x512xf32>
    %312 = vector.extract_strided_slice %311 {offsets = [0, 0], sizes = [4, 128], strides = [1, 1]} : vector<4x512xf32> to vector<4x128xf32>
    %313 = arith.negf %312 : vector<4x128xf32>
    %314 = math.exp %313 : vector<4x128xf32>
    %cst_64 = arith.constant 1.000000e+00 : f32
    %315 = vector.broadcast %cst_64 : f32 to vector<4x128xf32>
    %316 = arith.addf %315, %314 : vector<4x128xf32>
    %317 = arith.divf %315, %316 : vector<4x128xf32>
    %318 = vector.extract_strided_slice %311 {offsets = [0, 128], sizes = [4, 128], strides = [1, 1]} : vector<4x512xf32> to vector<4x128xf32>
    %319 = arith.negf %318 : vector<4x128xf32>
    %320 = math.exp %319 : vector<4x128xf32>
    %cst_65 = arith.constant 1.000000e+00 : f32
    %321 = vector.broadcast %cst_65 : f32 to vector<4x128xf32>
    %322 = arith.addf %321, %320 : vector<4x128xf32>
    %323 = arith.divf %321, %322 : vector<4x128xf32>
    %324 = vector.extract_strided_slice %311 {offsets = [0, 256], sizes = [4, 128], strides = [1, 1]} : vector<4x512xf32> to vector<4x128xf32>
    %325 = math.tanh %324 : vector<4x128xf32>
    %326 = vector.extract_strided_slice %311 {offsets = [0, 384], sizes = [4, 128], strides = [1, 1]} : vector<4x512xf32> to vector<4x128xf32>
    %327 = arith.negf %326 : vector<4x128xf32>
    %328 = math.exp %327 : vector<4x128xf32>
    %cst_66 = arith.constant 1.000000e+00 : f32
    %329 = vector.broadcast %cst_66 : f32 to vector<4x128xf32>
    %330 = arith.addf %329, %328 : vector<4x128xf32>
    %331 = arith.divf %329, %330 : vector<4x128xf32>
    %332 = arith.mulf %323, %298 : vector<4x128xf32>
    %333 = arith.mulf %317, %325 : vector<4x128xf32>
    %334 = arith.addf %332, %333 : vector<4x128xf32>
    %335 = math.tanh %334 : vector<4x128xf32>
    %336 = arith.mulf %331, %335 : vector<4x128xf32>
    %337 = vector.extract_strided_slice %84 {offsets = [0, 0], sizes = [2, 128], strides = [1, 1]} : vector<4x128xf32> to vector<2x128xf32>
    %338 = vector.extract_strided_slice %120 {offsets = [0, 0], sizes = [2, 128], strides = [1, 1]} : vector<4x128xf32> to vector<2x128xf32>
    %339 = vector.extract_strided_slice %156 {offsets = [0, 0], sizes = [2, 128], strides = [1, 1]} : vector<4x128xf32> to vector<2x128xf32>
    %340 = vector.extract_strided_slice %192 {offsets = [0, 0], sizes = [2, 128], strides = [1, 1]} : vector<4x128xf32> to vector<2x128xf32>
    %341 = vector.extract_strided_slice %228 {offsets = [0, 0], sizes = [2, 128], strides = [1, 1]} : vector<4x128xf32> to vector<2x128xf32>
    %342 = vector.extract_strided_slice %264 {offsets = [0, 0], sizes = [2, 128], strides = [1, 1]} : vector<4x128xf32> to vector<2x128xf32>
    %343 = vector.extract_strided_slice %300 {offsets = [0, 0], sizes = [2, 128], strides = [1, 1]} : vector<4x128xf32> to vector<2x128xf32>
    %344 = vector.extract_strided_slice %336 {offsets = [0, 0], sizes = [2, 128], strides = [1, 1]} : vector<4x128xf32> to vector<2x128xf32>
    %345 = tpu.concatenate %337, %338, %339, %340, %341, %342, %343, %344 in 0 : vector<2x128xf32>, vector<2x128xf32>, vector<2x128xf32>, vector<2x128xf32>, vector<2x128xf32>, vector<2x128xf32>, vector<2x128xf32>, vector<2x128xf32> -> vector<16x128xf32>
    %346 = vector.extract_strided_slice %336 {offsets = [2, 0], sizes = [2, 128], strides = [1, 1]} : vector<4x128xf32> to vector<2x128xf32>
    %347 = vector.extract_strided_slice %300 {offsets = [2, 0], sizes = [2, 128], strides = [1, 1]} : vector<4x128xf32> to vector<2x128xf32>
    %348 = vector.extract_strided_slice %264 {offsets = [2, 0], sizes = [2, 128], strides = [1, 1]} : vector<4x128xf32> to vector<2x128xf32>
    %349 = vector.extract_strided_slice %228 {offsets = [2, 0], sizes = [2, 128], strides = [1, 1]} : vector<4x128xf32> to vector<2x128xf32>
    %350 = vector.extract_strided_slice %192 {offsets = [2, 0], sizes = [2, 128], strides = [1, 1]} : vector<4x128xf32> to vector<2x128xf32>
    %351 = vector.extract_strided_slice %156 {offsets = [2, 0], sizes = [2, 128], strides = [1, 1]} : vector<4x128xf32> to vector<2x128xf32>
    %352 = vector.extract_strided_slice %120 {offsets = [2, 0], sizes = [2, 128], strides = [1, 1]} : vector<4x128xf32> to vector<2x128xf32>
    %353 = vector.extract_strided_slice %84 {offsets = [2, 0], sizes = [2, 128], strides = [1, 1]} : vector<4x128xf32> to vector<2x128xf32>
    %354 = tpu.concatenate %346, %347, %348, %349, %350, %351, %352, %353 in 0 : vector<2x128xf32>, vector<2x128xf32>, vector<2x128xf32>, vector<2x128xf32>, vector<2x128xf32>, vector<2x128xf32>, vector<2x128xf32>, vector<2x128xf32> -> vector<16x128xf32>
    %c0_67 = arith.constant 0 : index
    %c0_68 = arith.constant 0 : index
    %355 = vector.load %arg8[%c0_67, %c0_68] : memref<128x100xf32, #tpu.memory_space<vmem>>, vector<128x100xf32>
    %cst_69 = arith.constant dense<0.000000e+00> : vector<16x100xf32>
    %356 = tpu.matmul %345, %355, %cst_69 {dimension_numbers = #tpu.dot_dimension_numbers<[1], [0], [0], [1], [0, 0, 1, 1], [], []>} : vector<16x128xf32>, vector<128x100xf32>, vector<16x100xf32> -> vector<16x100xf32>
    %c0_70 = arith.constant 0 : index
    %c0_71 = arith.constant 0 : index
    %357 = vector.load %arg9[%c0_70, %c0_71] : memref<128x100xf32, #tpu.memory_space<vmem>>, vector<128x100xf32>
    %cst_72 = arith.constant dense<0.000000e+00> : vector<16x100xf32>
    %358 = tpu.matmul %354, %357, %cst_72 {dimension_numbers = #tpu.dot_dimension_numbers<[1], [0], [0], [1], [0, 0, 1, 1], [], []>} : vector<16x128xf32>, vector<128x100xf32>, vector<16x100xf32> -> vector<16x100xf32>
    %359 = arith.addf %356, %358 : vector<16x100xf32>
    %c0_73 = arith.constant 0 : index
    %c0_74 = arith.constant 0 : index
    %360 = vector.load %arg10[%c0_73, %c0_74] : memref<50x100xf32, #tpu.memory_space<vmem>>, vector<50x100xf32>
    %cst_75 = arith.constant dense<0.000000e+00> : vector<16x100xf32>
    %361 = tpu.matmul %31, %360, %cst_75 {dimension_numbers = #tpu.dot_dimension_numbers<[1], [0], [0], [1], [0, 0, 1, 1], [], []>} : vector<16x50xf32>, vector<50x100xf32>, vector<16x100xf32> -> vector<16x100xf32>
    %362 = arith.addf %359, %361 : vector<16x100xf32>
    %c0_76 = arith.constant 0 : index
    %c0_77 = arith.constant 0 : index
    %363 = vector.load %arg11[%c0_76, %c0_77] : memref<1x100xf32, #tpu.memory_space<vmem>>, vector<1x100xf32>
    %364 = vector.broadcast %363 : vector<1x100xf32> to vector<16x100xf32>
    %365 = arith.addf %362, %364 : vector<16x100xf32>
    %cst_78 = arith.constant 0.000000e+00 : f32
    %366 = vector.broadcast %cst_78 : f32 to vector<16x100xf32>
    %367 = arith.maximumf %365, %366 : vector<16x100xf32>
    %c0_79 = arith.constant 0 : index
    %c0_80 = arith.constant 0 : index
    %368 = vector.load %arg12[%c0_79, %c0_80] : memref<100x30xf32, #tpu.memory_space<vmem>>, vector<100x30xf32>
    %cst_81 = arith.constant dense<0.000000e+00> : vector<16x30xf32>
    %369 = tpu.matmul %367, %368, %cst_81 {dimension_numbers = #tpu.dot_dimension_numbers<[1], [0], [0], [1], [0, 0, 1, 1], [], []>} : vector<16x100xf32>, vector<100x30xf32>, vector<16x30xf32> -> vector<16x30xf32>
    %c0_82 = arith.constant 0 : index
    %c0_83 = arith.constant 0 : index
    %370 = vector.load %arg13[%c0_82, %c0_83] : memref<1x30xf32, #tpu.memory_space<vmem>>, vector<1x30xf32>
    %371 = vector.broadcast %370 : vector<1x30xf32> to vector<16x30xf32>
    %372 = arith.addf %369, %371 : vector<16x30xf32>
    %cst_84 = arith.constant 0.000000e+00 : f32
    %373 = vector.broadcast %cst_84 : f32 to vector<16x30xf32>
    %374 = arith.maximumf %372, %373 : vector<16x30xf32>
    %c0_85 = arith.constant 0 : index
    %c0_86 = arith.constant 0 : index
    %375 = vector.load %arg14[%c0_85, %c0_86] : memref<30x128xf32, #tpu.memory_space<vmem>>, vector<30x128xf32>
    %cst_87 = arith.constant dense<0.000000e+00> : vector<16x128xf32>
    %376 = tpu.matmul %374, %375, %cst_87 {dimension_numbers = #tpu.dot_dimension_numbers<[1], [0], [0], [1], [0, 0, 1, 1], [], []>} : vector<16x30xf32>, vector<30x128xf32>, vector<16x128xf32> -> vector<16x128xf32>
    %c0_88 = arith.constant 0 : index
    %c0_89 = arith.constant 0 : index
    %377 = vector.load %arg15[%c0_88, %c0_89] : memref<1x128xf32, #tpu.memory_space<vmem>>, vector<1x128xf32>
    %378 = vector.broadcast %377 : vector<1x128xf32> to vector<16x128xf32>
    %379 = arith.addf %376, %378 : vector<16x128xf32>
    %c0_90 = arith.constant 0 : index
    %c0_91 = arith.constant 0 : index
    %380 = vector.load %arg16[%c0_90, %c0_91] : memref<16x128xf32, #tpu.memory_space<vmem>>, vector<16x128xf32>
    tpu.vector_store %arg16[%c0_90, %c0_91], %379 {strides = array<i32>} : memref<16x128xf32, #tpu.memory_space<vmem>>, vector<16x128xf32>,
    return
  }
}

</mosaic_0001>

<llo_original>
// kernel: interffe_forward.1
$region0: #{interffe_forward.1}
  #allocation0 [shape = 'u32[]', space=smem, size = 0x4, offset = 0x4, fixed_abs, tag = 'smem constant byte address 0x4 - core index']
  #allocation1 [shape = 'u32[72,128]{1,0:T(1,128)}', space=vmem, size = 0x9000, scoped, tag = 'internal scratch']
  %s0 = inlined_call_operand.vmem [shape: s32[16,1], index: 0, kind: input, shape index: {}]
  %s1 = inlined_call_operand.vmem [shape: s32[128,3], index: 1, kind: input, shape index: {}]
  %s2 = inlined_call_operand.vmem [shape: f32[91,50], index: 2, kind: input, shape index: {}]
  %s3 = inlined_call_operand.vmem [shape: f32[1,50], index: 3, kind: input, shape index: {}]
  %s4 = inlined_call_operand.vmem [shape: f32[20,1024], index: 4, kind: input, shape index: {}]
  %s5 = inlined_call_operand.hbm [shape: f32[50,1024], index: 5, kind: input, shape index: {}]
  %s6 = inlined_call_operand.vmem [shape: f32[1,1024], index: 6, kind: input, shape index: {}]
  %s7 = inlined_call_operand.vmem [shape: f32[256,512], index: 7, kind: input, shape index: {}]
  %s8 = inlined_call_operand.vmem [shape: f32[128,100], index: 8, kind: input, shape index: {}]
  %s9 = inlined_call_operand.vmem [shape: f32[128,100], index: 9, kind: input, shape index: {}]
  %s10 = inlined_call_operand.vmem [shape: f32[50,100], index: 10, kind: input, shape index: {}]
  %s11 = inlined_call_operand.vmem [shape: f32[1,100], index: 11, kind: input, shape index: {}]
  %s12 = inlined_call_operand.vmem [shape: f32[100,30], index: 12, kind: input, shape index: {}]
  %s13 = inlined_call_operand.vmem [shape: f32[1,30], index: 13, kind: input, shape index: {}]
  %s14 = inlined_call_operand.vmem [shape: f32[30,128], index: 14, kind: input, shape index: {}]
  %s15 = inlined_call_operand.vmem [shape: f32[1,128], index: 15, kind: input, shape index: {}]
  %s16 = inlined_call_operand.vmem [shape: f32[16,128], index: 16, kind: output, shape index: {}]
  %s17 = sld [smem:[#allocation0]]
  $region78: #{interffe_forward.1} parent=0
    _
  %s19 = ssub.s32 1, %s17
  %s20 = scalar_select 0, %s19, %s17
  $region1: #{interffe_forward.1} parent=0
    #allocation2 [shape = 'u8[229376]{0}', space=vmem, size = 0x38000, scoped, tag = 'input window, operand 5, single buffered']
    #allocation3 [shape = 's32[1]{0}', space=sflag, size = 0x4, scoped, tag = 'scoped memory for interffe_forward.1']
    %21 = vsyncpa [#allocation3], 0
    // Predicated region
    $region2: #{interffe_forward.1} parent=1 // pred_check
      _
    $region3: #{interffe_forward.1} parent=1 // pred_check_branch
      %23 = sbr.rel (0) target = $region5
    $region4: #{interffe_forward.1} parent=1 // pred_region
      _
    $region5: #{interffe_forward.1} parent=1 // pred_fallthru
      _
    // Predicated region
    $region6: #{interffe_forward.1} parent=1 // pred_check
      _
    $region7: #{interffe_forward.1} parent=1 // pred_check_branch
      %25 = sbr.rel (0) target = $region9
    $region8: #{interffe_forward.1} parent=1 // pred_region
      _
    $region9: #{interffe_forward.1} parent=1 // pred_fallthru
      _
    // Predicated region
    $region10: #{interffe_forward.1} parent=1 // pred_check
      _
    $region11: #{interffe_forward.1} parent=1 // pred_check_branch
      %27 = sbr.rel (0) target = $region13
    $region12: #{interffe_forward.1} parent=1 // pred_region
      _
    $region13: #{interffe_forward.1} parent=1 // pred_fallthru
      _
    // Predicated region
    $region14: #{interffe_forward.1} parent=1 // pred_check
      _
    $region15: #{interffe_forward.1} parent=1 // pred_check_branch
      %29 = sbr.rel (0) target = $region17
    $region16: #{interffe_forward.1} parent=1 // pred_region
      _
    $region17: #{interffe_forward.1} parent=1 // pred_fallthru
      _
    // Predicated region
    $region18: #{interffe_forward.1} parent=1 // pred_check
      _
    $region19: #{interffe_forward.1} parent=1 // pred_check_branch
      %31 = sbr.rel (0) target = $region21
    $region20: #{interffe_forward.1} parent=1 // pred_region
      _
    $region21: #{interffe_forward.1} parent=1 // pred_fallthru
      _
    // Predicated region
    $region22: #{interffe_forward.1} parent=1 // pred_check
      _
    $region23: #{interffe_forward.1} parent=1 // pred_check_branch
      %33 = sbr.rel (0) target = $region25
    $region24: #{interffe_forward.1} parent=1 // pred_region
      %35 = vsyncadd [#allocation3], 0
      %s36 = sshll.u32 %s5, 4
      %s37 = int_to_ptr.hbm [resolvable:$true] %s36
      %s38 = sshll.u32 [#allocation2], 4
      %s39 = int_to_ptr.vmem [resolvable:$true] %s38
      %44 = dma.hbm_to_vmem [thread:$0]  %s37, 7168, %s39, [#allocation3], 1024, 1024, 64
    $region25: #{interffe_forward.1} parent=1 // pred_fallthru
      _
    // Predicated region
    $region26: #{interffe_forward.1} parent=1 // pred_check
      _
    $region27: #{interffe_forward.1} parent=1 // pred_check_branch
      %46 = sbr.rel (0) target = $region29
    $region28: #{interffe_forward.1} parent=1 // pred_region
      _
    $region29: #{interffe_forward.1} parent=1 // pred_fallthru
      _
    // Predicated region
    $region30: #{interffe_forward.1} parent=1 // pred_check
      _
    $region31: #{interffe_forward.1} parent=1 // pred_check_branch
      %48 = sbr.rel (0) target = $region33
    $region32: #{interffe_forward.1} parent=1 // pred_region
      _
    $region33: #{interffe_forward.1} parent=1 // pred_fallthru
      _
    // Predicated region
    $region34: #{interffe_forward.1} parent=1 // pred_check
      _
    $region35: #{interffe_forward.1} parent=1 // pred_check_branch
      %50 = sbr.rel (0) target = $region37
    $region36: #{interffe_forward.1} parent=1 // pred_region
      _
    $region37: #{interffe_forward.1} parent=1 // pred_fallthru
      _
    // Predicated region
    $region38: #{interffe_forward.1} parent=1 // pred_check
      _
    $region39: #{interffe_forward.1} parent=1 // pred_check_branch
      %52 = sbr.rel (0) target = $region41
    $region40: #{interffe_forward.1} parent=1 // pred_region
      _
    $region41: #{interffe_forward.1} parent=1 // pred_fallthru
      _
    // Predicated region
    $region42: #{interffe_forward.1} parent=1 // pred_check
      _
    $region43: #{interffe_forward.1} parent=1 // pred_check_branch
      %54 = sbr.rel (0) target = $region45
    $region44: #{interffe_forward.1} parent=1 // pred_region
      _
    $region45: #{interffe_forward.1} parent=1 // pred_fallthru
      _
    // Predicated region
    $region46: #{interffe_forward.1} parent=1 // pred_check
      _
    $region47: #{interffe_forward.1} parent=1 // pred_check_branch
      %56 = sbr.rel (0) target = $region49
    $region48: #{interffe_forward.1} parent=1 // pred_region
      _
    $region49: #{interffe_forward.1} parent=1 // pred_fallthru
      _
    // Predicated region
    $region50: #{interffe_forward.1} parent=1 // pred_check
      _
    $region51: #{interffe_forward.1} parent=1 // pred_check_branch
      %58 = sbr.rel (0) target = $region53
    $region52: #{interffe_forward.1} parent=1 // pred_region
      _
    $region53: #{interffe_forward.1} parent=1 // pred_fallthru
      _
    // Predicated region
    $region54: #{interffe_forward.1} parent=1 // pred_check
      _
    $region55: #{interffe_forward.1} parent=1 // pred_check_branch
      %60 = sbr.rel (0) target = $region57
    $region56: #{interffe_forward.1} parent=1 // pred_region
      _
    $region57: #{interffe_forward.1} parent=1 // pred_fallthru
      _
    // Predicated region
    $region58: #{interffe_forward.1} parent=1 // pred_check
      _
    $region59: #{interffe_forward.1} parent=1 // pred_check_branch
      %62 = sbr.rel (0) target = $region61
    $region60: #{interffe_forward.1} parent=1 // pred_region
      _
    $region61: #{interffe_forward.1} parent=1 // pred_fallthru
      _
    // Predicated region
    $region62: #{interffe_forward.1} parent=1 // pred_check
      _
    $region63: #{interffe_forward.1} parent=1 // pred_check_branch
      %64 = sbr.rel (0) target = $region65
    $region64: #{interffe_forward.1} parent=1 // pred_region
      _
    $region65: #{interffe_forward.1} parent=1 // pred_fallthru
      _
    // Predicated region
    $region66: #{interffe_forward.1} parent=1 // pred_check
      _
    $region67: #{interffe_forward.1} parent=1 // pred_check_branch
      %66 = sbr.rel (0) target = $region69
    $region68: #{interffe_forward.1} parent=1 // pred_region
      %68 = dma.done [#allocation3], 7168
    $region69: #{interffe_forward.1} parent=1 // pred_fallthru
      _
    %v69 = vld [vmem:[%s0] sm:$0xff]
    %v70 = vld [vmem:[%s0 + $0x8] sm:$0xff]
    %v71 = vlaneseq
    %v72 = vand.u32 %v71, 127
    %73 = vset.pattern.permute.xlu0 0
    %74 = vperm.xlu0 %73, %v69
    %v75 = vpop.permute.xlu0 %74
    %76 = vset.pattern.permute.xlu0 0
    %77 = vperm.xlu0 %76, %v70
    %v78 = vpop.permute.xlu0 %77
    %vm79 = vcmp.eq.s32.totalorder %v75, %v72
    %vm80 = vcmp.eq.s32.totalorder %v78, %v72
    %v81 = vsel %vm79, 1, 0
    %v82 = vsel %vm80, 1, 0
    %v83 = vcvt.s32.f32 %v81
    %v84 = vcvt.s32.f32 %v82
    %v85 = vld [vmem:[%s1] sm:$0xff]
    %v86 = vld [vmem:[%s1 + $0x8] sm:$0xff]
    %v87 = vld [vmem:[%s1 + $0x10] sm:$0xff]
    %v88 = vld [vmem:[%s1 + $0x18] sm:$0xff]
    %v89 = vld [vmem:[%s1 + $0x20] sm:$0xff]
    %v90 = vld [vmem:[%s1 + $0x28] sm:$0xff]
    %v91 = vld [vmem:[%s1 + $0x30] sm:$0xff]
    %v92 = vld [vmem:[%s1 + $0x38] sm:$0xff]
    %v93 = vld [vmem:[%s1 + $0x40] sm:$0xff]
    %v94 = vld [vmem:[%s1 + $0x48] sm:$0xff]
    %v95 = vld [vmem:[%s1 + $0x50] sm:$0xff]
    %v96 = vld [vmem:[%s1 + $0x58] sm:$0xff]
    %v97 = vld [vmem:[%s1 + $0x60] sm:$0xff]
    %v98 = vld [vmem:[%s1 + $0x68] sm:$0xff]
    %v99 = vld [vmem:[%s1 + $0x70] sm:$0xff]
    %v100 = vld [vmem:[%s1 + $0x78] sm:$0xff]
    %101 = vset.pattern.permute.xlu0 0
    %102 = vperm.xlu0 %101, %v85
    %v103 = vpop.permute.xlu0 %102
    %104 = vset.pattern.permute.xlu0 0
    %105 = vperm.xlu0 %104, %v86
    %v106 = vpop.permute.xlu0 %105
    %107 = vset.pattern.permute.xlu0 0
    %108 = vperm.xlu0 %107, %v87
    %v109 = vpop.permute.xlu0 %108
    %110 = vset.pattern.permute.xlu0 0
    %111 = vperm.xlu0 %110, %v88
    %v112 = vpop.permute.xlu0 %111
    %113 = vset.pattern.permute.xlu0 0
    %114 = vperm.xlu0 %113, %v89
    %v115 = vpop.permute.xlu0 %114
    %116 = vset.pattern.permute.xlu0 0
    %117 = vperm.xlu0 %116, %v90
    %v118 = vpop.permute.xlu0 %117
    %119 = vset.pattern.permute.xlu0 0
    %120 = vperm.xlu0 %119, %v91
    %v121 = vpop.permute.xlu0 %120
    %122 = vset.pattern.permute.xlu0 0
    %123 = vperm.xlu0 %122, %v92
    %v124 = vpop.permute.xlu0 %123
    %125 = vset.pattern.permute.xlu0 0
    %126 = vperm.xlu0 %125, %v93
    %v127 = vpop.permute.xlu0 %126
    %128 = vset.pattern.permute.xlu0 0
    %129 = vperm.xlu0 %128, %v94
    %v130 = vpop.permute.xlu0 %129
    %131 = vset.pattern.permute.xlu0 0
    %132 = vperm.xlu0 %131, %v95
    %v133 = vpop.permute.xlu0 %132
    %134 = vset.pattern.permute.xlu0 0
    %135 = vperm.xlu0 %134, %v96
    %v136 = vpop.permute.xlu0 %135
    %137 = vset.pattern.permute.xlu0 0
    %138 = vperm.xlu0 %137, %v97
    %v139 = vpop.permute.xlu0 %138
    %140 = vset.pattern.permute.xlu0 0
    %141 = vperm.xlu0 %140, %v98
    %v142 = vpop.permute.xlu0 %141
    %143 = vset.pattern.permute.xlu0 0
    %144 = vperm.xlu0 %143, %v99
    %v145 = vpop.permute.xlu0 %144
    %146 = vset.pattern.permute.xlu0 0
    %147 = vperm.xlu0 %146, %v100
    %v148 = vpop.permute.xlu0 %147
    %vm149 = vcmp.eq.s32.totalorder %v103, %v72
    %vm150 = vcmp.eq.s32.totalorder %v106, %v72
    %vm151 = vcmp.eq.s32.totalorder %v109, %v72
    %vm152 = vcmp.eq.s32.totalorder %v112, %v72
    %vm153 = vcmp.eq.s32.totalorder %v115, %v72
    %vm154 = vcmp.eq.s32.totalorder %v118, %v72
    %vm155 = vcmp.eq.s32.totalorder %v121, %v72
    %vm156 = vcmp.eq.s32.totalorder %v124, %v72
    %vm157 = vcmp.eq.s32.totalorder %v127, %v72
    %vm158 = vcmp.eq.s32.totalorder %v130, %v72
    %vm159 = vcmp.eq.s32.totalorder %v133, %v72
    %vm160 = vcmp.eq.s32.totalorder %v136, %v72
    %vm161 = vcmp.eq.s32.totalorder %v139, %v72
    %vm162 = vcmp.eq.s32.totalorder %v142, %v72
    %vm163 = vcmp.eq.s32.totalorder %v145, %v72
    %vm164 = vcmp.eq.s32.totalorder %v148, %v72
    %v165 = vsel %vm149, 1, 0
    %v166 = vsel %vm150, 1, 0
    %v167 = vsel %vm151, 1, 0
    %v168 = vsel %vm152, 1, 0
    %v169 = vsel %vm153, 1, 0
    %v170 = vsel %vm154, 1, 0
    %v171 = vsel %vm155, 1, 0
    %v172 = vsel %vm156, 1, 0
    %v173 = vsel %vm157, 1, 0
    %v174 = vsel %vm158, 1, 0
    %v175 = vsel %vm159, 1, 0
    %v176 = vsel %vm160, 1, 0
    %v177 = vsel %vm161, 1, 0
    %v178 = vsel %vm162, 1, 0
    %v179 = vsel %vm163, 1, 0
    %v180 = vsel %vm164, 1, 0
    %v181 = vcvt.s32.f32 %v165
    %v182 = vcvt.s32.f32 %v166
    %v183 = vcvt.s32.f32 %v167
    %v184 = vcvt.s32.f32 %v168
    %v185 = vcvt.s32.f32 %v169
    %v186 = vcvt.s32.f32 %v170
    %v187 = vcvt.s32.f32 %v171
    %v188 = vcvt.s32.f32 %v172
    %v189 = vcvt.s32.f32 %v173
    %v190 = vcvt.s32.f32 %v174
    %v191 = vcvt.s32.f32 %v175
    %v192 = vcvt.s32.f32 %v176
    %v193 = vcvt.s32.f32 %v177
    %v194 = vcvt.s32.f32 %v178
    %v195 = vcvt.s32.f32 %v179
    %v196 = vcvt.s32.f32 %v180
    %197 = vset.pattern.permute.xlu0 1
    %198 = vperm.xlu0 %197, %v85
    %v199 = vpop.permute.xlu0 %198
    %200 = vset.pattern.permute.xlu0 1
    %201 = vperm.xlu0 %200, %v86
    %v202 = vpop.permute.xlu0 %201
    %203 = vset.pattern.permute.xlu0 1
    %204 = vperm.xlu0 %203, %v87
    %v205 = vpop.permute.xlu0 %204
    %206 = vset.pattern.permute.xlu0 1
    %207 = vperm.xlu0 %206, %v88
    %v208 = vpop.permute.xlu0 %207
    %209 = vset.pattern.permute.xlu0 1
    %210 = vperm.xlu0 %209, %v89
    %v211 = vpop.permute.xlu0 %210
    %212 = vset.pattern.permute.xlu0 1
    %213 = vperm.xlu0 %212, %v90
    %v214 = vpop.permute.xlu0 %213
    %215 = vset.pattern.permute.xlu0 1
    %216 = vperm.xlu0 %215, %v91
    %v217 = vpop.permute.xlu0 %216
    %218 = vset.pattern.permute.xlu0 1
    %219 = vperm.xlu0 %218, %v92
    %v220 = vpop.permute.xlu0 %219
    %221 = vset.pattern.permute.xlu0 1
    %222 = vperm.xlu0 %221, %v93
    %v223 = vpop.permute.xlu0 %222
    %224 = vset.pattern.permute.xlu0 1
    %225 = vperm.xlu0 %224, %v94
    %v226 = vpop.permute.xlu0 %225
    %227 = vset.pattern.permute.xlu0 1
    %228 = vperm.xlu0 %227, %v95
    %v229 = vpop.permute.xlu0 %228
    %230 = vset.pattern.permute.xlu0 1
    %231 = vperm.xlu0 %230, %v96
    %v232 = vpop.permute.xlu0 %231
    %233 = vset.pattern.permute.xlu0 1
    %234 = vperm.xlu0 %233, %v97
    %v235 = vpop.permute.xlu0 %234
    %236 = vset.pattern.permute.xlu0 1
    %237 = vperm.xlu0 %236, %v98
    %v238 = vpop.permute.xlu0 %237
    %239 = vset.pattern.permute.xlu0 1
    %240 = vperm.xlu0 %239, %v99
    %v241 = vpop.permute.xlu0 %240
    %242 = vset.pattern.permute.xlu0 1
    %243 = vperm.xlu0 %242, %v100
    %v244 = vpop.permute.xlu0 %243
    %vm245 = vcmp.eq.s32.totalorder %v199, %v72
    %vm246 = vcmp.eq.s32.totalorder %v202, %v72
    %vm247 = vcmp.eq.s32.totalorder %v205, %v72
    %vm248 = vcmp.eq.s32.totalorder %v208, %v72
    %vm249 = vcmp.eq.s32.totalorder %v211, %v72
    %vm250 = vcmp.eq.s32.totalorder %v214, %v72
    %vm251 = vcmp.eq.s32.totalorder %v217, %v72
    %vm252 = vcmp.eq.s32.totalorder %v220, %v72
    %vm253 = vcmp.eq.s32.totalorder %v223, %v72
    %vm254 = vcmp.eq.s32.totalorder %v226, %v72
    %vm255 = vcmp.eq.s32.totalorder %v229, %v72
    %vm256 = vcmp.eq.s32.totalorder %v232, %v72
    %vm257 = vcmp.eq.s32.totalorder %v235, %v72
    %vm258 = vcmp.eq.s32.totalorder %v238, %v72
    %vm259 = vcmp.eq.s32.totalorder %v241, %v72
    %vm260 = vcmp.eq.s32.totalorder %v244, %v72
    %v261 = vsel %vm245, 1, 0
    %v262 = vsel %vm246, 1, 0
    %v263 = vsel %vm247, 1, 0
    %v264 = vsel %vm248, 1, 0
    %v265 = vsel %vm249, 1, 0
    %v266 = vsel %vm250, 1, 0
    %v267 = vsel %vm251, 1, 0
    %v268 = vsel %vm252, 1, 0
    %v269 = vsel %vm253, 1, 0
    %v270 = vsel %vm254, 1, 0
    %v271 = vsel %vm255, 1, 0
    %v272 = vsel %vm256, 1, 0
    %v273 = vsel %vm257, 1, 0
    %v274 = vsel %vm258, 1, 0
    %v275 = vsel %vm259, 1, 0
    %v276 = vsel %vm260, 1, 0
    %v277 = vcvt.s32.f32 %v261
    %v278 = vcvt.s32.f32 %v262
    %v279 = vcvt.s32.f32 %v263
    %v280 = vcvt.s32.f32 %v264
    %v281 = vcvt.s32.f32 %v265
    %v282 = vcvt.s32.f32 %v266
    %v283 = vcvt.s32.f32 %v267
    %v284 = vcvt.s32.f32 %v268
    %v285 = vcvt.s32.f32 %v269
    %v286 = vcvt.s32.f32 %v270
    %v287 = vcvt.s32.f32 %v271
    %v288 = vcvt.s32.f32 %v272
    %v289 = vcvt.s32.f32 %v273
    %v290 = vcvt.s32.f32 %v274
    %v291 = vcvt.s32.f32 %v275
    %v292 = vcvt.s32.f32 %v276
    %v293 = vadd.f32 %v181, %v277
    %v294 = vadd.f32 %v182, %v278
    %v295 = vadd.f32 %v183, %v279
    %v296 = vadd.f32 %v184, %v280
    %v297 = vadd.f32 %v185, %v281
    %v298 = vadd.f32 %v186, %v282
    %v299 = vadd.f32 %v187, %v283
    %v300 = vadd.f32 %v188, %v284
    %v301 = vadd.f32 %v189, %v285
    %v302 = vadd.f32 %v190, %v286
    %v303 = vadd.f32 %v191, %v287
    %v304 = vadd.f32 %v192, %v288
    %v305 = vadd.f32 %v193, %v289
    %v306 = vadd.f32 %v194, %v290
    %v307 = vadd.f32 %v195, %v291
    %v308 = vadd.f32 %v196, %v292
    %309 = vset.pattern.permute.xlu0 2
    %310 = vperm.xlu0 %309, %v85
    %v311 = vpop.permute.xlu0 %310
    %312 = vset.pattern.permute.xlu0 2
    %313 = vperm.xlu0 %312, %v86
    %v314 = vpop.permute.xlu0 %313
    %315 = vset.pattern.permute.xlu0 2
    %316 = vperm.xlu0 %315, %v87
    %v317 = vpop.permute.xlu0 %316
    %318 = vset.pattern.permute.xlu0 2
    %319 = vperm.xlu0 %318, %v88
    %v320 = vpop.permute.xlu0 %319
    %321 = vset.pattern.permute.xlu0 2
    %322 = vperm.xlu0 %321, %v89
    %v323 = vpop.permute.xlu0 %322
    %324 = vset.pattern.permute.xlu0 2
    %325 = vperm.xlu0 %324, %v90
    %v326 = vpop.permute.xlu0 %325
    %327 = vset.pattern.permute.xlu0 2
    %328 = vperm.xlu0 %327, %v91
    %v329 = vpop.permute.xlu0 %328
    %330 = vset.pattern.permute.xlu0 2
    %331 = vperm.xlu0 %330, %v92
    %v332 = vpop.permute.xlu0 %331
    %333 = vset.pattern.permute.xlu0 2
    %334 = vperm.xlu0 %333, %v93
    %v335 = vpop.permute.xlu0 %334
    %336 = vset.pattern.permute.xlu0 2
    %337 = vperm.xlu0 %336, %v94
    %v338 = vpop.permute.xlu0 %337
    %339 = vset.pattern.permute.xlu0 2
    %340 = vperm.xlu0 %339, %v95
    %v341 = vpop.permute.xlu0 %340
    %342 = vset.pattern.permute.xlu0 2
    %343 = vperm.xlu0 %342, %v96
    %v344 = vpop.permute.xlu0 %343
    %345 = vset.pattern.permute.xlu0 2
    %346 = vperm.xlu0 %345, %v97
    %v347 = vpop.permute.xlu0 %346
    %348 = vset.pattern.permute.xlu0 2
    %349 = vperm.xlu0 %348, %v98
    %v350 = vpop.permute.xlu0 %349
    %351 = vset.pattern.permute.xlu0 2
    %352 = vperm.xlu0 %351, %v99
    %v353 = vpop.permute.xlu0 %352
    %354 = vset.pattern.permute.xlu0 2
    %355 = vperm.xlu0 %354, %v100
    %v356 = vpop.permute.xlu0 %355
    %vm357 = vcmp.eq.s32.totalorder %v311, %v72
    %vm358 = vcmp.eq.s32.totalorder %v314, %v72
    %vm359 = vcmp.eq.s32.totalorder %v317, %v72
    %vm360 = vcmp.eq.s32.totalorder %v320, %v72
    %vm361 = vcmp.eq.s32.totalorder %v323, %v72
    %vm362 = vcmp.eq.s32.totalorder %v326, %v72
    %vm363 = vcmp.eq.s32.totalorder %v329, %v72
    %vm364 = vcmp.eq.s32.totalorder %v332, %v72
    %vm365 = vcmp.eq.s32.totalorder %v335, %v72
    %vm366 = vcmp.eq.s32.totalorder %v338, %v72
    %vm367 = vcmp.eq.s32.totalorder %v341, %v72
    %vm368 = vcmp.eq.s32.totalorder %v344, %v72
    %vm369 = vcmp.eq.s32.totalorder %v347, %v72
    %vm370 = vcmp.eq.s32.totalorder %v350, %v72
    %vm371 = vcmp.eq.s32.totalorder %v353, %v72
    %vm372 = vcmp.eq.s32.totalorder %v356, %v72
    %v373 = vsel %vm357, 1, 0
    %v374 = vsel %vm358, 1, 0
    %v375 = vsel %vm359, 1, 0
    %v376 = vsel %vm360, 1, 0
    %v377 = vsel %vm361, 1, 0
    %v378 = vsel %vm362, 1, 0
    %v379 = vsel %vm363, 1, 0
    %v380 = vsel %vm364, 1, 0
    %v381 = vsel %vm365, 1, 0
    %v382 = vsel %vm366, 1, 0
    %v383 = vsel %vm367, 1, 0
    %v384 = vsel %vm368, 1, 0
    %v385 = vsel %vm369, 1, 0
    %v386 = vsel %vm370, 1, 0
    %v387 = vsel %vm371, 1, 0
    %v388 = vsel %vm372, 1, 0
    %v389 = vcvt.s32.f32 %v373
    %v390 = vcvt.s32.f32 %v374
    %v391 = vcvt.s32.f32 %v375
    %v392 = vcvt.s32.f32 %v376
    %v393 = vcvt.s32.f32 %v377
    %v394 = vcvt.s32.f32 %v378
    %v395 = vcvt.s32.f32 %v379
    %v396 = vcvt.s32.f32 %v380
    %v397 = vcvt.s32.f32 %v381
    %v398 = vcvt.s32.f32 %v382
    %v399 = vcvt.s32.f32 %v383
    %v400 = vcvt.s32.f32 %v384
    %v401 = vcvt.s32.f32 %v385
    %v402 = vcvt.s32.f32 %v386
    %v403 = vcvt.s32.f32 %v387
    %v404 = vcvt.s32.f32 %v388
    %v405 = vadd.f32 %v293, %v389
    %v406 = vadd.f32 %v294, %v390
    %v407 = vadd.f32 %v295, %v391
    %v408 = vadd.f32 %v296, %v392
    %v409 = vadd.f32 %v297, %v393
    %v410 = vadd.f32 %v298, %v394
    %v411 = vadd.f32 %v299, %v395
    %v412 = vadd.f32 %v300, %v396
    %v413 = vadd.f32 %v301, %v397
    %v414 = vadd.f32 %v302, %v398
    %v415 = vadd.f32 %v303, %v399
    %v416 = vadd.f32 %v304, %v400
    %v417 = vadd.f32 %v305, %v401
    %v418 = vadd.f32 %v306, %v402
    %v419 = vadd.f32 %v307, %v403
    %v420 = vadd.f32 %v308, %v404
    %v421 = vld [vmem:[%s2] sm:$0xff]
    %v422 = vld [vmem:[%s2 + $0x8] sm:$0xff]
    %v423 = vld [vmem:[%s2 + $0x10] sm:$0xff]
    %v424 = vld [vmem:[%s2 + $0x18] sm:$0xff]
    %v425 = vld [vmem:[%s2 + $0x20] sm:$0xff]
    %v426 = vld [vmem:[%s2 + $0x28] sm:$0xff]
    %v427 = vld [vmem:[%s2 + $0x30] sm:$0xff]
    %v428 = vld [vmem:[%s2 + $0x38] sm:$0xff]
    %v429 = vld [vmem:[%s2 + $0x40] sm:$0xff]
    %v430 = vld [vmem:[%s2 + $0x48] sm:$0xff]
    %v431 = vld [vmem:[%s2 + $0x50] sm:$0xff]
    %v432 = vld [vmem:[%s2 + $0x58] sm:$0x7]
    %v433 = vld [vmem:[%s3] sm:$0x1]
    %v435 = vperm.slane %v433, 0
    %vm437 = vcmask 744448
    %v439 = vsel %vm437, %v405, 0
    %v442 = vsel %vm437, %v406, 0
    %v445 = vsel %vm437, %v407, 0
    %v448 = vsel %vm437, %v408, 0
    %v451 = vsel %vm437, %v409, 0
    %v454 = vsel %vm437, %v410, 0
    %v457 = vsel %vm437, %v411, 0
    %v460 = vsel %vm437, %v412, 0
    %v463 = vsel %vm437, %v413, 0
    %v466 = vsel %vm437, %v414, 0
    %v469 = vsel %vm437, %v415, 0
    %v472 = vsel %vm437, %v416, 0
    %v475 = vsel %vm437, %v417, 0
    %v478 = vsel %vm437, %v418, 0
    %v481 = vsel %vm437, %v419, 0
    %v484 = vsel %vm437, %v420, 0
    %vm486 = vcmask 1042432
    %v488 = vsel %vm486, %v432, 0
    %490 = vmatpush.msra.mxu0 0.0
    %491 = vmatpush.msra.mxu0 0.0
    %492 = vmatpush.msra.mxu0 0.0
    %493 = vmatpush.msra.mxu0 0.0
    %494 = vmatpush.msra.mxu0 %v488
    %495 = vmatpush.msra.mxu0 %v431
    %496 = vmatpush.msra.mxu0 %v430
    %497 = vmatpush.msra.mxu0 %v429
    %498 = vmatpush.msra.mxu0 %v428
    %499 = vmatpush.msra.mxu0 %v427
    %500 = vmatpush.msra.mxu0 %v426
    %501 = vmatpush.msra.mxu0 %v425
    %502 = vmatpush.msra.mxu0 %v424
    %503 = vmatpush.msra.mxu0 %v423
    %504 = vmatpush.msra.mxu0 %v422
    %505 = vmatpush.msra.mxu0 %v421
    %506 = vmatmul.f32.gmra.mxu0 %v439
    %v507 = vpop.f32.mrf.mxu0
    %v508 = vadd.f32 %v435, %v507
    %509 = vmatmul.f32.gmra.mxu0 %v442
    %v510 = vpop.f32.mrf.mxu0
    %v511 = vadd.f32 %v435, %v510
    %512 = vmatmul.f32.gmra.mxu0 %v445
    %v513 = vpop.f32.mrf.mxu0
    %v514 = vadd.f32 %v435, %v513
    %515 = vmatmul.f32.gmra.mxu0 %v448
    %v516 = vpop.f32.mrf.mxu0
    %v517 = vadd.f32 %v435, %v516
    %518 = vmatmul.f32.gmra.mxu0 %v451
    %v519 = vpop.f32.mrf.mxu0
    %v520 = vadd.f32 %v435, %v519
    %521 = vmatmul.f32.gmra.mxu0 %v454
    %v522 = vpop.f32.mrf.mxu0
    %v523 = vadd.f32 %v435, %v522
    %524 = vmatmul.f32.gmra.mxu0 %v457
    %v525 = vpop.f32.mrf.mxu0
    %v526 = vadd.f32 %v435, %v525
    %527 = vmatmul.f32.gmra.mxu0 %v460
    %v528 = vpop.f32.mrf.mxu0
    %v529 = vadd.f32 %v435, %v528
    %530 = vmatmul.f32.gmra.mxu0 %v463
    %v531 = vpop.f32.mrf.mxu0
    %v532 = vadd.f32 %v435, %v531
    %533 = vmatmul.f32.gmra.mxu0 %v466
    %v534 = vpop.f32.mrf.mxu0
    %v535 = vadd.f32 %v435, %v534
    %536 = vmatmul.f32.gmra.mxu0 %v469
    %v537 = vpop.f32.mrf.mxu0
    %v538 = vadd.f32 %v435, %v537
    %539 = vmatmul.f32.gmra.mxu0 %v472
    %v540 = vpop.f32.mrf.mxu0
    %v541 = vadd.f32 %v435, %v540
    %542 = vmatmul.f32.gmra.mxu0 %v475
    %v543 = vpop.f32.mrf.mxu0
    %v544 = vadd.f32 %v435, %v543
    %545 = vmatmul.f32.gmra.mxu0 %v478
    %v546 = vpop.f32.mrf.mxu0
    %v547 = vadd.f32 %v435, %v546
    %548 = vmatmul.f32.gmra.mxu0 %v481
    %v549 = vpop.f32.mrf.mxu0
    %v550 = vadd.f32 %v435, %v549
    %551 = vmatmul.f32.gmra.mxu0 %v484
    %v552 = vpop.f32.mrf.mxu0
    %v553 = vadd.f32 %v435, %v552
    %554 = vdwg.mxu0
    %vm555 = vcmask 408576
    %v556 = vsel %vm555, %v508, -inf
    %v557 = vrot.slane %v556, 4
    %v558 = vmax.f32 %v556, %v557
    %v559 = vrot.slane %v558, 2
    %v560 = vmax.f32 %v558, %v559
    %v561 = vrot.slane %v560, 1
    %v562 = vmax.f32 %v560, %v561
    %v563 = vsel %vm555, %v511, -inf
    %v564 = vrot.slane %v563, 4
    %v565 = vmax.f32 %v563, %v564
    %v566 = vrot.slane %v565, 2
    %v567 = vmax.f32 %v565, %v566
    %v568 = vrot.slane %v567, 1
    %v569 = vmax.f32 %v567, %v568
    %v570 = vsel %vm555, %v514, -inf
    %v571 = vrot.slane %v570, 4
    %v572 = vmax.f32 %v570, %v571
    %v573 = vrot.slane %v572, 2
    %v574 = vmax.f32 %v572, %v573
    %v575 = vrot.slane %v574, 1
    %v576 = vmax.f32 %v574, %v575
    %v577 = vsel %vm555, %v517, -inf
    %v578 = vrot.slane %v577, 4
    %v579 = vmax.f32 %v577, %v578
    %v580 = vrot.slane %v579, 2
    %v581 = vmax.f32 %v579, %v580
    %v582 = vrot.slane %v581, 1
    %v583 = vmax.f32 %v581, %v582
    %v584 = vsel %vm555, %v520, -inf
    %v585 = vrot.slane %v584, 4
    %v586 = vmax.f32 %v584, %v585
    %v587 = vrot.slane %v586, 2
    %v588 = vmax.f32 %v586, %v587
    %v589 = vrot.slane %v588, 1
    %v590 = vmax.f32 %v588, %v589
    %v591 = vsel %vm555, %v523, -inf
    %v592 = vrot.slane %v591, 4
    %v593 = vmax.f32 %v591, %v592
    %v594 = vrot.slane %v593, 2
    %v595 = vmax.f32 %v593, %v594
    %v596 = vrot.slane %v595, 1
    %v597 = vmax.f32 %v595, %v596
    %v598 = vsel %vm555, %v526, -inf
    %v599 = vrot.slane %v598, 4
    %v600 = vmax.f32 %v598, %v599
    %v601 = vrot.slane %v600, 2
    %v602 = vmax.f32 %v600, %v601
    %v603 = vrot.slane %v602, 1
    %v604 = vmax.f32 %v602, %v603
    %v605 = vsel %vm555, %v529, -inf
    %v606 = vrot.slane %v605, 4
    %v607 = vmax.f32 %v605, %v606
    %v608 = vrot.slane %v607, 2
    %v609 = vmax.f32 %v607, %v608
    %v610 = vrot.slane %v609, 1
    %v611 = vmax.f32 %v609, %v610
    %v612 = vsel %vm555, %v532, -inf
    %v613 = vrot.slane %v612, 4
    %v614 = vmax.f32 %v612, %v613
    %v615 = vrot.slane %v614, 2
    %v616 = vmax.f32 %v614, %v615
    %v617 = vrot.slane %v616, 1
    %v618 = vmax.f32 %v616, %v617
    %v619 = vsel %vm555, %v535, -inf
    %v620 = vrot.slane %v619, 4
    %v621 = vmax.f32 %v619, %v620
    %v622 = vrot.slane %v621, 2
    %v623 = vmax.f32 %v621, %v622
    %v624 = vrot.slane %v623, 1
    %v625 = vmax.f32 %v623, %v624
    %v626 = vsel %vm555, %v538, -inf
    %v627 = vrot.slane %v626, 4
    %v628 = vmax.f32 %v626, %v627
    %v629 = vrot.slane %v628, 2
    %v630 = vmax.f32 %v628, %v629
    %v631 = vrot.slane %v630, 1
    %v632 = vmax.f32 %v630, %v631
    %v633 = vsel %vm555, %v541, -inf
    %v634 = vrot.slane %v633, 4
    %v635 = vmax.f32 %v633, %v634
    %v636 = vrot.slane %v635, 2
    %v637 = vmax.f32 %v635, %v636
    %v638 = vrot.slane %v637, 1
    %v639 = vmax.f32 %v637, %v638
    %v640 = vsel %vm555, %v544, -inf
    %v641 = vrot.slane %v640, 4
    %v642 = vmax.f32 %v640, %v641
    %v643 = vrot.slane %v642, 2
    %v644 = vmax.f32 %v642, %v643
    %v645 = vrot.slane %v644, 1
    %v646 = vmax.f32 %v644, %v645
    %v647 = vsel %vm555, %v547, -inf
    %v648 = vrot.slane %v647, 4
    %v649 = vmax.f32 %v647, %v648
    %v650 = vrot.slane %v649, 2
    %v651 = vmax.f32 %v649, %v650
    %v652 = vrot.slane %v651, 1
    %v653 = vmax.f32 %v651, %v652
    %v654 = vsel %vm555, %v550, -inf
    %v655 = vrot.slane %v654, 4
    %v656 = vmax.f32 %v654, %v655
    %v657 = vrot.slane %v656, 2
    %v658 = vmax.f32 %v656, %v657
    %v659 = vrot.slane %v658, 1
    %v660 = vmax.f32 %v658, %v659
    %v661 = vsel %vm555, %v553, -inf
    %v662 = vrot.slane %v661, 4
    %v663 = vmax.f32 %v661, %v662
    %v664 = vrot.slane %v663, 2
    %v665 = vmax.f32 %v663, %v664
    %v666 = vrot.slane %v665, 1
    %v667 = vmax.f32 %v665, %v666
    %v668 = vld [vmem:[%s4] sm:$0xff]
    %v669 = vld [vmem:[%s4 + $0x8] sm:$0xff]
    %v670 = vld [vmem:[%s4 + $0x10] sm:$0xff]
    %v671 = vld [vmem:[%s4 + $0x18] sm:$0xff]
    %v672 = vld [vmem:[%s4 + $0x20] sm:$0xff]
    %v673 = vld [vmem:[%s4 + $0x28] sm:$0xff]
    %v674 = vld [vmem:[%s4 + $0x30] sm:$0xff]
    %v675 = vld [vmem:[%s4 + $0x38] sm:$0xff]
    %v676 = vld [vmem:[%s4 + $0x40] sm:$0xff]
    %v677 = vld [vmem:[%s4 + $0x48] sm:$0xff]
    %v678 = vld [vmem:[%s4 + $0x50] sm:$0xff]
    %v679 = vld [vmem:[%s4 + $0x58] sm:$0xff]
    %v680 = vld [vmem:[%s4 + $0x60] sm:$0xff]
    %v681 = vld [vmem:[%s4 + $0x68] sm:$0xff]
    %v682 = vld [vmem:[%s4 + $0x70] sm:$0xff]
    %v683 = vld [vmem:[%s4 + $0x78] sm:$0xff]
    %v684 = vld [vmem:[%s4 + $0x80] sm:$0xf]
    %v685 = vld [vmem:[%s4 + $0x88] sm:$0xf]
    %v686 = vld [vmem:[%s4 + $0x90] sm:$0xf]
    %v687 = vld [vmem:[%s4 + $0x98] sm:$0xf]
    %v688 = vld [vmem:[%s4 + $0xa0] sm:$0xf]
    %v689 = vld [vmem:[%s4 + $0xa8] sm:$0xf]
    %v690 = vld [vmem:[%s4 + $0xb0] sm:$0xf]
    %v691 = vld [vmem:[%s4 + $0xb8] sm:$0xf]
    %v692 = vld [vmem:[#allocation2] sm:$0xff]
    %v693 = vld [vmem:[#allocation2 + $0x8] sm:$0xff]
    %v694 = vld [vmem:[#allocation2 + $0x10] sm:$0xff]
    %v695 = vld [vmem:[#allocation2 + $0x18] sm:$0xff]
    %v696 = vld [vmem:[#allocation2 + $0x20] sm:$0xff]
    %v697 = vld [vmem:[#allocation2 + $0x28] sm:$0xff]
    %v698 = vld [vmem:[#allocation2 + $0x30] sm:$0xff]
    %v699 = vld [vmem:[#allocation2 + $0x38] sm:$0xff]
    %v700 = vld [vmem:[#allocation2 + $0x40] sm:$0xff]
    %v701 = vld [vmem:[#allocation2 + $0x48] sm:$0xff]
    %v702 = vld [vmem:[#allocation2 + $0x50] sm:$0xff]
    %v703 = vld [vmem:[#allocation2 + $0x58] sm:$0xff]
    %v704 = vld [vmem:[#allocation2 + $0x60] sm:$0xff]
    %v705 = vld [vmem:[#allocation2 + $0x68] sm:$0xff]
    %v706 = vld [vmem:[#allocation2 + $0x70] sm:$0xff]
    %v707 = vld [vmem:[#allocation2 + $0x78] sm:$0xff]
    %v708 = vld [vmem:[#allocation2 + $0x80] sm:$0xff]
    %v709 = vld [vmem:[#allocation2 + $0x88] sm:$0xff]
    %v710 = vld [vmem:[#allocation2 + $0x90] sm:$0xff]
    %v711 = vld [vmem:[#allocation2 + $0x98] sm:$0xff]
    %v712 = vld [vmem:[#allocation2 + $0xa0] sm:$0xff]
    %v713 = vld [vmem:[#allocation2 + $0xa8] sm:$0xff]
    %v714 = vld [vmem:[#allocation2 + $0xb0] sm:$0xff]
    %v715 = vld [vmem:[#allocation2 + $0xb8] sm:$0xff]
    %v716 = vld [vmem:[#allocation2 + $0xc0] sm:$0xff]
    %v717 = vld [vmem:[#allocation2 + $0xc8] sm:$0xff]
    %v718 = vld [vmem:[#allocation2 + $0xd0] sm:$0xff]
    %v719 = vld [vmem:[#allocation2 + $0xd8] sm:$0xff]
    %v720 = vld [vmem:[#allocation2 + $0xe0] sm:$0xff]
    %v721 = vld [vmem:[#allocation2 + $0xe8] sm:$0xff]
    %v722 = vld [vmem:[#allocation2 + $0xf0] sm:$0xff]
    %v723 = vld [vmem:[#allocation2 + $0xf8] sm:$0xff]
    %v724 = vld [vmem:[#allocation2 + $0x100] sm:$0xff]
    %v725 = vld [vmem:[#allocation2 + $0x108] sm:$0xff]
    %v726 = vld [vmem:[#allocation2 + $0x110] sm:$0xff]
    %v727 = vld [vmem:[#allocation2 + $0x118] sm:$0xff]
    %v728 = vld [vmem:[#allocation2 + $0x120] sm:$0xff]
    %v729 = vld [vmem:[#allocation2 + $0x128] sm:$0xff]
    %v730 = vld [vmem:[#allocation2 + $0x130] sm:$0xff]
    %v731 = vld [vmem:[#allocation2 + $0x138] sm:$0xff]
    %v732 = vld [vmem:[#allocation2 + $0x140] sm:$0xff]
    %v733 = vld [vmem:[#allocation2 + $0x148] sm:$0xff]
    %v734 = vld [vmem:[#allocation2 + $0x150] sm:$0xff]
    %v735 = vld [vmem:[#allocation2 + $0x158] sm:$0xff]
    %v736 = vld [vmem:[#allocation2 + $0x160] sm:$0xff]
    %v737 = vld [vmem:[#allocation2 + $0x168] sm:$0xff]
    %v738 = vld [vmem:[#allocation2 + $0x170] sm:$0xff]
    %v739 = vld [vmem:[#allocation2 + $0x178] sm:$0xff]
    %v740 = vld [vmem:[#allocation2 + $0x180] sm:$0x3]
    %v741 = vld [vmem:[#allocation2 + $0x188] sm:$0x3]
    %v742 = vld [vmem:[#allocation2 + $0x190] sm:$0x3]
    %v743 = vld [vmem:[#allocation2 + $0x198] sm:$0x3]
    %v744 = vld [vmem:[#allocation2 + $0x1a0] sm:$0x3]
    %v745 = vld [vmem:[#allocation2 + $0x1a8] sm:$0x3]
    %v746 = vld [vmem:[#allocation2 + $0x1b0] sm:$0x3]
    %v747 = vld [vmem:[#allocation2 + $0x1b8] sm:$0x3]
    %vm764 = vcmask 1041409
    %v765 = vsel %vm764, %v569, %v562
    %vm766 = vcmask 1042434
    %v767 = vsel %vm766, %v576, %v765
    %vm768 = vcmask 1043459
    %v769 = vsel %vm768, %v583, %v767
    %vm770 = vcmask 1044484
    %v771 = vsel %vm770, %v590, %v769
    %vm772 = vcmask 1045509
    %v773 = vsel %vm772, %v597, %v771
    %vm774 = vcmask 1046534
    %v775 = vsel %vm774, %v604, %v773
    %vm776 = vcmask 1047559
    %v777 = vsel %vm776, %v611, %v775
    %v778 = vsel %vm764, %v625, %v618
    %v779 = vsel %vm766, %v632, %v778
    %v780 = vsel %vm768, %v639, %v779
    %v781 = vsel %vm770, %v646, %v780
    %v782 = vsel %vm772, %v653, %v781
    %v783 = vsel %vm774, %v660, %v782
    %v784 = vsel %vm776, %v667, %v783
    %v785 = vsel %vm555, %v777, 0
    %v787 = vsel %vm555, %v784, 0
    %vm789 = vcmask 1041408
    %v791 = vsel %vm789, %v740, 0
    %v794 = vsel %vm789, %v741, 0
    %v797 = vsel %vm789, %v742, 0
    %v800 = vsel %vm789, %v743, 0
    %v803 = vsel %vm789, %v744, 0
    %v806 = vsel %vm789, %v745, 0
    %v809 = vsel %vm789, %v746, 0
    %v812 = vsel %vm789, %v747, 0
    %814 = vmatpush.msra.mxu0 0.0
    %815 = vmatpush.msra.mxu0 0.0
    %816 = vmatpush.msra.mxu0 0.0
    %817 = vmatpush.msra.mxu0 0.0
    %818 = vmatpush.msra.mxu0 0.0
    %819 = vmatpush.msra.mxu0 0.0
    %820 = vmatpush.msra.mxu0 0.0
    %821 = vmatpush.msra.mxu0 0.0
    %822 = vmatpush.msra.mxu0 0.0
    %823 = vmatpush.msra.mxu0 %v791
    %824 = vmatpush.msra.mxu0 %v732
    %825 = vmatpush.msra.mxu0 %v724
    %826 = vmatpush.msra.mxu0 %v716
    %827 = vmatpush.msra.mxu0 %v708
    %828 = vmatpush.msra.mxu0 %v700
    %829 = vmatpush.msra.mxu0 %v692
    %830 = vmatmul.f32.gmra.mxu0 %v785
    %v831 = vpop.f32.mrf.mxu0
    %v832 = vadd.f32 0.0, %v831
    %833 = vmatmul.f32.gmra.mxu0 %v787
    %v834 = vpop.f32.mrf.mxu0
    %v835 = vadd.f32 0.0, %v834
    %836 = vdwg.mxu0
    %837 = vmatpush.msra.mxu0 0.0
    %838 = vmatpush.msra.mxu0 0.0
    %839 = vmatpush.msra.mxu0 0.0
    %840 = vmatpush.msra.mxu0 0.0
    %841 = vmatpush.msra.mxu0 0.0
    %842 = vmatpush.msra.mxu0 0.0
    %843 = vmatpush.msra.mxu0 0.0
    %844 = vmatpush.msra.mxu0 0.0
    %845 = vmatpush.msra.mxu0 0.0
    %846 = vmatpush.msra.mxu0 %v794
    %847 = vmatpush.msra.mxu0 %v733
    %848 = vmatpush.msra.mxu0 %v725
    %849 = vmatpush.msra.mxu0 %v717
    %850 = vmatpush.msra.mxu0 %v709
    %851 = vmatpush.msra.mxu0 %v701
    %852 = vmatpush.msra.mxu0 %v693
    %853 = vmatmul.f32.gmra.mxu0 %v785
    %v854 = vpop.f32.mrf.mxu0
    %v855 = vadd.f32 0.0, %v854
    %856 = vmatmul.f32.gmra.mxu0 %v787
    %v857 = vpop.f32.mrf.mxu0
    %v858 = vadd.f32 0.0, %v857
    %859 = vdwg.mxu0
    %860 = vmatpush.msra.mxu0 0.0
    %861 = vmatpush.msra.mxu0 0.0
    %862 = vmatpush.msra.mxu0 0.0
    %863 = vmatpush.msra.mxu0 0.0
    %864 = vmatpush.msra.mxu0 0.0
    %865 = vmatpush.msra.mxu0 0.0
    %866 = vmatpush.msra.mxu0 0.0
    %867 = vmatpush.msra.mxu0 0.0
    %868 = vmatpush.msra.mxu0 0.0
    %869 = vmatpush.msra.mxu0 %v797
    %870 = vmatpush.msra.mxu0 %v734
    %871 = vmatpush.msra.mxu0 %v726
    %872 = vmatpush.msra.mxu0 %v718
    %873 = vmatpush.msra.mxu0 %v710
    %874 = vmatpush.msra.mxu0 %v702
    %875 = vmatpush.msra.mxu0 %v694
    %876 = vmatmul.f32.gmra.mxu0 %v785
    %v877 = vpop.f32.mrf.mxu0
    %v878 = vadd.f32 0.0, %v877
    %879 = vmatmul.f32.gmra.mxu0 %v787
    %v880 = vpop.f32.mrf.mxu0
    %v881 = vadd.f32 0.0, %v880
    %882 = vdwg.mxu0
    %883 = vmatpush.msra.mxu0 0.0
    %884 = vmatpush.msra.mxu0 0.0
    %885 = vmatpush.msra.mxu0 0.0
    %886 = vmatpush.msra.mxu0 0.0
    %887 = vmatpush.msra.mxu0 0.0
    %888 = vmatpush.msra.mxu0 0.0
    %889 = vmatpush.msra.mxu0 0.0
    %890 = vmatpush.msra.mxu0 0.0
    %891 = vmatpush.msra.mxu0 0.0
    %892 = vmatpush.msra.mxu0 %v800
    %893 = vmatpush.msra.mxu0 %v735
    %894 = vmatpush.msra.mxu0 %v727
    %895 = vmatpush.msra.mxu0 %v719
    %896 = vmatpush.msra.mxu0 %v711
    %897 = vmatpush.msra.mxu0 %v703
    %898 = vmatpush.msra.mxu0 %v695
    %899 = vmatmul.f32.gmra.mxu0 %v785
    %v900 = vpop.f32.mrf.mxu0
    %v901 = vadd.f32 0.0, %v900
    %902 = vmatmul.f32.gmra.mxu0 %v787
    %v903 = vpop.f32.mrf.mxu0
    %v904 = vadd.f32 0.0, %v903
    %905 = vdwg.mxu0
    %906 = vmatpush.msra.mxu0 0.0
    %907 = vmatpush.msra.mxu0 0.0
    %908 = vmatpush.msra.mxu0 0.0
    %909 = vmatpush.msra.mxu0 0.0
    %910 = vmatpush.msra.mxu0 0.0
    %911 = vmatpush.msra.mxu0 0.0
    %912 = vmatpush.msra.mxu0 0.0
    %913 = vmatpush.msra.mxu0 0.0
    %914 = vmatpush.msra.mxu0 0.0
    %915 = vmatpush.msra.mxu0 %v803
    %916 = vmatpush.msra.mxu0 %v736
    %917 = vmatpush.msra.mxu0 %v728
    %918 = vmatpush.msra.mxu0 %v720
    %919 = vmatpush.msra.mxu0 %v712
    %920 = vmatpush.msra.mxu0 %v704
    %921 = vmatpush.msra.mxu0 %v696
    %922 = vmatmul.f32.gmra.mxu0 %v785
    %v923 = vpop.f32.mrf.mxu0
    %v924 = vadd.f32 0.0, %v923
    %925 = vmatmul.f32.gmra.mxu0 %v787
    %v926 = vpop.f32.mrf.mxu0
    %v927 = vadd.f32 0.0, %v926
    %928 = vdwg.mxu0
    %929 = vmatpush.msra.mxu0 0.0
    %930 = vmatpush.msra.mxu0 0.0
    %931 = vmatpush.msra.mxu0 0.0
    %932 = vmatpush.msra.mxu0 0.0
    %933 = vmatpush.msra.mxu0 0.0
    %934 = vmatpush.msra.mxu0 0.0
    %935 = vmatpush.msra.mxu0 0.0
    %936 = vmatpush.msra.mxu0 0.0
    %937 = vmatpush.msra.mxu0 0.0
    %938 = vmatpush.msra.mxu0 %v806
    %939 = vmatpush.msra.mxu0 %v737
    %940 = vmatpush.msra.mxu0 %v729
    %941 = vmatpush.msra.mxu0 %v721
    %942 = vmatpush.msra.mxu0 %v713
    %943 = vmatpush.msra.mxu0 %v705
    %944 = vmatpush.msra.mxu0 %v697
    %945 = vmatmul.f32.gmra.mxu0 %v785
    %v946 = vpop.f32.mrf.mxu0
    %v947 = vadd.f32 0.0, %v946
    %948 = vmatmul.f32.gmra.mxu0 %v787
    %v949 = vpop.f32.mrf.mxu0
    %v950 = vadd.f32 0.0, %v949
    %951 = vdwg.mxu0
    %952 = vmatpush.msra.mxu0 0.0
    %953 = vmatpush.msra.mxu0 0.0
    %954 = vmatpush.msra.mxu0 0.0
    %955 = vmatpush.msra.mxu0 0.0
    %956 = vmatpush.msra.mxu0 0.0
    %957 = vmatpush.msra.mxu0 0.0
    %958 = vmatpush.msra.mxu0 0.0
    %959 = vmatpush.msra.mxu0 0.0
    %960 = vmatpush.msra.mxu0 0.0
    %961 = vmatpush.msra.mxu0 %v809
    %962 = vmatpush.msra.mxu0 %v738
    %963 = vmatpush.msra.mxu0 %v730
    %964 = vmatpush.msra.mxu0 %v722
    %965 = vmatpush.msra.mxu0 %v714
    %966 = vmatpush.msra.mxu0 %v706
    %967 = vmatpush.msra.mxu0 %v698
    %968 = vmatmul.f32.gmra.mxu0 %v785
    %v969 = vpop.f32.mrf.mxu0
    %v970 = vadd.f32 0.0, %v969
    %971 = vmatmul.f32.gmra.mxu0 %v787
    %v972 = vpop.f32.mrf.mxu0
    %v973 = vadd.f32 0.0, %v972
    %974 = vdwg.mxu0
    %975 = vmatpush.msra.mxu0 0.0
    %976 = vmatpush.msra.mxu0 0.0
    %977 = vmatpush.msra.mxu0 0.0
    %978 = vmatpush.msra.mxu0 0.0
    %979 = vmatpush.msra.mxu0 0.0
    %980 = vmatpush.msra.mxu0 0.0
    %981 = vmatpush.msra.mxu0 0.0
    %982 = vmatpush.msra.mxu0 0.0
    %983 = vmatpush.msra.mxu0 0.0
    %984 = vmatpush.msra.mxu0 %v812
    %985 = vmatpush.msra.mxu0 %v739
    %986 = vmatpush.msra.mxu0 %v731
    %987 = vmatpush.msra.mxu0 %v723
    %988 = vmatpush.msra.mxu0 %v715
    %989 = vmatpush.msra.mxu0 %v707
    %990 = vmatpush.msra.mxu0 %v699
    %991 = vmatmul.f32.gmra.mxu0 %v785
    %v992 = vpop.f32.mrf.mxu0
    %v993 = vadd.f32 0.0, %v992
    %994 = vmatmul.f32.gmra.mxu0 %v787
    %v995 = vpop.f32.mrf.mxu0
    %v996 = vadd.f32 0.0, %v995
    %997 = vdwg.mxu0
    %vm998 = vcmask 162816
    %v1000 = vsel %vm998, %v83, 0
    %v1003 = vsel %vm998, %v84, 0
    %vm1005 = vcmask 1043456
    %v1007 = vsel %vm1005, %v684, 0
    %v1010 = vsel %vm1005, %v685, 0
    %v1013 = vsel %vm1005, %v686, 0
    %v1016 = vsel %vm1005, %v687, 0
    %v1019 = vsel %vm1005, %v688, 0
    %v1022 = vsel %vm1005, %v689, 0
    %v1025 = vsel %vm1005, %v690, 0
    %v1028 = vsel %vm1005, %v691, 0
    %1030 = vmatpush.msra.mxu0 0.0
    %1031 = vmatpush.msra.mxu0 0.0
    %1032 = vmatpush.msra.mxu0 0.0
    %1033 = vmatpush.msra.mxu0 0.0
    %1034 = vmatpush.msra.mxu0 0.0
    %1035 = vmatpush.msra.mxu0 0.0
    %1036 = vmatpush.msra.mxu0 0.0
    %1037 = vmatpush.msra.mxu0 0.0
    %1038 = vmatpush.msra.mxu0 0.0
    %1039 = vmatpush.msra.mxu0 0.0
    %1040 = vmatpush.msra.mxu0 0.0
    %1041 = vmatpush.msra.mxu0 0.0
    %1042 = vmatpush.msra.mxu0 0.0
    %1043 = vmatpush.msra.mxu0 %v1007
    %1044 = vmatpush.msra.mxu0 %v676
    %1045 = vmatpush.msra.mxu0 %v668
    %1046 = vmatmul.f32.gmra.mxu0 %v1000
    %v1047 = vpop.f32.mrf.mxu0
    %v1048 = vadd.f32 %v832, %v1047
    %1049 = vmatmul.f32.gmra.mxu0 %v1003
    %v1050 = vpop.f32.mrf.mxu0
    %v1051 = vadd.f32 %v835, %v1050
    %1052 = vdwg.mxu0
    %1053 = vmatpush.msra.mxu0 0.0
    %1054 = vmatpush.msra.mxu0 0.0
    %1055 = vmatpush.msra.mxu0 0.0
    %1056 = vmatpush.msra.mxu0 0.0
    %1057 = vmatpush.msra.mxu0 0.0
    %1058 = vmatpush.msra.mxu0 0.0
    %1059 = vmatpush.msra.mxu0 0.0
    %1060 = vmatpush.msra.mxu0 0.0
    %1061 = vmatpush.msra.mxu0 0.0
    %1062 = vmatpush.msra.mxu0 0.0
    %1063 = vmatpush.msra.mxu0 0.0
    %1064 = vmatpush.msra.mxu0 0.0
    %1065 = vmatpush.msra.mxu0 0.0
    %1066 = vmatpush.msra.mxu0 %v1010
    %1067 = vmatpush.msra.mxu0 %v677
    %1068 = vmatpush.msra.mxu0 %v669
    %1069 = vmatmul.f32.gmra.mxu0 %v1000
    %v1070 = vpop.f32.mrf.mxu0
    %v1071 = vadd.f32 %v855, %v1070
    %1072 = vmatmul.f32.gmra.mxu0 %v1003
    %v1073 = vpop.f32.mrf.mxu0
    %v1074 = vadd.f32 %v858, %v1073
    %1075 = vdwg.mxu0
    %1076 = vmatpush.msra.mxu0 0.0
    %1077 = vmatpush.msra.mxu0 0.0
    %1078 = vmatpush.msra.mxu0 0.0
    %1079 = vmatpush.msra.mxu0 0.0
    %1080 = vmatpush.msra.mxu0 0.0
    %1081 = vmatpush.msra.mxu0 0.0
    %1082 = vmatpush.msra.mxu0 0.0
    %1083 = vmatpush.msra.mxu0 0.0
    %1084 = vmatpush.msra.mxu0 0.0
    %1085 = vmatpush.msra.mxu0 0.0
    %1086 = vmatpush.msra.mxu0 0.0
    %1087 = vmatpush.msra.mxu0 0.0
    %1088 = vmatpush.msra.mxu0 0.0
    %1089 = vmatpush.msra.mxu0 %v1013
    %1090 = vmatpush.msra.mxu0 %v678
    %1091 = vmatpush.msra.mxu0 %v670
    %1092 = vmatmul.f32.gmra.mxu0 %v1000
    %v1093 = vpop.f32.mrf.mxu0
    %v1094 = vadd.f32 %v878, %v1093
    %1095 = vmatmul.f32.gmra.mxu0 %v1003
    %v1096 = vpop.f32.mrf.mxu0
    %v1097 = vadd.f32 %v881, %v1096
    %1098 = vdwg.mxu0
    %1099 = vmatpush.msra.mxu0 0.0
    %1100 = vmatpush.msra.mxu0 0.0
    %1101 = vmatpush.msra.mxu0 0.0
    %1102 = vmatpush.msra.mxu0 0.0
    %1103 = vmatpush.msra.mxu0 0.0
    %1104 = vmatpush.msra.mxu0 0.0
    %1105 = vmatpush.msra.mxu0 0.0
    %1106 = vmatpush.msra.mxu0 0.0
    %1107 = vmatpush.msra.mxu0 0.0
    %1108 = vmatpush.msra.mxu0 0.0
    %1109 = vmatpush.msra.mxu0 0.0
    %1110 = vmatpush.msra.mxu0 0.0
    %1111 = vmatpush.msra.mxu0 0.0
    %1112 = vmatpush.msra.mxu0 %v1016
    %1113 = vmatpush.msra.mxu0 %v679
    %1114 = vmatpush.msra.mxu0 %v671
    %1115 = vmatmul.f32.gmra.mxu0 %v1000
    %v1116 = vpop.f32.mrf.mxu0
    %v1117 = vadd.f32 %v901, %v1116
    %1118 = vmatmul.f32.gmra.mxu0 %v1003
    %v1119 = vpop.f32.mrf.mxu0
    %v1120 = vadd.f32 %v904, %v1119
    %1121 = vdwg.mxu0
    %1122 = vmatpush.msra.mxu0 0.0
    %1123 = vmatpush.msra.mxu0 0.0
    %1124 = vmatpush.msra.mxu0 0.0
    %1125 = vmatpush.msra.mxu0 0.0
    %1126 = vmatpush.msra.mxu0 0.0
    %1127 = vmatpush.msra.mxu0 0.0
    %1128 = vmatpush.msra.mxu0 0.0
    %1129 = vmatpush.msra.mxu0 0.0
    %1130 = vmatpush.msra.mxu0 0.0
    %1131 = vmatpush.msra.mxu0 0.0
    %1132 = vmatpush.msra.mxu0 0.0
    %1133 = vmatpush.msra.mxu0 0.0
    %1134 = vmatpush.msra.mxu0 0.0
    %1135 = vmatpush.msra.mxu0 %v1019
    %1136 = vmatpush.msra.mxu0 %v680
    %1137 = vmatpush.msra.mxu0 %v672
    %1138 = vmatmul.f32.gmra.mxu0 %v1000
    %v1139 = vpop.f32.mrf.mxu0
    %v1140 = vadd.f32 %v924, %v1139
    %1141 = vmatmul.f32.gmra.mxu0 %v1003
    %v1142 = vpop.f32.mrf.mxu0
    %v1143 = vadd.f32 %v927, %v1142
    %1144 = vdwg.mxu0
    %1145 = vmatpush.msra.mxu0 0.0
    %1146 = vmatpush.msra.mxu0 0.0
    %1147 = vmatpush.msra.mxu0 0.0
    %1148 = vmatpush.msra.mxu0 0.0
    %1149 = vmatpush.msra.mxu0 0.0
    %1150 = vmatpush.msra.mxu0 0.0
    %1151 = vmatpush.msra.mxu0 0.0
    %1152 = vmatpush.msra.mxu0 0.0
    %1153 = vmatpush.msra.mxu0 0.0
    %1154 = vmatpush.msra.mxu0 0.0
    %1155 = vmatpush.msra.mxu0 0.0
    %1156 = vmatpush.msra.mxu0 0.0
    %1157 = vmatpush.msra.mxu0 0.0
    %1158 = vmatpush.msra.mxu0 %v1022
    %1159 = vmatpush.msra.mxu0 %v681
    %1160 = vmatpush.msra.mxu0 %v673
    %1161 = vmatmul.f32.gmra.mxu0 %v1000
    %v1162 = vpop.f32.mrf.mxu0
    %v1163 = vadd.f32 %v947, %v1162
    %1164 = vmatmul.f32.gmra.mxu0 %v1003
    %v1165 = vpop.f32.mrf.mxu0
    %v1166 = vadd.f32 %v950, %v1165
    %1167 = vdwg.mxu0
    %1168 = vmatpush.msra.mxu0 0.0
    %1169 = vmatpush.msra.mxu0 0.0
    %1170 = vmatpush.msra.mxu0 0.0
    %1171 = vmatpush.msra.mxu0 0.0
    %1172 = vmatpush.msra.mxu0 0.0
    %1173 = vmatpush.msra.mxu0 0.0
    %1174 = vmatpush.msra.mxu0 0.0
    %1175 = vmatpush.msra.mxu0 0.0
    %1176 = vmatpush.msra.mxu0 0.0
    %1177 = vmatpush.msra.mxu0 0.0
    %1178 = vmatpush.msra.mxu0 0.0
    %1179 = vmatpush.msra.mxu0 0.0
    %1180 = vmatpush.msra.mxu0 0.0
    %1181 = vmatpush.msra.mxu0 %v1025
    %1182 = vmatpush.msra.mxu0 %v682
    %1183 = vmatpush.msra.mxu0 %v674
    %1184 = vmatmul.f32.gmra.mxu0 %v1000
    %v1185 = vpop.f32.mrf.mxu0
    %v1186 = vadd.f32 %v970, %v1185
    %1187 = vmatmul.f32.gmra.mxu0 %v1003
    %v1188 = vpop.f32.mrf.mxu0
    %v1189 = vadd.f32 %v973, %v1188
    %1190 = vdwg.mxu0
    %1191 = vmatpush.msra.mxu0 0.0
    %1192 = vmatpush.msra.mxu0 0.0
    %1193 = vmatpush.msra.mxu0 0.0
    %1194 = vmatpush.msra.mxu0 0.0
    %1195 = vmatpush.msra.mxu0 0.0
    %1196 = vmatpush.msra.mxu0 0.0
    %1197 = vmatpush.msra.mxu0 0.0
    %1198 = vmatpush.msra.mxu0 0.0
    %1199 = vmatpush.msra.mxu0 0.0
    %1200 = vmatpush.msra.mxu0 0.0
    %1201 = vmatpush.msra.mxu0 0.0
    %1202 = vmatpush.msra.mxu0 0.0
    %1203 = vmatpush.msra.mxu0 0.0
    %1204 = vmatpush.msra.mxu0 %v1028
    %1205 = vmatpush.msra.mxu0 %v683
    %1206 = vmatpush.msra.mxu0 %v675
    %1207 = vmatmul.f32.gmra.mxu0 %v1000
    %v1208 = vpop.f32.mrf.mxu0
    %v1209 = vadd.f32 %v993, %v1208
    %1210 = vmatmul.f32.gmra.mxu0 %v1003
    %v1211 = vpop.f32.mrf.mxu0
    %v1212 = vadd.f32 %v996, %v1211
    %1213 = vdwg.mxu0
    %v1214 = vld [vmem:[%s6] sm:$0xff]
    %v1216 = vperm.slane %v1214, 0
    %v1217 = vperm.slane %v1214, 1
    %v1218 = vperm.slane %v1214, 2
    %v1219 = vperm.slane %v1214, 3
    %v1220 = vperm.slane %v1214, 4
    %v1221 = vperm.slane %v1214, 5
    %v1222 = vperm.slane %v1214, 6
    %v1223 = vperm.slane %v1214, 7
    %v1232 = vadd.f32 %v1048, %v1216
    %v1233 = vadd.f32 %v1071, %v1217
    %v1234 = vadd.f32 %v1094, %v1218
    %v1235 = vadd.f32 %v1117, %v1219
    %v1236 = vadd.f32 %v1140, %v1220
    %v1237 = vadd.f32 %v1163, %v1221
    %v1238 = vadd.f32 %v1186, %v1222
    %v1239 = vadd.f32 %v1209, %v1223
    %v1240 = vadd.f32 %v1051, %v1216
    %v1241 = vadd.f32 %v1074, %v1217
    %v1242 = vadd.f32 %v1097, %v1218
    %v1243 = vadd.f32 %v1120, %v1219
    %v1244 = vadd.f32 %v1143, %v1220
    %v1245 = vadd.f32 %v1166, %v1221
    %v1246 = vadd.f32 %v1189, %v1222
    %v1247 = vadd.f32 %v1212, %v1223
    %v1248 = vlaneseq
    %v1249 = vshrl.u32 %v1248, 7
    %vm1250 = vcmp.lt.s32.totalorder %v1249, 2
    %v1251 = vsel %vm1250, 1, 0
    %v1252 = vcvt.s32.f32 %v1251
    %v1253 = vsub.f32 1.0, %v1252
    %v1258 = vrot.slane %v1244, 4
    %v1259 = vrot.slane %v1245, 4
    %v1260 = vrot.slane %v1246, 4
    %v1261 = vrot.slane %v1247, 4
    %v1266 = vsel %vm789, %v1232, %v1258
    %v1267 = vsel %vm789, %v1233, %v1259
    %v1268 = vsel %vm789, %v1234, %v1260
    %v1269 = vsel %vm789, %v1235, %v1261
    %v1270 = vmul.f32 %v1252, 0.0
    %v1271 = vmul.f32 %v1253, 0.0
    %v1272 = vld [vmem:[%s7] sm:$0xff]
    %v1273 = vld [vmem:[%s7 + $0x8] sm:$0xff]
    %v1274 = vld [vmem:[%s7 + $0x10] sm:$0xff]
    %v1275 = vld [vmem:[%s7 + $0x18] sm:$0xff]
    %v1276 = vld [vmem:[%s7 + $0x20] sm:$0xff]
    %v1277 = vld [vmem:[%s7 + $0x28] sm:$0xff]
    %v1278 = vld [vmem:[%s7 + $0x30] sm:$0xff]
    %v1279 = vld [vmem:[%s7 + $0x38] sm:$0xff]
    %v1280 = vld [vmem:[%s7 + $0x40] sm:$0xff]
    %v1281 = vld [vmem:[%s7 + $0x48] sm:$0xff]
    %v1282 = vld [vmem:[%s7 + $0x50] sm:$0xff]
    %v1283 = vld [vmem:[%s7 + $0x58] sm:$0xff]
    %v1284 = vld [vmem:[%s7 + $0x60] sm:$0xff]
    %v1285 = vld [vmem:[%s7 + $0x68] sm:$0xff]
    %v1286 = vld [vmem:[%s7 + $0x70] sm:$0xff]
    %v1287 = vld [vmem:[%s7 + $0x78] sm:$0xff]
    %v1288 = vld [vmem:[%s7 + $0x80] sm:$0xff]
    %v1289 = vld [vmem:[%s7 + $0x88] sm:$0xff]
    %v1290 = vld [vmem:[%s7 + $0x90] sm:$0xff]
    %v1291 = vld [vmem:[%s7 + $0x98] sm:$0xff]
    %v1292 = vld [vmem:[%s7 + $0xa0] sm:$0xff]
    %v1293 = vld [vmem:[%s7 + $0xa8] sm:$0xff]
    %v1294 = vld [vmem:[%s7 + $0xb0] sm:$0xff]
    %v1295 = vld [vmem:[%s7 + $0xb8] sm:$0xff]
    %v1296 = vld [vmem:[%s7 + $0xc0] sm:$0xff]
    %v1297 = vld [vmem:[%s7 + $0xc8] sm:$0xff]
    %v1298 = vld [vmem:[%s7 + $0xd0] sm:$0xff]
    %v1299 = vld [vmem:[%s7 + $0xd8] sm:$0xff]
    %v1300 = vld [vmem:[%s7 + $0xe0] sm:$0xff]
    %v1301 = vld [vmem:[%s7 + $0xe8] sm:$0xff]
    %v1302 = vld [vmem:[%s7 + $0xf0] sm:$0xff]
    %v1303 = vld [vmem:[%s7 + $0xf8] sm:$0xff]
    %v1304 = vld [vmem:[%s7 + $0x100] sm:$0xff]
    %v1305 = vld [vmem:[%s7 + $0x108] sm:$0xff]
    %v1306 = vld [vmem:[%s7 + $0x110] sm:$0xff]
    %v1307 = vld [vmem:[%s7 + $0x118] sm:$0xff]
    %v1308 = vld [vmem:[%s7 + $0x120] sm:$0xff]
    %v1309 = vld [vmem:[%s7 + $0x128] sm:$0xff]
    %v1310 = vld [vmem:[%s7 + $0x130] sm:$0xff]
    %v1311 = vld [vmem:[%s7 + $0x138] sm:$0xff]
    %v1312 = vld [vmem:[%s7 + $0x140] sm:$0xff]
    %v1313 = vld [vmem:[%s7 + $0x148] sm:$0xff]
    %v1314 = vld [vmem:[%s7 + $0x150] sm:$0xff]
    %v1315 = vld [vmem:[%s7 + $0x158] sm:$0xff]
    %v1316 = vld [vmem:[%s7 + $0x160] sm:$0xff]
    %v1317 = vld [vmem:[%s7 + $0x168] sm:$0xff]
    %v1318 = vld [vmem:[%s7 + $0x170] sm:$0xff]
    %v1319 = vld [vmem:[%s7 + $0x178] sm:$0xff]
    %v1320 = vld [vmem:[%s7 + $0x180] sm:$0xff]
    %v1321 = vld [vmem:[%s7 + $0x188] sm:$0xff]
    %v1322 = vld [vmem:[%s7 + $0x190] sm:$0xff]
    %v1323 = vld [vmem:[%s7 + $0x198] sm:$0xff]
    %v1324 = vld [vmem:[%s7 + $0x1a0] sm:$0xff]
    %v1325 = vld [vmem:[%s7 + $0x1a8] sm:$0xff]
    %v1326 = vld [vmem:[%s7 + $0x1b0] sm:$0xff]
    %v1327 = vld [vmem:[%s7 + $0x1b8] sm:$0xff]
    %v1328 = vld [vmem:[%s7 + $0x1c0] sm:$0xff]
    %v1329 = vld [vmem:[%s7 + $0x1c8] sm:$0xff]
    %v1330 = vld [vmem:[%s7 + $0x1d0] sm:$0xff]
    %v1331 = vld [vmem:[%s7 + $0x1d8] sm:$0xff]
    %v1332 = vld [vmem:[%s7 + $0x1e0] sm:$0xff]
    %v1333 = vld [vmem:[%s7 + $0x1e8] sm:$0xff]
    %v1334 = vld [vmem:[%s7 + $0x1f0] sm:$0xff]
    %v1335 = vld [vmem:[%s7 + $0x1f8] sm:$0xff]
    %v1336 = vld [vmem:[%s7 + $0x200] sm:$0xff]
    %v1337 = vld [vmem:[%s7 + $0x208] sm:$0xff]
    %v1338 = vld [vmem:[%s7 + $0x210] sm:$0xff]
    %v1339 = vld [vmem:[%s7 + $0x218] sm:$0xff]
    %v1340 = vld [vmem:[%s7 + $0x220] sm:$0xff]
    %v1341 = vld [vmem:[%s7 + $0x228] sm:$0xff]
    %v1342 = vld [vmem:[%s7 + $0x230] sm:$0xff]
    %v1343 = vld [vmem:[%s7 + $0x238] sm:$0xff]
    %v1344 = vld [vmem:[%s7 + $0x240] sm:$0xff]
    %v1345 = vld [vmem:[%s7 + $0x248] sm:$0xff]
    %v1346 = vld [vmem:[%s7 + $0x250] sm:$0xff]
    %v1347 = vld [vmem:[%s7 + $0x258] sm:$0xff]
    %v1348 = vld [vmem:[%s7 + $0x260] sm:$0xff]
    %v1349 = vld [vmem:[%s7 + $0x268] sm:$0xff]
    %v1350 = vld [vmem:[%s7 + $0x270] sm:$0xff]
    %v1351 = vld [vmem:[%s7 + $0x278] sm:$0xff]
    %v1352 = vld [vmem:[%s7 + $0x280] sm:$0xff]
    %v1353 = vld [vmem:[%s7 + $0x288] sm:$0xff]
    %v1354 = vld [vmem:[%s7 + $0x290] sm:$0xff]
    %v1355 = vld [vmem:[%s7 + $0x298] sm:$0xff]
    %v1356 = vld [vmem:[%s7 + $0x2a0] sm:$0xff]
    %v1357 = vld [vmem:[%s7 + $0x2a8] sm:$0xff]
    %v1358 = vld [vmem:[%s7 + $0x2b0] sm:$0xff]
    %v1359 = vld [vmem:[%s7 + $0x2b8] sm:$0xff]
    %v1360 = vld [vmem:[%s7 + $0x2c0] sm:$0xff]
    %v1361 = vld [vmem:[%s7 + $0x2c8] sm:$0xff]
    %v1362 = vld [vmem:[%s7 + $0x2d0] sm:$0xff]
    %v1363 = vld [vmem:[%s7 + $0x2d8] sm:$0xff]
    %v1364 = vld [vmem:[%s7 + $0x2e0] sm:$0xff]
    %v1365 = vld [vmem:[%s7 + $0x2e8] sm:$0xff]
    %v1366 = vld [vmem:[%s7 + $0x2f0] sm:$0xff]
    %v1367 = vld [vmem:[%s7 + $0x2f8] sm:$0xff]
    %v1368 = vld [vmem:[%s7 + $0x300] sm:$0xff]
    %v1369 = vld [vmem:[%s7 + $0x308] sm:$0xff]
    %v1370 = vld [vmem:[%s7 + $0x310] sm:$0xff]
    %v1371 = vld [vmem:[%s7 + $0x318] sm:$0xff]
    %v1372 = vld [vmem:[%s7 + $0x320] sm:$0xff]
    %v1373 = vld [vmem:[%s7 + $0x328] sm:$0xff]
    %v1374 = vld [vmem:[%s7 + $0x330] sm:$0xff]
    %v1375 = vld [vmem:[%s7 + $0x338] sm:$0xff]
    %v1376 = vld [vmem:[%s7 + $0x340] sm:$0xff]
    %v1377 = vld [vmem:[%s7 + $0x348] sm:$0xff]
    %v1378 = vld [vmem:[%s7 + $0x350] sm:$0xff]
    %v1379 = vld [vmem:[%s7 + $0x358] sm:$0xff]
    %v1380 = vld [vmem:[%s7 + $0x360] sm:$0xff]
    %v1381 = vld [vmem:[%s7 + $0x368] sm:$0xff]
    %v1382 = vld [vmem:[%s7 + $0x370] sm:$0xff]
    %v1383 = vld [vmem:[%s7 + $0x378] sm:$0xff]
    %v1384 = vld [vmem:[%s7 + $0x380] sm:$0xff]
    %v1385 = vld [vmem:[%s7 + $0x388] sm:$0xff]
    %v1386 = vld [vmem:[%s7 + $0x390] sm:$0xff]
    %v1387 = vld [vmem:[%s7 + $0x398] sm:$0xff]
    %v1388 = vld [vmem:[%s7 + $0x3a0] sm:$0xff]
    %v1389 = vld [vmem:[%s7 + $0x3a8] sm:$0xff]
    %v1390 = vld [vmem:[%s7 + $0x3b0] sm:$0xff]
    %v1391 = vld [vmem:[%s7 + $0x3b8] sm:$0xff]
    %v1392 = vld [vmem:[%s7 + $0x3c0] sm:$0xff]
    %v1393 = vld [vmem:[%s7 + $0x3c8] sm:$0xff]
    %v1394 = vld [vmem:[%s7 + $0x3d0] sm:$0xff]
    %v1395 = vld [vmem:[%s7 + $0x3d8] sm:$0xff]
    %v1396 = vld [vmem:[%s7 + $0x3e0] sm:$0xff]
    %v1397 = vld [vmem:[%s7 + $0x3e8] sm:$0xff]
    %v1398 = vld [vmem:[%s7 + $0x3f0] sm:$0xff]
    %v1399 = vld [vmem:[%s7 + $0x3f8] sm:$0xff]
    %1400 = vmatpush.msra.mxu0 %v1332
    %1401 = vmatpush.msra.mxu0 %v1328
    %1402 = vmatpush.msra.mxu0 %v1324
    %1403 = vmatpush.msra.mxu0 %v1320
    %1404 = vmatpush.msra.mxu0 %v1316
    %1405 = vmatpush.msra.mxu0 %v1312
    %1406 = vmatpush.msra.mxu0 %v1308
    %1407 = vmatpush.msra.mxu0 %v1304
    %1408 = vmatpush.msra.mxu0 %v1300
    %1409 = vmatpush.msra.mxu0 %v1296
    %1410 = vmatpush.msra.mxu0 %v1292
    %1411 = vmatpush.msra.mxu0 %v1288
    %1412 = vmatpush.msra.mxu0 %v1284
    %1413 = vmatpush.msra.mxu0 %v1280
    %1414 = vmatpush.msra.mxu0 %v1276
    %1415 = vmatpush.msra.mxu0 %v1272
    %1416 = vmatmul.f32.gmra.mxu0 %v1270
    %v1417 = vpop.f32.mrf.mxu0
    %v1418 = vadd.f32 0.0, %v1417
    %1419 = vdwg.mxu0
    %1420 = vmatpush.msra.mxu0 %v1396
    %1421 = vmatpush.msra.mxu0 %v1392
    %1422 = vmatpush.msra.mxu0 %v1388
    %1423 = vmatpush.msra.mxu0 %v1384
    %1424 = vmatpush.msra.mxu0 %v1380
    %1425 = vmatpush.msra.mxu0 %v1376
    %1426 = vmatpush.msra.mxu0 %v1372
    %1427 = vmatpush.msra.mxu0 %v1368
    %1428 = vmatpush.msra.mxu0 %v1364
    %1429 = vmatpush.msra.mxu0 %v1360
    %1430 = vmatpush.msra.mxu0 %v1356
    %1431 = vmatpush.msra.mxu0 %v1352
    %1432 = vmatpush.msra.mxu0 %v1348
    %1433 = vmatpush.msra.mxu0 %v1344
    %1434 = vmatpush.msra.mxu0 %v1340
    %1435 = vmatpush.msra.mxu0 %v1336
    %1436 = vmatmul.f32.gmra.mxu0 %v1271
    %v1437 = vpop.f32.mrf.mxu0
    %v1438 = vadd.f32 %v1418, %v1437
    %1439 = vdwg.mxu0
    %1440 = vmatpush.msra.mxu0 %v1333
    %1441 = vmatpush.msra.mxu0 %v1329
    %1442 = vmatpush.msra.mxu0 %v1325
    %1443 = vmatpush.msra.mxu0 %v1321
    %1444 = vmatpush.msra.mxu0 %v1317
    %1445 = vmatpush.msra.mxu0 %v1313
    %1446 = vmatpush.msra.mxu0 %v1309
    %1447 = vmatpush.msra.mxu0 %v1305
    %1448 = vmatpush.msra.mxu0 %v1301
    %1449 = vmatpush.msra.mxu0 %v1297
    %1450 = vmatpush.msra.mxu0 %v1293
    %1451 = vmatpush.msra.mxu0 %v1289
    %1452 = vmatpush.msra.mxu0 %v1285
    %1453 = vmatpush.msra.mxu0 %v1281
    %1454 = vmatpush.msra.mxu0 %v1277
    %1455 = vmatpush.msra.mxu0 %v1273
    %1456 = vmatmul.f32.gmra.mxu0 %v1270
    %v1457 = vpop.f32.mrf.mxu0
    %v1458 = vadd.f32 0.0, %v1457
    %1459 = vdwg.mxu0
    %1460 = vmatpush.msra.mxu0 %v1397
    %1461 = vmatpush.msra.mxu0 %v1393
    %1462 = vmatpush.msra.mxu0 %v1389
    %1463 = vmatpush.msra.mxu0 %v1385
    %1464 = vmatpush.msra.mxu0 %v1381
    %1465 = vmatpush.msra.mxu0 %v1377
    %1466 = vmatpush.msra.mxu0 %v1373
    %1467 = vmatpush.msra.mxu0 %v1369
    %1468 = vmatpush.msra.mxu0 %v1365
    %1469 = vmatpush.msra.mxu0 %v1361
    %1470 = vmatpush.msra.mxu0 %v1357
    %1471 = vmatpush.msra.mxu0 %v1353
    %1472 = vmatpush.msra.mxu0 %v1349
    %1473 = vmatpush.msra.mxu0 %v1345
    %1474 = vmatpush.msra.mxu0 %v1341
    %1475 = vmatpush.msra.mxu0 %v1337
    %1476 = vmatmul.f32.gmra.mxu0 %v1271
    %v1477 = vpop.f32.mrf.mxu0
    %v1478 = vadd.f32 %v1458, %v1477
    %1479 = vdwg.mxu0
    %1480 = vmatpush.msra.mxu0 %v1334
    %1481 = vmatpush.msra.mxu0 %v1330
    %1482 = vmatpush.msra.mxu0 %v1326
    %1483 = vmatpush.msra.mxu0 %v1322
    %1484 = vmatpush.msra.mxu0 %v1318
    %1485 = vmatpush.msra.mxu0 %v1314
    %1486 = vmatpush.msra.mxu0 %v1310
    %1487 = vmatpush.msra.mxu0 %v1306
    %1488 = vmatpush.msra.mxu0 %v1302
    %1489 = vmatpush.msra.mxu0 %v1298
    %1490 = vmatpush.msra.mxu0 %v1294
    %1491 = vmatpush.msra.mxu0 %v1290
    %1492 = vmatpush.msra.mxu0 %v1286
    %1493 = vmatpush.msra.mxu0 %v1282
    %1494 = vmatpush.msra.mxu0 %v1278
    %1495 = vmatpush.msra.mxu0 %v1274
    %1496 = vmatmul.f32.gmra.mxu0 %v1270
    %v1497 = vpop.f32.mrf.mxu0
    %v1498 = vadd.f32 0.0, %v1497
    %1499 = vdwg.mxu0
    %1500 = vmatpush.msra.mxu0 %v1398
    %1501 = vmatpush.msra.mxu0 %v1394
    %1502 = vmatpush.msra.mxu0 %v1390
    %1503 = vmatpush.msra.mxu0 %v1386
    %1504 = vmatpush.msra.mxu0 %v1382
    %1505 = vmatpush.msra.mxu0 %v1378
    %1506 = vmatpush.msra.mxu0 %v1374
    %1507 = vmatpush.msra.mxu0 %v1370
    %1508 = vmatpush.msra.mxu0 %v1366
    %1509 = vmatpush.msra.mxu0 %v1362
    %1510 = vmatpush.msra.mxu0 %v1358
    %1511 = vmatpush.msra.mxu0 %v1354
    %1512 = vmatpush.msra.mxu0 %v1350
    %1513 = vmatpush.msra.mxu0 %v1346
    %1514 = vmatpush.msra.mxu0 %v1342
    %1515 = vmatpush.msra.mxu0 %v1338
    %1516 = vmatmul.f32.gmra.mxu0 %v1271
    %v1517 = vpop.f32.mrf.mxu0
    %v1518 = vadd.f32 %v1498, %v1517
    %1519 = vdwg.mxu0
    %1520 = vmatpush.msra.mxu0 %v1335
    %1521 = vmatpush.msra.mxu0 %v1331
    %1522 = vmatpush.msra.mxu0 %v1327
    %1523 = vmatpush.msra.mxu0 %v1323
    %1524 = vmatpush.msra.mxu0 %v1319
    %1525 = vmatpush.msra.mxu0 %v1315
    %1526 = vmatpush.msra.mxu0 %v1311
    %1527 = vmatpush.msra.mxu0 %v1307
    %1528 = vmatpush.msra.mxu0 %v1303
    %1529 = vmatpush.msra.mxu0 %v1299
    %1530 = vmatpush.msra.mxu0 %v1295
    %1531 = vmatpush.msra.mxu0 %v1291
    %1532 = vmatpush.msra.mxu0 %v1287
    %1533 = vmatpush.msra.mxu0 %v1283
    %1534 = vmatpush.msra.mxu0 %v1279
    %1535 = vmatpush.msra.mxu0 %v1275
    %1536 = vmatmul.f32.gmra.mxu0 %v1270
    %v1537 = vpop.f32.mrf.mxu0
    %v1538 = vadd.f32 0.0, %v1537
    %1539 = vdwg.mxu0
    %1540 = vmatpush.msra.mxu0 %v1399
    %1541 = vmatpush.msra.mxu0 %v1395
    %1542 = vmatpush.msra.mxu0 %v1391
    %1543 = vmatpush.msra.mxu0 %v1387
    %1544 = vmatpush.msra.mxu0 %v1383
    %1545 = vmatpush.msra.mxu0 %v1379
    %1546 = vmatpush.msra.mxu0 %v1375
    %1547 = vmatpush.msra.mxu0 %v1371
    %1548 = vmatpush.msra.mxu0 %v1367
    %1549 = vmatpush.msra.mxu0 %v1363
    %1550 = vmatpush.msra.mxu0 %v1359
    %1551 = vmatpush.msra.mxu0 %v1355
    %1552 = vmatpush.msra.mxu0 %v1351
    %1553 = vmatpush.msra.mxu0 %v1347
    %1554 = vmatpush.msra.mxu0 %v1343
    %1555 = vmatpush.msra.mxu0 %v1339
    %1556 = vmatmul.f32.gmra.mxu0 %v1271
    %v1557 = vpop.f32.mrf.mxu0
    %v1558 = vadd.f32 %v1538, %v1557
    %1559 = vdwg.mxu0
    %v1560 = vadd.f32 %v1266, %v1438
    %v1561 = vadd.f32 %v1267, %v1478
    %v1562 = vadd.f32 %v1268, %v1518
    %v1563 = vadd.f32 %v1269, %v1558
    %v1564 = vxor.u32 %v1560, 2147483648
    %v1565 = vmul.f32 %v1564, 1.442695
    %v1566 = vpow.pop %v1565
    %v1567 = vadd.f32 %v1566, 1.0
    %v1568 = vrcp.pop %v1567
    %v1569 = vmul.f32 %v1567, %v1568
    %v1570 = vsub.f32 1.0, %v1569
    %v1571 = vmul.f32 %v1568, %v1570
    %v1572 = vadd.f32 %v1568, %v1571
    %vm1573 = vweird.f32 %v1567
    %vm1574 = vweird.f32 %v1568
    %vm1575 = vmor %vm1573, %vm1574
    %v1576 = vsel %vm1575, %v1568, %v1572
    %v1577 = vand.u32 2147483647, %v1567
    %vm1578 = vcmp.eq.f32.partialorder %v1577, 8.507059e+37
    %v1579 = vand.u32 %v1567, 2147483648
    %v1580 = vor.u32 1.1754944e-38, %v1579
    %v1581 = vsel %vm1578, %v1580, %v1576
    %v1582 = vmul.f32 1.0, %v1581
    %v1583 = vxor.u32 %v1561, 2147483648
    %v1584 = vmul.f32 %v1583, 1.442695
    %v1585 = vpow.pop %v1584
    %v1586 = vadd.f32 %v1585, 1.0
    %v1587 = vrcp.pop %v1586
    %v1588 = vmul.f32 %v1586, %v1587
    %v1589 = vsub.f32 1.0, %v1588
    %v1590 = vmul.f32 %v1587, %v1589
    %v1591 = vadd.f32 %v1587, %v1590
    %vm1592 = vweird.f32 %v1586
    %vm1593 = vweird.f32 %v1587
    %vm1594 = vmor %vm1592, %vm1593
    %v1595 = vsel %vm1594, %v1587, %v1591
    %v1596 = vand.u32 2147483647, %v1586
    %vm1597 = vcmp.eq.f32.partialorder %v1596, 8.507059e+37
    %v1598 = vand.u32 %v1586, 2147483648
    %v1599 = vor.u32 1.1754944e-38, %v1598
    %v1600 = vsel %vm1597, %v1599, %v1595
    %v1601 = vmul.f32 1.0, %v1600
    %v1602 = vtanh.pop %v1562
    %v1603 = vxor.u32 %v1563, 2147483648
    %v1604 = vmul.f32 %v1603, 1.442695
    %v1605 = vpow.pop %v1604
    %v1606 = vadd.f32 %v1605, 1.0
    %v1607 = vrcp.pop %v1606
    %v1608 = vmul.f32 %v1606, %v1607
    %v1609 = vsub.f32 1.0, %v1608
    %v1610 = vmul.f32 %v1607, %v1609
    %v1611 = vadd.f32 %v1607, %v1610
    %vm1612 = vweird.f32 %v1606
    %vm1613 = vweird.f32 %v1607
    %vm1614 = vmor %vm1612, %vm1613
    %v1615 = vsel %vm1614, %v1607, %v1611
    %v1616 = vand.u32 2147483647, %v1606
    %vm1617 = vcmp.eq.f32.partialorder %v1616, 8.507059e+37
    %v1618 = vand.u32 %v1606, 2147483648
    %v1619 = vor.u32 1.1754944e-38, %v1618
    %v1620 = vsel %vm1617, %v1619, %v1615
    %v1621 = vmul.f32 1.0, %v1620
    %v1622 = vmul.f32 %v1601, 0.0
    %v1623 = vmul.f32 %v1582, %v1602
    %v1624 = vadd.f32 %v1622, %v1623
    %v1625 = vtanh.pop %v1624
    %v1626 = vmul.f32 %v1621, %v1625
    %v1631 = vrot.slane %v1232, 2
    %v1632 = vrot.slane %v1233, 2
    %v1633 = vrot.slane %v1234, 2
    %v1634 = vrot.slane %v1235, 2
    %v1639 = vrot.slane %v1244, 2
    %v1640 = vrot.slane %v1245, 2
    %v1641 = vrot.slane %v1246, 2
    %v1642 = vrot.slane %v1247, 2
    %v1647 = vsel %vm789, %v1631, %v1639
    %v1648 = vsel %vm789, %v1632, %v1640
    %v1649 = vsel %vm789, %v1633, %v1641
    %v1650 = vsel %vm789, %v1634, %v1642
    %v1651 = vmul.f32 %v1626, %v1252
    %v1652 = vmul.f32 %v1626, %v1253
    %1653 = vmatpush.msra.mxu0 %v1332
    %1654 = vmatpush.msra.mxu0 %v1328
    %1655 = vmatpush.msra.mxu0 %v1324
    %1656 = vmatpush.msra.mxu0 %v1320
    %1657 = vmatpush.msra.mxu0 %v1316
    %1658 = vmatpush.msra.mxu0 %v1312
    %1659 = vmatpush.msra.mxu0 %v1308
    %1660 = vmatpush.msra.mxu0 %v1304
    %1661 = vmatpush.msra.mxu0 %v1300
    %1662 = vmatpush.msra.mxu0 %v1296
    %1663 = vmatpush.msra.mxu0 %v1292
    %1664 = vmatpush.msra.mxu0 %v1288
    %1665 = vmatpush.msra.mxu0 %v1284
    %1666 = vmatpush.msra.mxu0 %v1280
    %1667 = vmatpush.msra.mxu0 %v1276
    %1668 = vmatpush.msra.mxu0 %v1272
    %1669 = vmatmul.f32.gmra.mxu0 %v1651
    %v1670 = vpop.f32.mrf.mxu0
    %v1671 = vadd.f32 0.0, %v1670
    %1672 = vdwg.mxu0
    %1673 = vmatpush.msra.mxu0 %v1396
    %1674 = vmatpush.msra.mxu0 %v1392
    %1675 = vmatpush.msra.mxu0 %v1388
    %1676 = vmatpush.msra.mxu0 %v1384
    %1677 = vmatpush.msra.mxu0 %v1380
    %1678 = vmatpush.msra.mxu0 %v1376
    %1679 = vmatpush.msra.mxu0 %v1372
    %1680 = vmatpush.msra.mxu0 %v1368
    %1681 = vmatpush.msra.mxu0 %v1364
    %1682 = vmatpush.msra.mxu0 %v1360
    %1683 = vmatpush.msra.mxu0 %v1356
    %1684 = vmatpush.msra.mxu0 %v1352
    %1685 = vmatpush.msra.mxu0 %v1348
    %1686 = vmatpush.msra.mxu0 %v1344
    %1687 = vmatpush.msra.mxu0 %v1340
    %1688 = vmatpush.msra.mxu0 %v1336
    %1689 = vmatmul.f32.gmra.mxu0 %v1652
    %v1690 = vpop.f32.mrf.mxu0
    %v1691 = vadd.f32 %v1671, %v1690
    %1692 = vdwg.mxu0
    %1693 = vmatpush.msra.mxu0 %v1333
    %1694 = vmatpush.msra.mxu0 %v1329
    %1695 = vmatpush.msra.mxu0 %v1325
    %1696 = vmatpush.msra.mxu0 %v1321
    %1697 = vmatpush.msra.mxu0 %v1317
    %1698 = vmatpush.msra.mxu0 %v1313
    %1699 = vmatpush.msra.mxu0 %v1309
    %1700 = vmatpush.msra.mxu0 %v1305
    %1701 = vmatpush.msra.mxu0 %v1301
    %1702 = vmatpush.msra.mxu0 %v1297
    %1703 = vmatpush.msra.mxu0 %v1293
    %1704 = vmatpush.msra.mxu0 %v1289
    %1705 = vmatpush.msra.mxu0 %v1285
    %1706 = vmatpush.msra.mxu0 %v1281
    %1707 = vmatpush.msra.mxu0 %v1277
    %1708 = vmatpush.msra.mxu0 %v1273
    %1709 = vmatmul.f32.gmra.mxu0 %v1651
    %v1710 = vpop.f32.mrf.mxu0
    %v1711 = vadd.f32 0.0, %v1710
    %1712 = vdwg.mxu0
    %1713 = vmatpush.msra.mxu0 %v1397
    %1714 = vmatpush.msra.mxu0 %v1393
    %1715 = vmatpush.msra.mxu0 %v1389
    %1716 = vmatpush.msra.mxu0 %v1385
    %1717 = vmatpush.msra.mxu0 %v1381
    %1718 = vmatpush.msra.mxu0 %v1377
    %1719 = vmatpush.msra.mxu0 %v1373
    %1720 = vmatpush.msra.mxu0 %v1369
    %1721 = vmatpush.msra.mxu0 %v1365
    %1722 = vmatpush.msra.mxu0 %v1361
    %1723 = vmatpush.msra.mxu0 %v1357
    %1724 = vmatpush.msra.mxu0 %v1353
    %1725 = vmatpush.msra.mxu0 %v1349
    %1726 = vmatpush.msra.mxu0 %v1345
    %1727 = vmatpush.msra.mxu0 %v1341
    %1728 = vmatpush.msra.mxu0 %v1337
    %1729 = vmatmul.f32.gmra.mxu0 %v1652
    %v1730 = vpop.f32.mrf.mxu0
    %v1731 = vadd.f32 %v1711, %v1730
    %1732 = vdwg.mxu0
    %1733 = vmatpush.msra.mxu0 %v1334
    %1734 = vmatpush.msra.mxu0 %v1330
    %1735 = vmatpush.msra.mxu0 %v1326
    %1736 = vmatpush.msra.mxu0 %v1322
    %1737 = vmatpush.msra.mxu0 %v1318
    %1738 = vmatpush.msra.mxu0 %v1314
    %1739 = vmatpush.msra.mxu0 %v1310
    %1740 = vmatpush.msra.mxu0 %v1306
    %1741 = vmatpush.msra.mxu0 %v1302
    %1742 = vmatpush.msra.mxu0 %v1298
    %1743 = vmatpush.msra.mxu0 %v1294
    %1744 = vmatpush.msra.mxu0 %v1290
    %1745 = vmatpush.msra.mxu0 %v1286
    %1746 = vmatpush.msra.mxu0 %v1282
    %1747 = vmatpush.msra.mxu0 %v1278
    %1748 = vmatpush.msra.mxu0 %v1274
    %1749 = vmatmul.f32.gmra.mxu0 %v1651
    %v1750 = vpop.f32.mrf.mxu0
    %v1751 = vadd.f32 0.0, %v1750
    %1752 = vdwg.mxu0
    %1753 = vmatpush.msra.mxu0 %v1398
    %1754 = vmatpush.msra.mxu0 %v1394
    %1755 = vmatpush.msra.mxu0 %v1390
    %1756 = vmatpush.msra.mxu0 %v1386
    %1757 = vmatpush.msra.mxu0 %v1382
    %1758 = vmatpush.msra.mxu0 %v1378
    %1759 = vmatpush.msra.mxu0 %v1374
    %1760 = vmatpush.msra.mxu0 %v1370
    %1761 = vmatpush.msra.mxu0 %v1366
    %1762 = vmatpush.msra.mxu0 %v1362
    %1763 = vmatpush.msra.mxu0 %v1358
    %1764 = vmatpush.msra.mxu0 %v1354
    %1765 = vmatpush.msra.mxu0 %v1350
    %1766 = vmatpush.msra.mxu0 %v1346
    %1767 = vmatpush.msra.mxu0 %v1342
    %1768 = vmatpush.msra.mxu0 %v1338
    %1769 = vmatmul.f32.gmra.mxu0 %v1652
    %v1770 = vpop.f32.mrf.mxu0
    %v1771 = vadd.f32 %v1751, %v1770
    %1772 = vdwg.mxu0
    %1773 = vmatpush.msra.mxu0 %v1335
    %1774 = vmatpush.msra.mxu0 %v1331
    %1775 = vmatpush.msra.mxu0 %v1327
    %1776 = vmatpush.msra.mxu0 %v1323
    %1777 = vmatpush.msra.mxu0 %v1319
    %1778 = vmatpush.msra.mxu0 %v1315
    %1779 = vmatpush.msra.mxu0 %v1311
    %1780 = vmatpush.msra.mxu0 %v1307
    %1781 = vmatpush.msra.mxu0 %v1303
    %1782 = vmatpush.msra.mxu0 %v1299
    %1783 = vmatpush.msra.mxu0 %v1295
    %1784 = vmatpush.msra.mxu0 %v1291
    %1785 = vmatpush.msra.mxu0 %v1287
    %1786 = vmatpush.msra.mxu0 %v1283
    %1787 = vmatpush.msra.mxu0 %v1279
    %1788 = vmatpush.msra.mxu0 %v1275
    %1789 = vmatmul.f32.gmra.mxu0 %v1651
    %v1790 = vpop.f32.mrf.mxu0
    %v1791 = vadd.f32 0.0, %v1790
    %1792 = vdwg.mxu0
    %1793 = vmatpush.msra.mxu0 %v1399
    %1794 = vmatpush.msra.mxu0 %v1395
    %1795 = vmatpush.msra.mxu0 %v1391
    %1796 = vmatpush.msra.mxu0 %v1387
    %1797 = vmatpush.msra.mxu0 %v1383
    %1798 = vmatpush.msra.mxu0 %v1379
    %1799 = vmatpush.msra.mxu0 %v1375
    %1800 = vmatpush.msra.mxu0 %v1371
    %1801 = vmatpush.msra.mxu0 %v1367
    %1802 = vmatpush.msra.mxu0 %v1363
    %1803 = vmatpush.msra.mxu0 %v1359
    %1804 = vmatpush.msra.mxu0 %v1355
    %1805 = vmatpush.msra.mxu0 %v1351
    %1806 = vmatpush.msra.mxu0 %v1347
    %1807 = vmatpush.msra.mxu0 %v1343
    %1808 = vmatpush.msra.mxu0 %v1339
    %1809 = vmatmul.f32.gmra.mxu0 %v1652
    %v1810 = vpop.f32.mrf.mxu0
    %v1811 = vadd.f32 %v1791, %v1810
    %1812 = vdwg.mxu0
    %v1813 = vadd.f32 %v1647, %v1691
    %v1814 = vadd.f32 %v1648, %v1731
    %v1815 = vadd.f32 %v1649, %v1771
    %v1816 = vadd.f32 %v1650, %v1811
    %v1817 = vxor.u32 %v1813, 2147483648
    %v1818 = vmul.f32 %v1817, 1.442695
    %v1819 = vpow.pop %v1818
    %v1820 = vadd.f32 %v1819, 1.0
    %v1821 = vrcp.pop %v1820
    %v1822 = vmul.f32 %v1820, %v1821
    %v1823 = vsub.f32 1.0, %v1822
    %v1824 = vmul.f32 %v1821, %v1823
    %v1825 = vadd.f32 %v1821, %v1824
    %vm1826 = vweird.f32 %v1820
    %vm1827 = vweird.f32 %v1821
    %vm1828 = vmor %vm1826, %vm1827
    %v1829 = vsel %vm1828, %v1821, %v1825
    %v1830 = vand.u32 2147483647, %v1820
    %vm1831 = vcmp.eq.f32.partialorder %v1830, 8.507059e+37
    %v1832 = vand.u32 %v1820, 2147483648
    %v1833 = vor.u32 1.1754944e-38, %v1832
    %v1834 = vsel %vm1831, %v1833, %v1829
    %v1835 = vmul.f32 1.0, %v1834
    %v1836 = vxor.u32 %v1814, 2147483648
    %v1837 = vmul.f32 %v1836, 1.442695
    %v1838 = vpow.pop %v1837
    %v1839 = vadd.f32 %v1838, 1.0
    %v1840 = vrcp.pop %v1839
    %v1841 = vmul.f32 %v1839, %v1840
    %v1842 = vsub.f32 1.0, %v1841
    %v1843 = vmul.f32 %v1840, %v1842
    %v1844 = vadd.f32 %v1840, %v1843
    %vm1845 = vweird.f32 %v1839
    %vm1846 = vweird.f32 %v1840
    %vm1847 = vmor %vm1845, %vm1846
    %v1848 = vsel %vm1847, %v1840, %v1844
    %v1849 = vand.u32 2147483647, %v1839
    %vm1850 = vcmp.eq.f32.partialorder %v1849, 8.507059e+37
    %v1851 = vand.u32 %v1839, 2147483648
    %v1852 = vor.u32 1.1754944e-38, %v1851
    %v1853 = vsel %vm1850, %v1852, %v1848
    %v1854 = vmul.f32 1.0, %v1853
    %v1855 = vtanh.pop %v1815
    %v1856 = vxor.u32 %v1816, 2147483648
    %v1857 = vmul.f32 %v1856, 1.442695
    %v1858 = vpow.pop %v1857
    %v1859 = vadd.f32 %v1858, 1.0
    %v1860 = vrcp.pop %v1859
    %v1861 = vmul.f32 %v1859, %v1860
    %v1862 = vsub.f32 1.0, %v1861
    %v1863 = vmul.f32 %v1860, %v1862
    %v1864 = vadd.f32 %v1860, %v1863
    %vm1865 = vweird.f32 %v1859
    %vm1866 = vweird.f32 %v1860
    %vm1867 = vmor %vm1865, %vm1866
    %v1868 = vsel %vm1867, %v1860, %v1864
    %v1869 = vand.u32 2147483647, %v1859
    %vm1870 = vcmp.eq.f32.partialorder %v1869, 8.507059e+37
    %v1871 = vand.u32 %v1859, 2147483648
    %v1872 = vor.u32 1.1754944e-38, %v1871
    %v1873 = vsel %vm1870, %v1872, %v1868
    %v1874 = vmul.f32 1.0, %v1873
    %v1875 = vmul.f32 %v1854, %v1624
    %v1876 = vmul.f32 %v1835, %v1855
    %v1877 = vadd.f32 %v1875, %v1876
    %v1878 = vtanh.pop %v1877
    %v1879 = vmul.f32 %v1874, %v1878
    %v1880 = vrot.slane %v1232, 4
    %v1881 = vrot.slane %v1233, 4
    %v1882 = vrot.slane %v1234, 4
    %v1883 = vrot.slane %v1235, 4
    %v1888 = vsel %vm789, %v1880, %v1244
    %v1889 = vsel %vm789, %v1881, %v1245
    %v1890 = vsel %vm789, %v1882, %v1246
    %v1891 = vsel %vm789, %v1883, %v1247
    %v1892 = vmul.f32 %v1879, %v1252
    %v1893 = vmul.f32 %v1879, %v1253
    %1894 = vmatpush.msra.mxu0 %v1332
    %1895 = vmatpush.msra.mxu0 %v1328
    %1896 = vmatpush.msra.mxu0 %v1324
    %1897 = vmatpush.msra.mxu0 %v1320
    %1898 = vmatpush.msra.mxu0 %v1316
    %1899 = vmatpush.msra.mxu0 %v1312
    %1900 = vmatpush.msra.mxu0 %v1308
    %1901 = vmatpush.msra.mxu0 %v1304
    %1902 = vmatpush.msra.mxu0 %v1300
    %1903 = vmatpush.msra.mxu0 %v1296
    %1904 = vmatpush.msra.mxu0 %v1292
    %1905 = vmatpush.msra.mxu0 %v1288
    %1906 = vmatpush.msra.mxu0 %v1284
    %1907 = vmatpush.msra.mxu0 %v1280
    %1908 = vmatpush.msra.mxu0 %v1276
    %1909 = vmatpush.msra.mxu0 %v1272
    %1910 = vmatmul.f32.gmra.mxu0 %v1892
    %v1911 = vpop.f32.mrf.mxu0
    %v1912 = vadd.f32 0.0, %v1911
    %1913 = vdwg.mxu0
    %1914 = vmatpush.msra.mxu0 %v1396
    %1915 = vmatpush.msra.mxu0 %v1392
    %1916 = vmatpush.msra.mxu0 %v1388
    %1917 = vmatpush.msra.mxu0 %v1384
    %1918 = vmatpush.msra.mxu0 %v1380
    %1919 = vmatpush.msra.mxu0 %v1376
    %1920 = vmatpush.msra.mxu0 %v1372
    %1921 = vmatpush.msra.mxu0 %v1368
    %1922 = vmatpush.msra.mxu0 %v1364
    %1923 = vmatpush.msra.mxu0 %v1360
    %1924 = vmatpush.msra.mxu0 %v1356
    %1925 = vmatpush.msra.mxu0 %v1352
    %1926 = vmatpush.msra.mxu0 %v1348
    %1927 = vmatpush.msra.mxu0 %v1344
    %1928 = vmatpush.msra.mxu0 %v1340
    %1929 = vmatpush.msra.mxu0 %v1336
    %1930 = vmatmul.f32.gmra.mxu0 %v1893
    %v1931 = vpop.f32.mrf.mxu0
    %v1932 = vadd.f32 %v1912, %v1931
    %1933 = vdwg.mxu0
    %1934 = vmatpush.msra.mxu0 %v1333
    %1935 = vmatpush.msra.mxu0 %v1329
    %1936 = vmatpush.msra.mxu0 %v1325
    %1937 = vmatpush.msra.mxu0 %v1321
    %1938 = vmatpush.msra.mxu0 %v1317
    %1939 = vmatpush.msra.mxu0 %v1313
    %1940 = vmatpush.msra.mxu0 %v1309
    %1941 = vmatpush.msra.mxu0 %v1305
    %1942 = vmatpush.msra.mxu0 %v1301
    %1943 = vmatpush.msra.mxu0 %v1297
    %1944 = vmatpush.msra.mxu0 %v1293
    %1945 = vmatpush.msra.mxu0 %v1289
    %1946 = vmatpush.msra.mxu0 %v1285
    %1947 = vmatpush.msra.mxu0 %v1281
    %1948 = vmatpush.msra.mxu0 %v1277
    %1949 = vmatpush.msra.mxu0 %v1273
    %1950 = vmatmul.f32.gmra.mxu0 %v1892
    %v1951 = vpop.f32.mrf.mxu0
    %v1952 = vadd.f32 0.0, %v1951
    %1953 = vdwg.mxu0
    %1954 = vmatpush.msra.mxu0 %v1397
    %1955 = vmatpush.msra.mxu0 %v1393
    %1956 = vmatpush.msra.mxu0 %v1389
    %1957 = vmatpush.msra.mxu0 %v1385
    %1958 = vmatpush.msra.mxu0 %v1381
    %1959 = vmatpush.msra.mxu0 %v1377
    %1960 = vmatpush.msra.mxu0 %v1373
    %1961 = vmatpush.msra.mxu0 %v1369
    %1962 = vmatpush.msra.mxu0 %v1365
    %1963 = vmatpush.msra.mxu0 %v1361
    %1964 = vmatpush.msra.mxu0 %v1357
    %1965 = vmatpush.msra.mxu0 %v1353
    %1966 = vmatpush.msra.mxu0 %v1349
    %1967 = vmatpush.msra.mxu0 %v1345
    %1968 = vmatpush.msra.mxu0 %v1341
    %1969 = vmatpush.msra.mxu0 %v1337
    %1970 = vmatmul.f32.gmra.mxu0 %v1893
    %v1971 = vpop.f32.mrf.mxu0
    %v1972 = vadd.f32 %v1952, %v1971
    %1973 = vdwg.mxu0
    %1974 = vmatpush.msra.mxu0 %v1334
    %1975 = vmatpush.msra.mxu0 %v1330
    %1976 = vmatpush.msra.mxu0 %v1326
    %1977 = vmatpush.msra.mxu0 %v1322
    %1978 = vmatpush.msra.mxu0 %v1318
    %1979 = vmatpush.msra.mxu0 %v1314
    %1980 = vmatpush.msra.mxu0 %v1310
    %1981 = vmatpush.msra.mxu0 %v1306
    %1982 = vmatpush.msra.mxu0 %v1302
    %1983 = vmatpush.msra.mxu0 %v1298
    %1984 = vmatpush.msra.mxu0 %v1294
    %1985 = vmatpush.msra.mxu0 %v1290
    %1986 = vmatpush.msra.mxu0 %v1286
    %1987 = vmatpush.msra.mxu0 %v1282
    %1988 = vmatpush.msra.mxu0 %v1278
    %1989 = vmatpush.msra.mxu0 %v1274
    %1990 = vmatmul.f32.gmra.mxu0 %v1892
    %v1991 = vpop.f32.mrf.mxu0
    %v1992 = vadd.f32 0.0, %v1991
    %1993 = vdwg.mxu0
    %1994 = vmatpush.msra.mxu0 %v1398
    %1995 = vmatpush.msra.mxu0 %v1394
    %1996 = vmatpush.msra.mxu0 %v1390
    %1997 = vmatpush.msra.mxu0 %v1386
    %1998 = vmatpush.msra.mxu0 %v1382
    %1999 = vmatpush.msra.mxu0 %v1378
    %2000 = vmatpush.msra.mxu0 %v1374
    %2001 = vmatpush.msra.mxu0 %v1370
    %2002 = vmatpush.msra.mxu0 %v1366
    %2003 = vmatpush.msra.mxu0 %v1362
    %2004 = vmatpush.msra.mxu0 %v1358
    %2005 = vmatpush.msra.mxu0 %v1354
    %2006 = vmatpush.msra.mxu0 %v1350
    %2007 = vmatpush.msra.mxu0 %v1346
    %2008 = vmatpush.msra.mxu0 %v1342
    %2009 = vmatpush.msra.mxu0 %v1338
    %2010 = vmatmul.f32.gmra.mxu0 %v1893
    %v2011 = vpop.f32.mrf.mxu0
    %v2012 = vadd.f32 %v1992, %v2011
    %2013 = vdwg.mxu0
    %2014 = vmatpush.msra.mxu0 %v1335
    %2015 = vmatpush.msra.mxu0 %v1331
    %2016 = vmatpush.msra.mxu0 %v1327
    %2017 = vmatpush.msra.mxu0 %v1323
    %2018 = vmatpush.msra.mxu0 %v1319
    %2019 = vmatpush.msra.mxu0 %v1315
    %2020 = vmatpush.msra.mxu0 %v1311
    %2021 = vmatpush.msra.mxu0 %v1307
    %2022 = vmatpush.msra.mxu0 %v1303
    %2023 = vmatpush.msra.mxu0 %v1299
    %2024 = vmatpush.msra.mxu0 %v1295
    %2025 = vmatpush.msra.mxu0 %v1291
    %2026 = vmatpush.msra.mxu0 %v1287
    %2027 = vmatpush.msra.mxu0 %v1283
    %2028 = vmatpush.msra.mxu0 %v1279
    %2029 = vmatpush.msra.mxu0 %v1275
    %2030 = vmatmul.f32.gmra.mxu0 %v1892
    %v2031 = vpop.f32.mrf.mxu0
    %v2032 = vadd.f32 0.0, %v2031
    %2033 = vdwg.mxu0
    %2034 = vmatpush.msra.mxu0 %v1399
    %2035 = vmatpush.msra.mxu0 %v1395
    %2036 = vmatpush.msra.mxu0 %v1391
    %2037 = vmatpush.msra.mxu0 %v1387
    %2038 = vmatpush.msra.mxu0 %v1383
    %2039 = vmatpush.msra.mxu0 %v1379
    %2040 = vmatpush.msra.mxu0 %v1375
    %2041 = vmatpush.msra.mxu0 %v1371
    %2042 = vmatpush.msra.mxu0 %v1367
    %2043 = vmatpush.msra.mxu0 %v1363
    %2044 = vmatpush.msra.mxu0 %v1359
    %2045 = vmatpush.msra.mxu0 %v1355
    %2046 = vmatpush.msra.mxu0 %v1351
    %2047 = vmatpush.msra.mxu0 %v1347
    %2048 = vmatpush.msra.mxu0 %v1343
    %2049 = vmatpush.msra.mxu0 %v1339
    %2050 = vmatmul.f32.gmra.mxu0 %v1893
    %v2051 = vpop.f32.mrf.mxu0
    %v2052 = vadd.f32 %v2032, %v2051
    %2053 = vdwg.mxu0
    %v2054 = vadd.f32 %v1888, %v1932
    %v2055 = vadd.f32 %v1889, %v1972
    %v2056 = vadd.f32 %v1890, %v2012
    %v2057 = vadd.f32 %v1891, %v2052
    %v2058 = vxor.u32 %v2054, 2147483648
    %v2059 = vmul.f32 %v2058, 1.442695
    %v2060 = vpow.pop %v2059
    %v2061 = vadd.f32 %v2060, 1.0
    %v2062 = vrcp.pop %v2061
    %v2063 = vmul.f32 %v2061, %v2062
    %v2064 = vsub.f32 1.0, %v2063
    %v2065 = vmul.f32 %v2062, %v2064
    %v2066 = vadd.f32 %v2062, %v2065
    %vm2067 = vweird.f32 %v2061
    %vm2068 = vweird.f32 %v2062
    %vm2069 = vmor %vm2067, %vm2068
    %v2070 = vsel %vm2069, %v2062, %v2066
    %v2071 = vand.u32 2147483647, %v2061
    %vm2072 = vcmp.eq.f32.partialorder %v2071, 8.507059e+37
    %v2073 = vand.u32 %v2061, 2147483648
    %v2074 = vor.u32 1.1754944e-38, %v2073
    %v2075 = vsel %vm2072, %v2074, %v2070
    %v2076 = vmul.f32 1.0, %v2075
    %v2077 = vxor.u32 %v2055, 2147483648
    %v2078 = vmul.f32 %v2077, 1.442695
    %v2079 = vpow.pop %v2078
    %v2080 = vadd.f32 %v2079, 1.0
    %v2081 = vrcp.pop %v2080
    %v2082 = vmul.f32 %v2080, %v2081
    %v2083 = vsub.f32 1.0, %v2082
    %v2084 = vmul.f32 %v2081, %v2083
    %v2085 = vadd.f32 %v2081, %v2084
    %vm2086 = vweird.f32 %v2080
    %vm2087 = vweird.f32 %v2081
    %vm2088 = vmor %vm2086, %vm2087
    %v2089 = vsel %vm2088, %v2081, %v2085
    %v2090 = vand.u32 2147483647, %v2080
    %vm2091 = vcmp.eq.f32.partialorder %v2090, 8.507059e+37
    %v2092 = vand.u32 %v2080, 2147483648
    %v2093 = vor.u32 1.1754944e-38, %v2092
    %v2094 = vsel %vm2091, %v2093, %v2089
    %v2095 = vmul.f32 1.0, %v2094
    %v2096 = vtanh.pop %v2056
    %v2097 = vxor.u32 %v2057, 2147483648
    %v2098 = vmul.f32 %v2097, 1.442695
    %v2099 = vpow.pop %v2098
    %v2100 = vadd.f32 %v2099, 1.0
    %v2101 = vrcp.pop %v2100
    %v2102 = vmul.f32 %v2100, %v2101
    %v2103 = vsub.f32 1.0, %v2102
    %v2104 = vmul.f32 %v2101, %v2103
    %v2105 = vadd.f32 %v2101, %v2104
    %vm2106 = vweird.f32 %v2100
    %vm2107 = vweird.f32 %v2101
    %vm2108 = vmor %vm2106, %vm2107
    %v2109 = vsel %vm2108, %v2101, %v2105
    %v2110 = vand.u32 2147483647, %v2100
    %vm2111 = vcmp.eq.f32.partialorder %v2110, 8.507059e+37
    %v2112 = vand.u32 %v2100, 2147483648
    %v2113 = vor.u32 1.1754944e-38, %v2112
    %v2114 = vsel %vm2111, %v2113, %v2109
    %v2115 = vmul.f32 1.0, %v2114
    %v2116 = vmul.f32 %v2095, %v1877
    %v2117 = vmul.f32 %v2076, %v2096
    %v2118 = vadd.f32 %v2116, %v2117
    %v2119 = vtanh.pop %v2118
    %v2120 = vmul.f32 %v2115, %v2119
    %v2121 = vrot.slane %v1232, 6
    %v2122 = vrot.slane %v1233, 6
    %v2123 = vrot.slane %v1234, 6
    %v2124 = vrot.slane %v1235, 6
    %v2129 = vrot.slane %v1244, 6
    %v2130 = vrot.slane %v1245, 6
    %v2131 = vrot.slane %v1246, 6
    %v2132 = vrot.slane %v1247, 6
    %v2137 = vsel %vm789, %v2121, %v2129
    %v2138 = vsel %vm789, %v2122, %v2130
    %v2139 = vsel %vm789, %v2123, %v2131
    %v2140 = vsel %vm789, %v2124, %v2132
    %v2141 = vmul.f32 %v2120, %v1252
    %v2142 = vmul.f32 %v2120, %v1253
    %2143 = vmatpush.msra.mxu0 %v1332
    %2144 = vmatpush.msra.mxu0 %v1328
    %2145 = vmatpush.msra.mxu0 %v1324
    %2146 = vmatpush.msra.mxu0 %v1320
    %2147 = vmatpush.msra.mxu0 %v1316
    %2148 = vmatpush.msra.mxu0 %v1312
    %2149 = vmatpush.msra.mxu0 %v1308
    %2150 = vmatpush.msra.mxu0 %v1304
    %2151 = vmatpush.msra.mxu0 %v1300
    %2152 = vmatpush.msra.mxu0 %v1296
    %2153 = vmatpush.msra.mxu0 %v1292
    %2154 = vmatpush.msra.mxu0 %v1288
    %2155 = vmatpush.msra.mxu0 %v1284
    %2156 = vmatpush.msra.mxu0 %v1280
    %2157 = vmatpush.msra.mxu0 %v1276
    %2158 = vmatpush.msra.mxu0 %v1272
    %2159 = vmatmul.f32.gmra.mxu0 %v2141
    %v2160 = vpop.f32.mrf.mxu0
    %v2161 = vadd.f32 0.0, %v2160
    %2162 = vdwg.mxu0
    %2163 = vmatpush.msra.mxu0 %v1396
    %2164 = vmatpush.msra.mxu0 %v1392
    %2165 = vmatpush.msra.mxu0 %v1388
    %2166 = vmatpush.msra.mxu0 %v1384
    %2167 = vmatpush.msra.mxu0 %v1380
    %2168 = vmatpush.msra.mxu0 %v1376
    %2169 = vmatpush.msra.mxu0 %v1372
    %2170 = vmatpush.msra.mxu0 %v1368
    %2171 = vmatpush.msra.mxu0 %v1364
    %2172 = vmatpush.msra.mxu0 %v1360
    %2173 = vmatpush.msra.mxu0 %v1356
    %2174 = vmatpush.msra.mxu0 %v1352
    %2175 = vmatpush.msra.mxu0 %v1348
    %2176 = vmatpush.msra.mxu0 %v1344
    %2177 = vmatpush.msra.mxu0 %v1340
    %2178 = vmatpush.msra.mxu0 %v1336
    %2179 = vmatmul.f32.gmra.mxu0 %v2142
    %v2180 = vpop.f32.mrf.mxu0
    %v2181 = vadd.f32 %v2161, %v2180
    %2182 = vdwg.mxu0
    %2183 = vmatpush.msra.mxu0 %v1333
    %2184 = vmatpush.msra.mxu0 %v1329
    %2185 = vmatpush.msra.mxu0 %v1325
    %2186 = vmatpush.msra.mxu0 %v1321
    %2187 = vmatpush.msra.mxu0 %v1317
    %2188 = vmatpush.msra.mxu0 %v1313
    %2189 = vmatpush.msra.mxu0 %v1309
    %2190 = vmatpush.msra.mxu0 %v1305
    %2191 = vmatpush.msra.mxu0 %v1301
    %2192 = vmatpush.msra.mxu0 %v1297
    %2193 = vmatpush.msra.mxu0 %v1293
    %2194 = vmatpush.msra.mxu0 %v1289
    %2195 = vmatpush.msra.mxu0 %v1285
    %2196 = vmatpush.msra.mxu0 %v1281
    %2197 = vmatpush.msra.mxu0 %v1277
    %2198 = vmatpush.msra.mxu0 %v1273
    %2199 = vmatmul.f32.gmra.mxu0 %v2141
    %v2200 = vpop.f32.mrf.mxu0
    %v2201 = vadd.f32 0.0, %v2200
    %2202 = vdwg.mxu0
    %2203 = vmatpush.msra.mxu0 %v1397
    %2204 = vmatpush.msra.mxu0 %v1393
    %2205 = vmatpush.msra.mxu0 %v1389
    %2206 = vmatpush.msra.mxu0 %v1385
    %2207 = vmatpush.msra.mxu0 %v1381
    %2208 = vmatpush.msra.mxu0 %v1377
    %2209 = vmatpush.msra.mxu0 %v1373
    %2210 = vmatpush.msra.mxu0 %v1369
    %2211 = vmatpush.msra.mxu0 %v1365
    %2212 = vmatpush.msra.mxu0 %v1361
    %2213 = vmatpush.msra.mxu0 %v1357
    %2214 = vmatpush.msra.mxu0 %v1353
    %2215 = vmatpush.msra.mxu0 %v1349
    %2216 = vmatpush.msra.mxu0 %v1345
    %2217 = vmatpush.msra.mxu0 %v1341
    %2218 = vmatpush.msra.mxu0 %v1337
    %2219 = vmatmul.f32.gmra.mxu0 %v2142
    %v2220 = vpop.f32.mrf.mxu0
    %v2221 = vadd.f32 %v2201, %v2220
    %2222 = vdwg.mxu0
    %2223 = vmatpush.msra.mxu0 %v1334
    %2224 = vmatpush.msra.mxu0 %v1330
    %2225 = vmatpush.msra.mxu0 %v1326
    %2226 = vmatpush.msra.mxu0 %v1322
    %2227 = vmatpush.msra.mxu0 %v1318
    %2228 = vmatpush.msra.mxu0 %v1314
    %2229 = vmatpush.msra.mxu0 %v1310
    %2230 = vmatpush.msra.mxu0 %v1306
    %2231 = vmatpush.msra.mxu0 %v1302
    %2232 = vmatpush.msra.mxu0 %v1298
    %2233 = vmatpush.msra.mxu0 %v1294
    %2234 = vmatpush.msra.mxu0 %v1290
    %2235 = vmatpush.msra.mxu0 %v1286
    %2236 = vmatpush.msra.mxu0 %v1282
    %2237 = vmatpush.msra.mxu0 %v1278
    %2238 = vmatpush.msra.mxu0 %v1274
    %2239 = vmatmul.f32.gmra.mxu0 %v2141
    %v2240 = vpop.f32.mrf.mxu0
    %v2241 = vadd.f32 0.0, %v2240
    %2242 = vdwg.mxu0
    %2243 = vmatpush.msra.mxu0 %v1398
    %2244 = vmatpush.msra.mxu0 %v1394
    %2245 = vmatpush.msra.mxu0 %v1390
    %2246 = vmatpush.msra.mxu0 %v1386
    %2247 = vmatpush.msra.mxu0 %v1382
    %2248 = vmatpush.msra.mxu0 %v1378
    %2249 = vmatpush.msra.mxu0 %v1374
    %2250 = vmatpush.msra.mxu0 %v1370
    %2251 = vmatpush.msra.mxu0 %v1366
    %2252 = vmatpush.msra.mxu0 %v1362
    %2253 = vmatpush.msra.mxu0 %v1358
    %2254 = vmatpush.msra.mxu0 %v1354
    %2255 = vmatpush.msra.mxu0 %v1350
    %2256 = vmatpush.msra.mxu0 %v1346
    %2257 = vmatpush.msra.mxu0 %v1342
    %2258 = vmatpush.msra.mxu0 %v1338
    %2259 = vmatmul.f32.gmra.mxu0 %v2142
    %v2260 = vpop.f32.mrf.mxu0
    %v2261 = vadd.f32 %v2241, %v2260
    %2262 = vdwg.mxu0
    %2263 = vmatpush.msra.mxu0 %v1335
    %2264 = vmatpush.msra.mxu0 %v1331
    %2265 = vmatpush.msra.mxu0 %v1327
    %2266 = vmatpush.msra.mxu0 %v1323
    %2267 = vmatpush.msra.mxu0 %v1319
    %2268 = vmatpush.msra.mxu0 %v1315
    %2269 = vmatpush.msra.mxu0 %v1311
    %2270 = vmatpush.msra.mxu0 %v1307
    %2271 = vmatpush.msra.mxu0 %v1303
    %2272 = vmatpush.msra.mxu0 %v1299
    %2273 = vmatpush.msra.mxu0 %v1295
    %2274 = vmatpush.msra.mxu0 %v1291
    %2275 = vmatpush.msra.mxu0 %v1287
    %2276 = vmatpush.msra.mxu0 %v1283
    %2277 = vmatpush.msra.mxu0 %v1279
    %2278 = vmatpush.msra.mxu0 %v1275
    %2279 = vmatmul.f32.gmra.mxu0 %v2141
    %v2280 = vpop.f32.mrf.mxu0
    %v2281 = vadd.f32 0.0, %v2280
    %2282 = vdwg.mxu0
    %2283 = vmatpush.msra.mxu0 %v1399
    %2284 = vmatpush.msra.mxu0 %v1395
    %2285 = vmatpush.msra.mxu0 %v1391
    %2286 = vmatpush.msra.mxu0 %v1387
    %2287 = vmatpush.msra.mxu0 %v1383
    %2288 = vmatpush.msra.mxu0 %v1379
    %2289 = vmatpush.msra.mxu0 %v1375
    %2290 = vmatpush.msra.mxu0 %v1371
    %2291 = vmatpush.msra.mxu0 %v1367
    %2292 = vmatpush.msra.mxu0 %v1363
    %2293 = vmatpush.msra.mxu0 %v1359
    %2294 = vmatpush.msra.mxu0 %v1355
    %2295 = vmatpush.msra.mxu0 %v1351
    %2296 = vmatpush.msra.mxu0 %v1347
    %2297 = vmatpush.msra.mxu0 %v1343
    %2298 = vmatpush.msra.mxu0 %v1339
    %2299 = vmatmul.f32.gmra.mxu0 %v2142
    %v2300 = vpop.f32.mrf.mxu0
    %v2301 = vadd.f32 %v2281, %v2300
    %2302 = vdwg.mxu0
    %v2303 = vadd.f32 %v2137, %v2181
    %v2304 = vadd.f32 %v2138, %v2221
    %v2305 = vadd.f32 %v2139, %v2261
    %v2306 = vadd.f32 %v2140, %v2301
    %v2307 = vxor.u32 %v2303, 2147483648
    %v2308 = vmul.f32 %v2307, 1.442695
    %v2309 = vpow.pop %v2308
    %v2310 = vadd.f32 %v2309, 1.0
    %v2311 = vrcp.pop %v2310
    %v2312 = vmul.f32 %v2310, %v2311
    %v2313 = vsub.f32 1.0, %v2312
    %v2314 = vmul.f32 %v2311, %v2313
    %v2315 = vadd.f32 %v2311, %v2314
    %vm2316 = vweird.f32 %v2310
    %vm2317 = vweird.f32 %v2311
    %vm2318 = vmor %vm2316, %vm2317
    %v2319 = vsel %vm2318, %v2311, %v2315
    %v2320 = vand.u32 2147483647, %v2310
    %vm2321 = vcmp.eq.f32.partialorder %v2320, 8.507059e+37
    %v2322 = vand.u32 %v2310, 2147483648
    %v2323 = vor.u32 1.1754944e-38, %v2322
    %v2324 = vsel %vm2321, %v2323, %v2319
    %v2325 = vmul.f32 1.0, %v2324
    %v2326 = vxor.u32 %v2304, 2147483648
    %v2327 = vmul.f32 %v2326, 1.442695
    %v2328 = vpow.pop %v2327
    %v2329 = vadd.f32 %v2328, 1.0
    %v2330 = vrcp.pop %v2329
    %v2331 = vmul.f32 %v2329, %v2330
    %v2332 = vsub.f32 1.0, %v2331
    %v2333 = vmul.f32 %v2330, %v2332
    %v2334 = vadd.f32 %v2330, %v2333
    %vm2335 = vweird.f32 %v2329
    %vm2336 = vweird.f32 %v2330
    %vm2337 = vmor %vm2335, %vm2336
    %v2338 = vsel %vm2337, %v2330, %v2334
    %v2339 = vand.u32 2147483647, %v2329
    %vm2340 = vcmp.eq.f32.partialorder %v2339, 8.507059e+37
    %v2341 = vand.u32 %v2329, 2147483648
    %v2342 = vor.u32 1.1754944e-38, %v2341
    %v2343 = vsel %vm2340, %v2342, %v2338
    %v2344 = vmul.f32 1.0, %v2343
    %v2345 = vtanh.pop %v2305
    %v2346 = vxor.u32 %v2306, 2147483648
    %v2347 = vmul.f32 %v2346, 1.442695
    %v2348 = vpow.pop %v2347
    %v2349 = vadd.f32 %v2348, 1.0
    %v2350 = vrcp.pop %v2349
    %v2351 = vmul.f32 %v2349, %v2350
    %v2352 = vsub.f32 1.0, %v2351
    %v2353 = vmul.f32 %v2350, %v2352
    %v2354 = vadd.f32 %v2350, %v2353
    %vm2355 = vweird.f32 %v2349
    %vm2356 = vweird.f32 %v2350
    %vm2357 = vmor %vm2355, %vm2356
    %v2358 = vsel %vm2357, %v2350, %v2354
    %v2359 = vand.u32 2147483647, %v2349
    %vm2360 = vcmp.eq.f32.partialorder %v2359, 8.507059e+37
    %v2361 = vand.u32 %v2349, 2147483648
    %v2362 = vor.u32 1.1754944e-38, %v2361
    %v2363 = vsel %vm2360, %v2362, %v2358
    %v2364 = vmul.f32 1.0, %v2363
    %v2365 = vmul.f32 %v2344, %v2118
    %v2366 = vmul.f32 %v2325, %v2345
    %v2367 = vadd.f32 %v2365, %v2366
    %v2368 = vtanh.pop %v2367
    %v2369 = vmul.f32 %v2364, %v2368
    %v2374 = vrot.slane %v1236, 4
    %v2375 = vrot.slane %v1237, 4
    %v2376 = vrot.slane %v1238, 4
    %v2377 = vrot.slane %v1239, 4
    %v2382 = vsel %vm789, %v1240, %v2374
    %v2383 = vsel %vm789, %v1241, %v2375
    %v2384 = vsel %vm789, %v1242, %v2376
    %v2385 = vsel %vm789, %v1243, %v2377
    %v2386 = vmul.f32 %v2369, %v1252
    %v2387 = vmul.f32 %v2369, %v1253
    %2388 = vmatpush.msra.mxu0 %v1332
    %2389 = vmatpush.msra.mxu0 %v1328
    %2390 = vmatpush.msra.mxu0 %v1324
    %2391 = vmatpush.msra.mxu0 %v1320
    %2392 = vmatpush.msra.mxu0 %v1316
    %2393 = vmatpush.msra.mxu0 %v1312
    %2394 = vmatpush.msra.mxu0 %v1308
    %2395 = vmatpush.msra.mxu0 %v1304
    %2396 = vmatpush.msra.mxu0 %v1300
    %2397 = vmatpush.msra.mxu0 %v1296
    %2398 = vmatpush.msra.mxu0 %v1292
    %2399 = vmatpush.msra.mxu0 %v1288
    %2400 = vmatpush.msra.mxu0 %v1284
    %2401 = vmatpush.msra.mxu0 %v1280
    %2402 = vmatpush.msra.mxu0 %v1276
    %2403 = vmatpush.msra.mxu0 %v1272
    %2404 = vmatmul.f32.gmra.mxu0 %v2386
    %v2405 = vpop.f32.mrf.mxu0
    %v2406 = vadd.f32 0.0, %v2405
    %2407 = vdwg.mxu0
    %2408 = vmatpush.msra.mxu0 %v1396
    %2409 = vmatpush.msra.mxu0 %v1392
    %2410 = vmatpush.msra.mxu0 %v1388
    %2411 = vmatpush.msra.mxu0 %v1384
    %2412 = vmatpush.msra.mxu0 %v1380
    %2413 = vmatpush.msra.mxu0 %v1376
    %2414 = vmatpush.msra.mxu0 %v1372
    %2415 = vmatpush.msra.mxu0 %v1368
    %2416 = vmatpush.msra.mxu0 %v1364
    %2417 = vmatpush.msra.mxu0 %v1360
    %2418 = vmatpush.msra.mxu0 %v1356
    %2419 = vmatpush.msra.mxu0 %v1352
    %2420 = vmatpush.msra.mxu0 %v1348
    %2421 = vmatpush.msra.mxu0 %v1344
    %2422 = vmatpush.msra.mxu0 %v1340
    %2423 = vmatpush.msra.mxu0 %v1336
    %2424 = vmatmul.f32.gmra.mxu0 %v2387
    %v2425 = vpop.f32.mrf.mxu0
    %v2426 = vadd.f32 %v2406, %v2425
    %2427 = vdwg.mxu0
    %2428 = vmatpush.msra.mxu0 %v1333
    %2429 = vmatpush.msra.mxu0 %v1329
    %2430 = vmatpush.msra.mxu0 %v1325
    %2431 = vmatpush.msra.mxu0 %v1321
    %2432 = vmatpush.msra.mxu0 %v1317
    %2433 = vmatpush.msra.mxu0 %v1313
    %2434 = vmatpush.msra.mxu0 %v1309
    %2435 = vmatpush.msra.mxu0 %v1305
    %2436 = vmatpush.msra.mxu0 %v1301
    %2437 = vmatpush.msra.mxu0 %v1297
    %2438 = vmatpush.msra.mxu0 %v1293
    %2439 = vmatpush.msra.mxu0 %v1289
    %2440 = vmatpush.msra.mxu0 %v1285
    %2441 = vmatpush.msra.mxu0 %v1281
    %2442 = vmatpush.msra.mxu0 %v1277
    %2443 = vmatpush.msra.mxu0 %v1273
    %2444 = vmatmul.f32.gmra.mxu0 %v2386
    %v2445 = vpop.f32.mrf.mxu0
    %v2446 = vadd.f32 0.0, %v2445
    %2447 = vdwg.mxu0
    %2448 = vmatpush.msra.mxu0 %v1397
    %2449 = vmatpush.msra.mxu0 %v1393
    %2450 = vmatpush.msra.mxu0 %v1389
    %2451 = vmatpush.msra.mxu0 %v1385
    %2452 = vmatpush.msra.mxu0 %v1381
    %2453 = vmatpush.msra.mxu0 %v1377
    %2454 = vmatpush.msra.mxu0 %v1373
    %2455 = vmatpush.msra.mxu0 %v1369
    %2456 = vmatpush.msra.mxu0 %v1365
    %2457 = vmatpush.msra.mxu0 %v1361
    %2458 = vmatpush.msra.mxu0 %v1357
    %2459 = vmatpush.msra.mxu0 %v1353
    %2460 = vmatpush.msra.mxu0 %v1349
    %2461 = vmatpush.msra.mxu0 %v1345
    %2462 = vmatpush.msra.mxu0 %v1341
    %2463 = vmatpush.msra.mxu0 %v1337
    %2464 = vmatmul.f32.gmra.mxu0 %v2387
    %v2465 = vpop.f32.mrf.mxu0
    %v2466 = vadd.f32 %v2446, %v2465
    %2467 = vdwg.mxu0
    %2468 = vmatpush.msra.mxu0 %v1334
    %2469 = vmatpush.msra.mxu0 %v1330
    %2470 = vmatpush.msra.mxu0 %v1326
    %2471 = vmatpush.msra.mxu0 %v1322
    %2472 = vmatpush.msra.mxu0 %v1318
    %2473 = vmatpush.msra.mxu0 %v1314
    %2474 = vmatpush.msra.mxu0 %v1310
    %2475 = vmatpush.msra.mxu0 %v1306
    %2476 = vmatpush.msra.mxu0 %v1302
    %2477 = vmatpush.msra.mxu0 %v1298
    %2478 = vmatpush.msra.mxu0 %v1294
    %2479 = vmatpush.msra.mxu0 %v1290
    %2480 = vmatpush.msra.mxu0 %v1286
    %2481 = vmatpush.msra.mxu0 %v1282
    %2482 = vmatpush.msra.mxu0 %v1278
    %2483 = vmatpush.msra.mxu0 %v1274
    %2484 = vmatmul.f32.gmra.mxu0 %v2386
    %v2485 = vpop.f32.mrf.mxu0
    %v2486 = vadd.f32 0.0, %v2485
    %2487 = vdwg.mxu0
    %2488 = vmatpush.msra.mxu0 %v1398
    %2489 = vmatpush.msra.mxu0 %v1394
    %2490 = vmatpush.msra.mxu0 %v1390
    %2491 = vmatpush.msra.mxu0 %v1386
    %2492 = vmatpush.msra.mxu0 %v1382
    %2493 = vmatpush.msra.mxu0 %v1378
    %2494 = vmatpush.msra.mxu0 %v1374
    %2495 = vmatpush.msra.mxu0 %v1370
    %2496 = vmatpush.msra.mxu0 %v1366
    %2497 = vmatpush.msra.mxu0 %v1362
    %2498 = vmatpush.msra.mxu0 %v1358
    %2499 = vmatpush.msra.mxu0 %v1354
    %2500 = vmatpush.msra.mxu0 %v1350
    %2501 = vmatpush.msra.mxu0 %v1346
    %2502 = vmatpush.msra.mxu0 %v1342
    %2503 = vmatpush.msra.mxu0 %v1338
    %2504 = vmatmul.f32.gmra.mxu0 %v2387
    %v2505 = vpop.f32.mrf.mxu0
    %v2506 = vadd.f32 %v2486, %v2505
    %2507 = vdwg.mxu0
    %2508 = vmatpush.msra.mxu0 %v1335
    %2509 = vmatpush.msra.mxu0 %v1331
    %2510 = vmatpush.msra.mxu0 %v1327
    %2511 = vmatpush.msra.mxu0 %v1323
    %2512 = vmatpush.msra.mxu0 %v1319
    %2513 = vmatpush.msra.mxu0 %v1315
    %2514 = vmatpush.msra.mxu0 %v1311
    %2515 = vmatpush.msra.mxu0 %v1307
    %2516 = vmatpush.msra.mxu0 %v1303
    %2517 = vmatpush.msra.mxu0 %v1299
    %2518 = vmatpush.msra.mxu0 %v1295
    %2519 = vmatpush.msra.mxu0 %v1291
    %2520 = vmatpush.msra.mxu0 %v1287
    %2521 = vmatpush.msra.mxu0 %v1283
    %2522 = vmatpush.msra.mxu0 %v1279
    %2523 = vmatpush.msra.mxu0 %v1275
    %2524 = vmatmul.f32.gmra.mxu0 %v2386
    %v2525 = vpop.f32.mrf.mxu0
    %v2526 = vadd.f32 0.0, %v2525
    %2527 = vdwg.mxu0
    %2528 = vmatpush.msra.mxu0 %v1399
    %2529 = vmatpush.msra.mxu0 %v1395
    %2530 = vmatpush.msra.mxu0 %v1391
    %2531 = vmatpush.msra.mxu0 %v1387
    %2532 = vmatpush.msra.mxu0 %v1383
    %2533 = vmatpush.msra.mxu0 %v1379
    %2534 = vmatpush.msra.mxu0 %v1375
    %2535 = vmatpush.msra.mxu0 %v1371
    %2536 = vmatpush.msra.mxu0 %v1367
    %2537 = vmatpush.msra.mxu0 %v1363
    %2538 = vmatpush.msra.mxu0 %v1359
    %2539 = vmatpush.msra.mxu0 %v1355
    %2540 = vmatpush.msra.mxu0 %v1351
    %2541 = vmatpush.msra.mxu0 %v1347
    %2542 = vmatpush.msra.mxu0 %v1343
    %2543 = vmatpush.msra.mxu0 %v1339
    %2544 = vmatmul.f32.gmra.mxu0 %v2387
    %v2545 = vpop.f32.mrf.mxu0
    %v2546 = vadd.f32 %v2526, %v2545
    %2547 = vdwg.mxu0
    %v2548 = vadd.f32 %v2382, %v2426
    %v2549 = vadd.f32 %v2383, %v2466
    %v2550 = vadd.f32 %v2384, %v2506
    %v2551 = vadd.f32 %v2385, %v2546
    %v2552 = vxor.u32 %v2548, 2147483648
    %v2553 = vmul.f32 %v2552, 1.442695
    %v2554 = vpow.pop %v2553
    %v2555 = vadd.f32 %v2554, 1.0
    %v2556 = vrcp.pop %v2555
    %v2557 = vmul.f32 %v2555, %v2556
    %v2558 = vsub.f32 1.0, %v2557
    %v2559 = vmul.f32 %v2556, %v2558
    %v2560 = vadd.f32 %v2556, %v2559
    %vm2561 = vweird.f32 %v2555
    %vm2562 = vweird.f32 %v2556
    %vm2563 = vmor %vm2561, %vm2562
    %v2564 = vsel %vm2563, %v2556, %v2560
    %v2565 = vand.u32 2147483647, %v2555
    %vm2566 = vcmp.eq.f32.partialorder %v2565, 8.507059e+37
    %v2567 = vand.u32 %v2555, 2147483648
    %v2568 = vor.u32 1.1754944e-38, %v2567
    %v2569 = vsel %vm2566, %v2568, %v2564
    %v2570 = vmul.f32 1.0, %v2569
    %v2571 = vxor.u32 %v2549, 2147483648
    %v2572 = vmul.f32 %v2571, 1.442695
    %v2573 = vpow.pop %v2572
    %v2574 = vadd.f32 %v2573, 1.0
    %v2575 = vrcp.pop %v2574
    %v2576 = vmul.f32 %v2574, %v2575
    %v2577 = vsub.f32 1.0, %v2576
    %v2578 = vmul.f32 %v2575, %v2577
    %v2579 = vadd.f32 %v2575, %v2578
    %vm2580 = vweird.f32 %v2574
    %vm2581 = vweird.f32 %v2575
    %vm2582 = vmor %vm2580, %vm2581
    %v2583 = vsel %vm2582, %v2575, %v2579
    %v2584 = vand.u32 2147483647, %v2574
    %vm2585 = vcmp.eq.f32.partialorder %v2584, 8.507059e+37
    %v2586 = vand.u32 %v2574, 2147483648
    %v2587 = vor.u32 1.1754944e-38, %v2586
    %v2588 = vsel %vm2585, %v2587, %v2583
    %v2589 = vmul.f32 1.0, %v2588
    %v2590 = vtanh.pop %v2550
    %v2591 = vxor.u32 %v2551, 2147483648
    %v2592 = vmul.f32 %v2591, 1.442695
    %v2593 = vpow.pop %v2592
    %v2594 = vadd.f32 %v2593, 1.0
    %v2595 = vrcp.pop %v2594
    %v2596 = vmul.f32 %v2594, %v2595
    %v2597 = vsub.f32 1.0, %v2596
    %v2598 = vmul.f32 %v2595, %v2597
    %v2599 = vadd.f32 %v2595, %v2598
    %vm2600 = vweird.f32 %v2594
    %vm2601 = vweird.f32 %v2595
    %vm2602 = vmor %vm2600, %vm2601
    %v2603 = vsel %vm2602, %v2595, %v2599
    %v2604 = vand.u32 2147483647, %v2594
    %vm2605 = vcmp.eq.f32.partialorder %v2604, 8.507059e+37
    %v2606 = vand.u32 %v2594, 2147483648
    %v2607 = vor.u32 1.1754944e-38, %v2606
    %v2608 = vsel %vm2605, %v2607, %v2603
    %v2609 = vmul.f32 1.0, %v2608
    %v2610 = vmul.f32 %v2589, %v2367
    %v2611 = vmul.f32 %v2570, %v2590
    %v2612 = vadd.f32 %v2610, %v2611
    %v2613 = vtanh.pop %v2612
    %v2614 = vmul.f32 %v2609, %v2613
    %v2619 = vrot.slane %v1240, 2
    %v2620 = vrot.slane %v1241, 2
    %v2621 = vrot.slane %v1242, 2
    %v2622 = vrot.slane %v1243, 2
    %v2627 = vrot.slane %v1236, 2
    %v2628 = vrot.slane %v1237, 2
    %v2629 = vrot.slane %v1238, 2
    %v2630 = vrot.slane %v1239, 2
    %v2635 = vsel %vm789, %v2619, %v2627
    %v2636 = vsel %vm789, %v2620, %v2628
    %v2637 = vsel %vm789, %v2621, %v2629
    %v2638 = vsel %vm789, %v2622, %v2630
    %v2639 = vmul.f32 %v2614, %v1252
    %v2640 = vmul.f32 %v2614, %v1253
    %2641 = vmatpush.msra.mxu0 %v1332
    %2642 = vmatpush.msra.mxu0 %v1328
    %2643 = vmatpush.msra.mxu0 %v1324
    %2644 = vmatpush.msra.mxu0 %v1320
    %2645 = vmatpush.msra.mxu0 %v1316
    %2646 = vmatpush.msra.mxu0 %v1312
    %2647 = vmatpush.msra.mxu0 %v1308
    %2648 = vmatpush.msra.mxu0 %v1304
    %2649 = vmatpush.msra.mxu0 %v1300
    %2650 = vmatpush.msra.mxu0 %v1296
    %2651 = vmatpush.msra.mxu0 %v1292
    %2652 = vmatpush.msra.mxu0 %v1288
    %2653 = vmatpush.msra.mxu0 %v1284
    %2654 = vmatpush.msra.mxu0 %v1280
    %2655 = vmatpush.msra.mxu0 %v1276
    %2656 = vmatpush.msra.mxu0 %v1272
    %2657 = vmatmul.f32.gmra.mxu0 %v2639
    %v2658 = vpop.f32.mrf.mxu0
    %v2659 = vadd.f32 0.0, %v2658
    %2660 = vdwg.mxu0
    %2661 = vmatpush.msra.mxu0 %v1396
    %2662 = vmatpush.msra.mxu0 %v1392
    %2663 = vmatpush.msra.mxu0 %v1388
    %2664 = vmatpush.msra.mxu0 %v1384
    %2665 = vmatpush.msra.mxu0 %v1380
    %2666 = vmatpush.msra.mxu0 %v1376
    %2667 = vmatpush.msra.mxu0 %v1372
    %2668 = vmatpush.msra.mxu0 %v1368
    %2669 = vmatpush.msra.mxu0 %v1364
    %2670 = vmatpush.msra.mxu0 %v1360
    %2671 = vmatpush.msra.mxu0 %v1356
    %2672 = vmatpush.msra.mxu0 %v1352
    %2673 = vmatpush.msra.mxu0 %v1348
    %2674 = vmatpush.msra.mxu0 %v1344
    %2675 = vmatpush.msra.mxu0 %v1340
    %2676 = vmatpush.msra.mxu0 %v1336
    %2677 = vmatmul.f32.gmra.mxu0 %v2640
    %v2678 = vpop.f32.mrf.mxu0
    %v2679 = vadd.f32 %v2659, %v2678
    %2680 = vdwg.mxu0
    %2681 = vmatpush.msra.mxu0 %v1333
    %2682 = vmatpush.msra.mxu0 %v1329
    %2683 = vmatpush.msra.mxu0 %v1325
    %2684 = vmatpush.msra.mxu0 %v1321
    %2685 = vmatpush.msra.mxu0 %v1317
    %2686 = vmatpush.msra.mxu0 %v1313
    %2687 = vmatpush.msra.mxu0 %v1309
    %2688 = vmatpush.msra.mxu0 %v1305
    %2689 = vmatpush.msra.mxu0 %v1301
    %2690 = vmatpush.msra.mxu0 %v1297
    %2691 = vmatpush.msra.mxu0 %v1293
    %2692 = vmatpush.msra.mxu0 %v1289
    %2693 = vmatpush.msra.mxu0 %v1285
    %2694 = vmatpush.msra.mxu0 %v1281
    %2695 = vmatpush.msra.mxu0 %v1277
    %2696 = vmatpush.msra.mxu0 %v1273
    %2697 = vmatmul.f32.gmra.mxu0 %v2639
    %v2698 = vpop.f32.mrf.mxu0
    %v2699 = vadd.f32 0.0, %v2698
    %2700 = vdwg.mxu0
    %2701 = vmatpush.msra.mxu0 %v1397
    %2702 = vmatpush.msra.mxu0 %v1393
    %2703 = vmatpush.msra.mxu0 %v1389
    %2704 = vmatpush.msra.mxu0 %v1385
    %2705 = vmatpush.msra.mxu0 %v1381
    %2706 = vmatpush.msra.mxu0 %v1377
    %2707 = vmatpush.msra.mxu0 %v1373
    %2708 = vmatpush.msra.mxu0 %v1369
    %2709 = vmatpush.msra.mxu0 %v1365
    %2710 = vmatpush.msra.mxu0 %v1361
    %2711 = vmatpush.msra.mxu0 %v1357
    %2712 = vmatpush.msra.mxu0 %v1353
    %2713 = vmatpush.msra.mxu0 %v1349
    %2714 = vmatpush.msra.mxu0 %v1345
    %2715 = vmatpush.msra.mxu0 %v1341
    %2716 = vmatpush.msra.mxu0 %v1337
    %2717 = vmatmul.f32.gmra.mxu0 %v2640
    %v2718 = vpop.f32.mrf.mxu0
    %v2719 = vadd.f32 %v2699, %v2718
    %2720 = vdwg.mxu0
    %2721 = vmatpush.msra.mxu0 %v1334
    %2722 = vmatpush.msra.mxu0 %v1330
    %2723 = vmatpush.msra.mxu0 %v1326
    %2724 = vmatpush.msra.mxu0 %v1322
    %2725 = vmatpush.msra.mxu0 %v1318
    %2726 = vmatpush.msra.mxu0 %v1314
    %2727 = vmatpush.msra.mxu0 %v1310
    %2728 = vmatpush.msra.mxu0 %v1306
    %2729 = vmatpush.msra.mxu0 %v1302
    %2730 = vmatpush.msra.mxu0 %v1298
    %2731 = vmatpush.msra.mxu0 %v1294
    %2732 = vmatpush.msra.mxu0 %v1290
    %2733 = vmatpush.msra.mxu0 %v1286
    %2734 = vmatpush.msra.mxu0 %v1282
    %2735 = vmatpush.msra.mxu0 %v1278
    %2736 = vmatpush.msra.mxu0 %v1274
    %2737 = vmatmul.f32.gmra.mxu0 %v2639
    %v2738 = vpop.f32.mrf.mxu0
    %v2739 = vadd.f32 0.0, %v2738
    %2740 = vdwg.mxu0
    %2741 = vmatpush.msra.mxu0 %v1398
    %2742 = vmatpush.msra.mxu0 %v1394
    %2743 = vmatpush.msra.mxu0 %v1390
    %2744 = vmatpush.msra.mxu0 %v1386
    %2745 = vmatpush.msra.mxu0 %v1382
    %2746 = vmatpush.msra.mxu0 %v1378
    %2747 = vmatpush.msra.mxu0 %v1374
    %2748 = vmatpush.msra.mxu0 %v1370
    %2749 = vmatpush.msra.mxu0 %v1366
    %2750 = vmatpush.msra.mxu0 %v1362
    %2751 = vmatpush.msra.mxu0 %v1358
    %2752 = vmatpush.msra.mxu0 %v1354
    %2753 = vmatpush.msra.mxu0 %v1350
    %2754 = vmatpush.msra.mxu0 %v1346
    %2755 = vmatpush.msra.mxu0 %v1342
    %2756 = vmatpush.msra.mxu0 %v1338
    %2757 = vmatmul.f32.gmra.mxu0 %v2640
    %v2758 = vpop.f32.mrf.mxu0
    %v2759 = vadd.f32 %v2739, %v2758
    %2760 = vdwg.mxu0
    %2761 = vmatpush.msra.mxu0 %v1335
    %2762 = vmatpush.msra.mxu0 %v1331
    %2763 = vmatpush.msra.mxu0 %v1327
    %2764 = vmatpush.msra.mxu0 %v1323
    %2765 = vmatpush.msra.mxu0 %v1319
    %2766 = vmatpush.msra.mxu0 %v1315
    %2767 = vmatpush.msra.mxu0 %v1311
    %2768 = vmatpush.msra.mxu0 %v1307
    %2769 = vmatpush.msra.mxu0 %v1303
    %2770 = vmatpush.msra.mxu0 %v1299
    %2771 = vmatpush.msra.mxu0 %v1295
    %2772 = vmatpush.msra.mxu0 %v1291
    %2773 = vmatpush.msra.mxu0 %v1287
    %2774 = vmatpush.msra.mxu0 %v1283
    %2775 = vmatpush.msra.mxu0 %v1279
    %2776 = vmatpush.msra.mxu0 %v1275
    %2777 = vmatmul.f32.gmra.mxu0 %v2639
    %v2778 = vpop.f32.mrf.mxu0
    %v2779 = vadd.f32 0.0, %v2778
    %2780 = vdwg.mxu0
    %2781 = vmatpush.msra.mxu0 %v1399
    %2782 = vmatpush.msra.mxu0 %v1395
    %2783 = vmatpush.msra.mxu0 %v1391
    %2784 = vmatpush.msra.mxu0 %v1387
    %2785 = vmatpush.msra.mxu0 %v1383
    %2786 = vmatpush.msra.mxu0 %v1379
    %2787 = vmatpush.msra.mxu0 %v1375
    %2788 = vmatpush.msra.mxu0 %v1371
    %2789 = vmatpush.msra.mxu0 %v1367
    %2790 = vmatpush.msra.mxu0 %v1363
    %2791 = vmatpush.msra.mxu0 %v1359
    %2792 = vmatpush.msra.mxu0 %v1355
    %2793 = vmatpush.msra.mxu0 %v1351
    %2794 = vmatpush.msra.mxu0 %v1347
    %2795 = vmatpush.msra.mxu0 %v1343
    %2796 = vmatpush.msra.mxu0 %v1339
    %2797 = vmatmul.f32.gmra.mxu0 %v2640
    %v2798 = vpop.f32.mrf.mxu0
    %v2799 = vadd.f32 %v2779, %v2798
    %2800 = vdwg.mxu0
    %v2801 = vadd.f32 %v2635, %v2679
    %v2802 = vadd.f32 %v2636, %v2719
    %v2803 = vadd.f32 %v2637, %v2759
    %v2804 = vadd.f32 %v2638, %v2799
    %v2805 = vxor.u32 %v2801, 2147483648
    %v2806 = vmul.f32 %v2805, 1.442695
    %v2807 = vpow.pop %v2806
    %v2808 = vadd.f32 %v2807, 1.0
    %v2809 = vrcp.pop %v2808
    %v2810 = vmul.f32 %v2808, %v2809
    %v2811 = vsub.f32 1.0, %v2810
    %v2812 = vmul.f32 %v2809, %v2811
    %v2813 = vadd.f32 %v2809, %v2812
    %vm2814 = vweird.f32 %v2808
    %vm2815 = vweird.f32 %v2809
    %vm2816 = vmor %vm2814, %vm2815
    %v2817 = vsel %vm2816, %v2809, %v2813
    %v2818 = vand.u32 2147483647, %v2808
    %vm2819 = vcmp.eq.f32.partialorder %v2818, 8.507059e+37
    %v2820 = vand.u32 %v2808, 2147483648
    %v2821 = vor.u32 1.1754944e-38, %v2820
    %v2822 = vsel %vm2819, %v2821, %v2817
    %v2823 = vmul.f32 1.0, %v2822
    %v2824 = vxor.u32 %v2802, 2147483648
    %v2825 = vmul.f32 %v2824, 1.442695
    %v2826 = vpow.pop %v2825
    %v2827 = vadd.f32 %v2826, 1.0
    %v2828 = vrcp.pop %v2827
    %v2829 = vmul.f32 %v2827, %v2828
    %v2830 = vsub.f32 1.0, %v2829
    %v2831 = vmul.f32 %v2828, %v2830
    %v2832 = vadd.f32 %v2828, %v2831
    %vm2833 = vweird.f32 %v2827
    %vm2834 = vweird.f32 %v2828
    %vm2835 = vmor %vm2833, %vm2834
    %v2836 = vsel %vm2835, %v2828, %v2832
    %v2837 = vand.u32 2147483647, %v2827
    %vm2838 = vcmp.eq.f32.partialorder %v2837, 8.507059e+37
    %v2839 = vand.u32 %v2827, 2147483648
    %v2840 = vor.u32 1.1754944e-38, %v2839
    %v2841 = vsel %vm2838, %v2840, %v2836
    %v2842 = vmul.f32 1.0, %v2841
    %v2843 = vtanh.pop %v2803
    %v2844 = vxor.u32 %v2804, 2147483648
    %v2845 = vmul.f32 %v2844, 1.442695
    %v2846 = vpow.pop %v2845
    %v2847 = vadd.f32 %v2846, 1.0
    %v2848 = vrcp.pop %v2847
    %v2849 = vmul.f32 %v2847, %v2848
    %v2850 = vsub.f32 1.0, %v2849
    %v2851 = vmul.f32 %v2848, %v2850
    %v2852 = vadd.f32 %v2848, %v2851
    %vm2853 = vweird.f32 %v2847
    %vm2854 = vweird.f32 %v2848
    %vm2855 = vmor %vm2853, %vm2854
    %v2856 = vsel %vm2855, %v2848, %v2852
    %v2857 = vand.u32 2147483647, %v2847
    %vm2858 = vcmp.eq.f32.partialorder %v2857, 8.507059e+37
    %v2859 = vand.u32 %v2847, 2147483648
    %v2860 = vor.u32 1.1754944e-38, %v2859
    %v2861 = vsel %vm2858, %v2860, %v2856
    %v2862 = vmul.f32 1.0, %v2861
    %v2863 = vmul.f32 %v2842, %v2612
    %v2864 = vmul.f32 %v2823, %v2843
    %v2865 = vadd.f32 %v2863, %v2864
    %v2866 = vtanh.pop %v2865
    %v2867 = vmul.f32 %v2862, %v2866
    %v2868 = vrot.slane %v1240, 4
    %v2869 = vrot.slane %v1241, 4
    %v2870 = vrot.slane %v1242, 4
    %v2871 = vrot.slane %v1243, 4
    %v2876 = vsel %vm789, %v2868, %v1236
    %v2877 = vsel %vm789, %v2869, %v1237
    %v2878 = vsel %vm789, %v2870, %v1238
    %v2879 = vsel %vm789, %v2871, %v1239
    %v2880 = vmul.f32 %v2867, %v1252
    %v2881 = vmul.f32 %v2867, %v1253
    %2882 = vmatpush.msra.mxu0 %v1332
    %2883 = vmatpush.msra.mxu0 %v1328
    %2884 = vmatpush.msra.mxu0 %v1324
    %2885 = vmatpush.msra.mxu0 %v1320
    %2886 = vmatpush.msra.mxu0 %v1316
    %2887 = vmatpush.msra.mxu0 %v1312
    %2888 = vmatpush.msra.mxu0 %v1308
    %2889 = vmatpush.msra.mxu0 %v1304
    %2890 = vmatpush.msra.mxu0 %v1300
    %2891 = vmatpush.msra.mxu0 %v1296
    %2892 = vmatpush.msra.mxu0 %v1292
    %2893 = vmatpush.msra.mxu0 %v1288
    %2894 = vmatpush.msra.mxu0 %v1284
    %2895 = vmatpush.msra.mxu0 %v1280
    %2896 = vmatpush.msra.mxu0 %v1276
    %2897 = vmatpush.msra.mxu0 %v1272
    %2898 = vmatmul.f32.gmra.mxu0 %v2880
    %v2899 = vpop.f32.mrf.mxu0
    %v2900 = vadd.f32 0.0, %v2899
    %2901 = vdwg.mxu0
    %2902 = vmatpush.msra.mxu0 %v1396
    %2903 = vmatpush.msra.mxu0 %v1392
    %2904 = vmatpush.msra.mxu0 %v1388
    %2905 = vmatpush.msra.mxu0 %v1384
    %2906 = vmatpush.msra.mxu0 %v1380
    %2907 = vmatpush.msra.mxu0 %v1376
    %2908 = vmatpush.msra.mxu0 %v1372
    %2909 = vmatpush.msra.mxu0 %v1368
    %2910 = vmatpush.msra.mxu0 %v1364
    %2911 = vmatpush.msra.mxu0 %v1360
    %2912 = vmatpush.msra.mxu0 %v1356
    %2913 = vmatpush.msra.mxu0 %v1352
    %2914 = vmatpush.msra.mxu0 %v1348
    %2915 = vmatpush.msra.mxu0 %v1344
    %2916 = vmatpush.msra.mxu0 %v1340
    %2917 = vmatpush.msra.mxu0 %v1336
    %2918 = vmatmul.f32.gmra.mxu0 %v2881
    %v2919 = vpop.f32.mrf.mxu0
    %v2920 = vadd.f32 %v2900, %v2919
    %2921 = vdwg.mxu0
    %2922 = vmatpush.msra.mxu0 %v1333
    %2923 = vmatpush.msra.mxu0 %v1329
    %2924 = vmatpush.msra.mxu0 %v1325
    %2925 = vmatpush.msra.mxu0 %v1321
    %2926 = vmatpush.msra.mxu0 %v1317
    %2927 = vmatpush.msra.mxu0 %v1313
    %2928 = vmatpush.msra.mxu0 %v1309
    %2929 = vmatpush.msra.mxu0 %v1305
    %2930 = vmatpush.msra.mxu0 %v1301
    %2931 = vmatpush.msra.mxu0 %v1297
    %2932 = vmatpush.msra.mxu0 %v1293
    %2933 = vmatpush.msra.mxu0 %v1289
    %2934 = vmatpush.msra.mxu0 %v1285
    %2935 = vmatpush.msra.mxu0 %v1281
    %2936 = vmatpush.msra.mxu0 %v1277
    %2937 = vmatpush.msra.mxu0 %v1273
    %2938 = vmatmul.f32.gmra.mxu0 %v2880
    %v2939 = vpop.f32.mrf.mxu0
    %v2940 = vadd.f32 0.0, %v2939
    %2941 = vdwg.mxu0
    %2942 = vmatpush.msra.mxu0 %v1397
    %2943 = vmatpush.msra.mxu0 %v1393
    %2944 = vmatpush.msra.mxu0 %v1389
    %2945 = vmatpush.msra.mxu0 %v1385
    %2946 = vmatpush.msra.mxu0 %v1381
    %2947 = vmatpush.msra.mxu0 %v1377
    %2948 = vmatpush.msra.mxu0 %v1373
    %2949 = vmatpush.msra.mxu0 %v1369
    %2950 = vmatpush.msra.mxu0 %v1365
    %2951 = vmatpush.msra.mxu0 %v1361
    %2952 = vmatpush.msra.mxu0 %v1357
    %2953 = vmatpush.msra.mxu0 %v1353
    %2954 = vmatpush.msra.mxu0 %v1349
    %2955 = vmatpush.msra.mxu0 %v1345
    %2956 = vmatpush.msra.mxu0 %v1341
    %2957 = vmatpush.msra.mxu0 %v1337
    %2958 = vmatmul.f32.gmra.mxu0 %v2881
    %v2959 = vpop.f32.mrf.mxu0
    %v2960 = vadd.f32 %v2940, %v2959
    %2961 = vdwg.mxu0
    %2962 = vmatpush.msra.mxu0 %v1334
    %2963 = vmatpush.msra.mxu0 %v1330
    %2964 = vmatpush.msra.mxu0 %v1326
    %2965 = vmatpush.msra.mxu0 %v1322
    %2966 = vmatpush.msra.mxu0 %v1318
    %2967 = vmatpush.msra.mxu0 %v1314
    %2968 = vmatpush.msra.mxu0 %v1310
    %2969 = vmatpush.msra.mxu0 %v1306
    %2970 = vmatpush.msra.mxu0 %v1302
    %2971 = vmatpush.msra.mxu0 %v1298
    %2972 = vmatpush.msra.mxu0 %v1294
    %2973 = vmatpush.msra.mxu0 %v1290
    %2974 = vmatpush.msra.mxu0 %v1286
    %2975 = vmatpush.msra.mxu0 %v1282
    %2976 = vmatpush.msra.mxu0 %v1278
    %2977 = vmatpush.msra.mxu0 %v1274
    %2978 = vmatmul.f32.gmra.mxu0 %v2880
    %v2979 = vpop.f32.mrf.mxu0
    %v2980 = vadd.f32 0.0, %v2979
    %2981 = vdwg.mxu0
    %2982 = vmatpush.msra.mxu0 %v1398
    %2983 = vmatpush.msra.mxu0 %v1394
    %2984 = vmatpush.msra.mxu0 %v1390
    %2985 = vmatpush.msra.mxu0 %v1386
    %2986 = vmatpush.msra.mxu0 %v1382
    %2987 = vmatpush.msra.mxu0 %v1378
    %2988 = vmatpush.msra.mxu0 %v1374
    %2989 = vmatpush.msra.mxu0 %v1370
    %2990 = vmatpush.msra.mxu0 %v1366
    %2991 = vmatpush.msra.mxu0 %v1362
    %2992 = vmatpush.msra.mxu0 %v1358
    %2993 = vmatpush.msra.mxu0 %v1354
    %2994 = vmatpush.msra.mxu0 %v1350
    %2995 = vmatpush.msra.mxu0 %v1346
    %2996 = vmatpush.msra.mxu0 %v1342
    %2997 = vmatpush.msra.mxu0 %v1338
    %2998 = vmatmul.f32.gmra.mxu0 %v2881
    %v2999 = vpop.f32.mrf.mxu0
    %v3000 = vadd.f32 %v2980, %v2999
    %3001 = vdwg.mxu0
    %3002 = vmatpush.msra.mxu0 %v1335
    %3003 = vmatpush.msra.mxu0 %v1331
    %3004 = vmatpush.msra.mxu0 %v1327
    %3005 = vmatpush.msra.mxu0 %v1323
    %3006 = vmatpush.msra.mxu0 %v1319
    %3007 = vmatpush.msra.mxu0 %v1315
    %3008 = vmatpush.msra.mxu0 %v1311
    %3009 = vmatpush.msra.mxu0 %v1307
    %3010 = vmatpush.msra.mxu0 %v1303
    %3011 = vmatpush.msra.mxu0 %v1299
    %3012 = vmatpush.msra.mxu0 %v1295
    %3013 = vmatpush.msra.mxu0 %v1291
    %3014 = vmatpush.msra.mxu0 %v1287
    %3015 = vmatpush.msra.mxu0 %v1283
    %3016 = vmatpush.msra.mxu0 %v1279
    %3017 = vmatpush.msra.mxu0 %v1275
    %3018 = vmatmul.f32.gmra.mxu0 %v2880
    %v3019 = vpop.f32.mrf.mxu0
    %v3020 = vadd.f32 0.0, %v3019
    %3021 = vdwg.mxu0
    %3022 = vmatpush.msra.mxu0 %v1399
    %3023 = vmatpush.msra.mxu0 %v1395
    %3024 = vmatpush.msra.mxu0 %v1391
    %3025 = vmatpush.msra.mxu0 %v1387
    %3026 = vmatpush.msra.mxu0 %v1383
    %3027 = vmatpush.msra.mxu0 %v1379
    %3028 = vmatpush.msra.mxu0 %v1375
    %3029 = vmatpush.msra.mxu0 %v1371
    %3030 = vmatpush.msra.mxu0 %v1367
    %3031 = vmatpush.msra.mxu0 %v1363
    %3032 = vmatpush.msra.mxu0 %v1359
    %3033 = vmatpush.msra.mxu0 %v1355
    %3034 = vmatpush.msra.mxu0 %v1351
    %3035 = vmatpush.msra.mxu0 %v1347
    %3036 = vmatpush.msra.mxu0 %v1343
    %3037 = vmatpush.msra.mxu0 %v1339
    %3038 = vmatmul.f32.gmra.mxu0 %v2881
    %v3039 = vpop.f32.mrf.mxu0
    %v3040 = vadd.f32 %v3020, %v3039
    %3041 = vdwg.mxu0
    %v3042 = vadd.f32 %v2876, %v2920
    %v3043 = vadd.f32 %v2877, %v2960
    %v3044 = vadd.f32 %v2878, %v3000
    %v3045 = vadd.f32 %v2879, %v3040
    %v3046 = vxor.u32 %v3042, 2147483648
    %v3047 = vmul.f32 %v3046, 1.442695
    %v3048 = vpow.pop %v3047
    %v3049 = vadd.f32 %v3048, 1.0
    %v3050 = vrcp.pop %v3049
    %v3051 = vmul.f32 %v3049, %v3050
    %v3052 = vsub.f32 1.0, %v3051
    %v3053 = vmul.f32 %v3050, %v3052
    %v3054 = vadd.f32 %v3050, %v3053
    %vm3055 = vweird.f32 %v3049
    %vm3056 = vweird.f32 %v3050
    %vm3057 = vmor %vm3055, %vm3056
    %v3058 = vsel %vm3057, %v3050, %v3054
    %v3059 = vand.u32 2147483647, %v3049
    %vm3060 = vcmp.eq.f32.partialorder %v3059, 8.507059e+37
    %v3061 = vand.u32 %v3049, 2147483648
    %v3062 = vor.u32 1.1754944e-38, %v3061
    %v3063 = vsel %vm3060, %v3062, %v3058
    %v3064 = vmul.f32 1.0, %v3063
    %v3065 = vxor.u32 %v3043, 2147483648
    %v3066 = vmul.f32 %v3065, 1.442695
    %v3067 = vpow.pop %v3066
    %v3068 = vadd.f32 %v3067, 1.0
    %v3069 = vrcp.pop %v3068
    %v3070 = vmul.f32 %v3068, %v3069
    %v3071 = vsub.f32 1.0, %v3070
    %v3072 = vmul.f32 %v3069, %v3071
    %v3073 = vadd.f32 %v3069, %v3072
    %vm3074 = vweird.f32 %v3068
    %vm3075 = vweird.f32 %v3069
    %vm3076 = vmor %vm3074, %vm3075
    %v3077 = vsel %vm3076, %v3069, %v3073
    %v3078 = vand.u32 2147483647, %v3068
    %vm3079 = vcmp.eq.f32.partialorder %v3078, 8.507059e+37
    %v3080 = vand.u32 %v3068, 2147483648
    %v3081 = vor.u32 1.1754944e-38, %v3080
    %v3082 = vsel %vm3079, %v3081, %v3077
    %v3083 = vmul.f32 1.0, %v3082
    %v3084 = vtanh.pop %v3044
    %v3085 = vxor.u32 %v3045, 2147483648
    %v3086 = vmul.f32 %v3085, 1.442695
    %v3087 = vpow.pop %v3086
    %v3088 = vadd.f32 %v3087, 1.0
    %v3089 = vrcp.pop %v3088
    %v3090 = vmul.f32 %v3088, %v3089
    %v3091 = vsub.f32 1.0, %v3090
    %v3092 = vmul.f32 %v3089, %v3091
    %v3093 = vadd.f32 %v3089, %v3092
    %vm3094 = vweird.f32 %v3088
    %vm3095 = vweird.f32 %v3089
    %vm3096 = vmor %vm3094, %vm3095
    %v3097 = vsel %vm3096, %v3089, %v3093
    %v3098 = vand.u32 2147483647, %v3088
    %vm3099 = vcmp.eq.f32.partialorder %v3098, 8.507059e+37
    %v3100 = vand.u32 %v3088, 2147483648
    %v3101 = vor.u32 1.1754944e-38, %v3100
    %v3102 = vsel %vm3099, %v3101, %v3097
    %v3103 = vmul.f32 1.0, %v3102
    %v3104 = vmul.f32 %v3083, %v2865
    %v3105 = vmul.f32 %v3064, %v3084
    %v3106 = vadd.f32 %v3104, %v3105
    %v3107 = vtanh.pop %v3106
    %v3108 = vmul.f32 %v3103, %v3107
    %v3109 = vrot.slane %v1240, 6
    %v3110 = vrot.slane %v1241, 6
    %v3111 = vrot.slane %v1242, 6
    %v3112 = vrot.slane %v1243, 6
    %v3117 = vrot.slane %v1236, 6
    %v3118 = vrot.slane %v1237, 6
    %v3119 = vrot.slane %v1238, 6
    %v3120 = vrot.slane %v1239, 6
    %v3125 = vsel %vm789, %v3109, %v3117
    %v3126 = vsel %vm789, %v3110, %v3118
    %v3127 = vsel %vm789, %v3111, %v3119
    %v3128 = vsel %vm789, %v3112, %v3120
    %v3129 = vmul.f32 %v3108, %v1252
    %v3130 = vmul.f32 %v3108, %v1253
    %3131 = vmatpush.msra.mxu0 %v1332
    %3132 = vmatpush.msra.mxu0 %v1328
    %3133 = vmatpush.msra.mxu0 %v1324
    %3134 = vmatpush.msra.mxu0 %v1320
    %3135 = vmatpush.msra.mxu0 %v1316
    %3136 = vmatpush.msra.mxu0 %v1312
    %3137 = vmatpush.msra.mxu0 %v1308
    %3138 = vmatpush.msra.mxu0 %v1304
    %3139 = vmatpush.msra.mxu0 %v1300
    %3140 = vmatpush.msra.mxu0 %v1296
    %3141 = vmatpush.msra.mxu0 %v1292
    %3142 = vmatpush.msra.mxu0 %v1288
    %3143 = vmatpush.msra.mxu0 %v1284
    %3144 = vmatpush.msra.mxu0 %v1280
    %3145 = vmatpush.msra.mxu0 %v1276
    %3146 = vmatpush.msra.mxu0 %v1272
    %3147 = vmatmul.f32.gmra.mxu0 %v3129
    %v3148 = vpop.f32.mrf.mxu0
    %v3149 = vadd.f32 0.0, %v3148
    %3150 = vdwg.mxu0
    %3151 = vmatpush.msra.mxu0 %v1396
    %3152 = vmatpush.msra.mxu0 %v1392
    %3153 = vmatpush.msra.mxu0 %v1388
    %3154 = vmatpush.msra.mxu0 %v1384
    %3155 = vmatpush.msra.mxu0 %v1380
    %3156 = vmatpush.msra.mxu0 %v1376
    %3157 = vmatpush.msra.mxu0 %v1372
    %3158 = vmatpush.msra.mxu0 %v1368
    %3159 = vmatpush.msra.mxu0 %v1364
    %3160 = vmatpush.msra.mxu0 %v1360
    %3161 = vmatpush.msra.mxu0 %v1356
    %3162 = vmatpush.msra.mxu0 %v1352
    %3163 = vmatpush.msra.mxu0 %v1348
    %3164 = vmatpush.msra.mxu0 %v1344
    %3165 = vmatpush.msra.mxu0 %v1340
    %3166 = vmatpush.msra.mxu0 %v1336
    %3167 = vmatmul.f32.gmra.mxu0 %v3130
    %v3168 = vpop.f32.mrf.mxu0
    %v3169 = vadd.f32 %v3149, %v3168
    %3170 = vdwg.mxu0
    %3171 = vmatpush.msra.mxu0 %v1333
    %3172 = vmatpush.msra.mxu0 %v1329
    %3173 = vmatpush.msra.mxu0 %v1325
    %3174 = vmatpush.msra.mxu0 %v1321
    %3175 = vmatpush.msra.mxu0 %v1317
    %3176 = vmatpush.msra.mxu0 %v1313
    %3177 = vmatpush.msra.mxu0 %v1309
    %3178 = vmatpush.msra.mxu0 %v1305
    %3179 = vmatpush.msra.mxu0 %v1301
    %3180 = vmatpush.msra.mxu0 %v1297
    %3181 = vmatpush.msra.mxu0 %v1293
    %3182 = vmatpush.msra.mxu0 %v1289
    %3183 = vmatpush.msra.mxu0 %v1285
    %3184 = vmatpush.msra.mxu0 %v1281
    %3185 = vmatpush.msra.mxu0 %v1277
    %3186 = vmatpush.msra.mxu0 %v1273
    %3187 = vmatmul.f32.gmra.mxu0 %v3129
    %v3188 = vpop.f32.mrf.mxu0
    %v3189 = vadd.f32 0.0, %v3188
    %3190 = vdwg.mxu0
    %3191 = vmatpush.msra.mxu0 %v1397
    %3192 = vmatpush.msra.mxu0 %v1393
    %3193 = vmatpush.msra.mxu0 %v1389
    %3194 = vmatpush.msra.mxu0 %v1385
    %3195 = vmatpush.msra.mxu0 %v1381
    %3196 = vmatpush.msra.mxu0 %v1377
    %3197 = vmatpush.msra.mxu0 %v1373
    %3198 = vmatpush.msra.mxu0 %v1369
    %3199 = vmatpush.msra.mxu0 %v1365
    %3200 = vmatpush.msra.mxu0 %v1361
    %3201 = vmatpush.msra.mxu0 %v1357
    %3202 = vmatpush.msra.mxu0 %v1353
    %3203 = vmatpush.msra.mxu0 %v1349
    %3204 = vmatpush.msra.mxu0 %v1345
    %3205 = vmatpush.msra.mxu0 %v1341
    %3206 = vmatpush.msra.mxu0 %v1337
    %3207 = vmatmul.f32.gmra.mxu0 %v3130
    %v3208 = vpop.f32.mrf.mxu0
    %v3209 = vadd.f32 %v3189, %v3208
    %3210 = vdwg.mxu0
    %3211 = vmatpush.msra.mxu0 %v1334
    %3212 = vmatpush.msra.mxu0 %v1330
    %3213 = vmatpush.msra.mxu0 %v1326
    %3214 = vmatpush.msra.mxu0 %v1322
    %3215 = vmatpush.msra.mxu0 %v1318
    %3216 = vmatpush.msra.mxu0 %v1314
    %3217 = vmatpush.msra.mxu0 %v1310
    %3218 = vmatpush.msra.mxu0 %v1306
    %3219 = vmatpush.msra.mxu0 %v1302
    %3220 = vmatpush.msra.mxu0 %v1298
    %3221 = vmatpush.msra.mxu0 %v1294
    %3222 = vmatpush.msra.mxu0 %v1290
    %3223 = vmatpush.msra.mxu0 %v1286
    %3224 = vmatpush.msra.mxu0 %v1282
    %3225 = vmatpush.msra.mxu0 %v1278
    %3226 = vmatpush.msra.mxu0 %v1274
    %3227 = vmatmul.f32.gmra.mxu0 %v3129
    %v3228 = vpop.f32.mrf.mxu0
    %v3229 = vadd.f32 0.0, %v3228
    %3230 = vdwg.mxu0
    %3231 = vmatpush.msra.mxu0 %v1398
    %3232 = vmatpush.msra.mxu0 %v1394
    %3233 = vmatpush.msra.mxu0 %v1390
    %3234 = vmatpush.msra.mxu0 %v1386
    %3235 = vmatpush.msra.mxu0 %v1382
    %3236 = vmatpush.msra.mxu0 %v1378
    %3237 = vmatpush.msra.mxu0 %v1374
    %3238 = vmatpush.msra.mxu0 %v1370
    %3239 = vmatpush.msra.mxu0 %v1366
    %3240 = vmatpush.msra.mxu0 %v1362
    %3241 = vmatpush.msra.mxu0 %v1358
    %3242 = vmatpush.msra.mxu0 %v1354
    %3243 = vmatpush.msra.mxu0 %v1350
    %3244 = vmatpush.msra.mxu0 %v1346
    %3245 = vmatpush.msra.mxu0 %v1342
    %3246 = vmatpush.msra.mxu0 %v1338
    %3247 = vmatmul.f32.gmra.mxu0 %v3130
    %v3248 = vpop.f32.mrf.mxu0
    %v3249 = vadd.f32 %v3229, %v3248
    %3250 = vdwg.mxu0
    %3251 = vmatpush.msra.mxu0 %v1335
    %3252 = vmatpush.msra.mxu0 %v1331
    %3253 = vmatpush.msra.mxu0 %v1327
    %3254 = vmatpush.msra.mxu0 %v1323
    %3255 = vmatpush.msra.mxu0 %v1319
    %3256 = vmatpush.msra.mxu0 %v1315
    %3257 = vmatpush.msra.mxu0 %v1311
    %3258 = vmatpush.msra.mxu0 %v1307
    %3259 = vmatpush.msra.mxu0 %v1303
    %3260 = vmatpush.msra.mxu0 %v1299
    %3261 = vmatpush.msra.mxu0 %v1295
    %3262 = vmatpush.msra.mxu0 %v1291
    %3263 = vmatpush.msra.mxu0 %v1287
    %3264 = vmatpush.msra.mxu0 %v1283
    %3265 = vmatpush.msra.mxu0 %v1279
    %3266 = vmatpush.msra.mxu0 %v1275
    %3267 = vmatmul.f32.gmra.mxu0 %v3129
    %v3268 = vpop.f32.mrf.mxu0
    %v3269 = vadd.f32 0.0, %v3268
    %3270 = vdwg.mxu0
    %3271 = vmatpush.msra.mxu0 %v1399
    %3272 = vmatpush.msra.mxu0 %v1395
    %3273 = vmatpush.msra.mxu0 %v1391
    %3274 = vmatpush.msra.mxu0 %v1387
    %3275 = vmatpush.msra.mxu0 %v1383
    %3276 = vmatpush.msra.mxu0 %v1379
    %3277 = vmatpush.msra.mxu0 %v1375
    %3278 = vmatpush.msra.mxu0 %v1371
    %3279 = vmatpush.msra.mxu0 %v1367
    %3280 = vmatpush.msra.mxu0 %v1363
    %3281 = vmatpush.msra.mxu0 %v1359
    %3282 = vmatpush.msra.mxu0 %v1355
    %3283 = vmatpush.msra.mxu0 %v1351
    %3284 = vmatpush.msra.mxu0 %v1347
    %3285 = vmatpush.msra.mxu0 %v1343
    %3286 = vmatpush.msra.mxu0 %v1339
    %3287 = vmatmul.f32.gmra.mxu0 %v3130
    %v3288 = vpop.f32.mrf.mxu0
    %v3289 = vadd.f32 %v3269, %v3288
    %3290 = vdwg.mxu0
    %v3291 = vadd.f32 %v3125, %v3169
    %v3292 = vadd.f32 %v3126, %v3209
    %v3293 = vadd.f32 %v3127, %v3249
    %v3294 = vadd.f32 %v3128, %v3289
    %v3295 = vxor.u32 %v3291, 2147483648
    %v3296 = vmul.f32 %v3295, 1.442695
    %v3297 = vpow.pop %v3296
    %v3298 = vadd.f32 %v3297, 1.0
    %v3299 = vrcp.pop %v3298
    %v3300 = vmul.f32 %v3298, %v3299
    %v3301 = vsub.f32 1.0, %v3300
    %v3302 = vmul.f32 %v3299, %v3301
    %v3303 = vadd.f32 %v3299, %v3302
    %vm3304 = vweird.f32 %v3298
    %vm3305 = vweird.f32 %v3299
    %vm3306 = vmor %vm3304, %vm3305
    %v3307 = vsel %vm3306, %v3299, %v3303
    %v3308 = vand.u32 2147483647, %v3298
    %vm3309 = vcmp.eq.f32.partialorder %v3308, 8.507059e+37
    %v3310 = vand.u32 %v3298, 2147483648
    %v3311 = vor.u32 1.1754944e-38, %v3310
    %v3312 = vsel %vm3309, %v3311, %v3307
    %v3313 = vmul.f32 1.0, %v3312
    %v3314 = vxor.u32 %v3292, 2147483648
    %v3315 = vmul.f32 %v3314, 1.442695
    %v3316 = vpow.pop %v3315
    %v3317 = vadd.f32 %v3316, 1.0
    %v3318 = vrcp.pop %v3317
    %v3319 = vmul.f32 %v3317, %v3318
    %v3320 = vsub.f32 1.0, %v3319
    %v3321 = vmul.f32 %v3318, %v3320
    %v3322 = vadd.f32 %v3318, %v3321
    %vm3323 = vweird.f32 %v3317
    %vm3324 = vweird.f32 %v3318
    %vm3325 = vmor %vm3323, %vm3324
    %v3326 = vsel %vm3325, %v3318, %v3322
    %v3327 = vand.u32 2147483647, %v3317
    %vm3328 = vcmp.eq.f32.partialorder %v3327, 8.507059e+37
    %v3329 = vand.u32 %v3317, 2147483648
    %v3330 = vor.u32 1.1754944e-38, %v3329
    %v3331 = vsel %vm3328, %v3330, %v3326
    %v3332 = vmul.f32 1.0, %v3331
    %v3333 = vtanh.pop %v3293
    %v3334 = vxor.u32 %v3294, 2147483648
    %v3335 = vmul.f32 %v3334, 1.442695
    %v3336 = vpow.pop %v3335
    %v3337 = vadd.f32 %v3336, 1.0
    %v3338 = vrcp.pop %v3337
    %v3339 = vmul.f32 %v3337, %v3338
    %v3340 = vsub.f32 1.0, %v3339
    %v3341 = vmul.f32 %v3338, %v3340
    %v3342 = vadd.f32 %v3338, %v3341
    %vm3343 = vweird.f32 %v3337
    %vm3344 = vweird.f32 %v3338
    %vm3345 = vmor %vm3343, %vm3344
    %v3346 = vsel %vm3345, %v3338, %v3342
    %v3347 = vand.u32 2147483647, %v3337
    %vm3348 = vcmp.eq.f32.partialorder %v3347, 8.507059e+37
    %v3349 = vand.u32 %v3337, 2147483648
    %v3350 = vor.u32 1.1754944e-38, %v3349
    %v3351 = vsel %vm3348, %v3350, %v3346
    %v3352 = vmul.f32 1.0, %v3351
    %v3353 = vmul.f32 %v3332, %v3106
    %v3354 = vmul.f32 %v3313, %v3333
    %v3355 = vadd.f32 %v3353, %v3354
    %v3356 = vtanh.pop %v3355
    %v3357 = vmul.f32 %v3352, %v3356
    %v3359 = vrot.slane %v1879, 6
    %v3362 = vrot.slane %v2120, 4
    %v3365 = vrot.slane %v2369, 2
    %v3368 = vrot.slane %v2867, 6
    %v3371 = vrot.slane %v3108, 4
    %v3374 = vrot.slane %v3357, 2
    %v3376 = vsel %vm789, %v1626, %v3359
    %v3377 = vsel %vm1005, %v3376, %v3362
    %vm3378 = vcmask 1045504
    %v3379 = vsel %vm3378, %v3377, %v3365
    %v3380 = vsel %vm789, %v2614, %v3368
    %v3381 = vsel %vm1005, %v3380, %v3371
    %v3382 = vsel %vm3378, %v3381, %v3374
    %v3384 = vrot.slane %v2614, 4
    %v3387 = vrot.slane %v1626, 4
    %v3389 = vsel %vm789, %v3374, %v3108
    %v3390 = vsel %vm1005, %v3389, %v3368
    %v3391 = vsel %vm3378, %v3390, %v3384
    %v3392 = vsel %vm789, %v3365, %v2120
    %v3393 = vsel %vm1005, %v3392, %v3359
    %v3394 = vsel %vm3378, %v3393, %v3387
    %v3395 = vld [vmem:[%s8] sm:$0xff]
    %v3396 = vld [vmem:[%s8 + $0x8] sm:$0xff]
    %v3397 = vld [vmem:[%s8 + $0x10] sm:$0xff]
    %v3398 = vld [vmem:[%s8 + $0x18] sm:$0xff]
    %v3399 = vld [vmem:[%s8 + $0x20] sm:$0xff]
    %v3400 = vld [vmem:[%s8 + $0x28] sm:$0xff]
    %v3401 = vld [vmem:[%s8 + $0x30] sm:$0xff]
    %v3402 = vld [vmem:[%s8 + $0x38] sm:$0xff]
    %v3403 = vld [vmem:[%s8 + $0x40] sm:$0xff]
    %v3404 = vld [vmem:[%s8 + $0x48] sm:$0xff]
    %v3405 = vld [vmem:[%s8 + $0x50] sm:$0xff]
    %v3406 = vld [vmem:[%s8 + $0x58] sm:$0xff]
    %v3407 = vld [vmem:[%s8 + $0x60] sm:$0xff]
    %v3408 = vld [vmem:[%s8 + $0x68] sm:$0xff]
    %v3409 = vld [vmem:[%s8 + $0x70] sm:$0xff]
    %v3410 = vld [vmem:[%s8 + $0x78] sm:$0xff]
    %v3411 = vld [vmem:[%s9] sm:$0xff]
    %v3412 = vld [vmem:[%s9 + $0x8] sm:$0xff]
    %v3413 = vld [vmem:[%s9 + $0x10] sm:$0xff]
    %v3414 = vld [vmem:[%s9 + $0x18] sm:$0xff]
    %v3415 = vld [vmem:[%s9 + $0x20] sm:$0xff]
    %v3416 = vld [vmem:[%s9 + $0x28] sm:$0xff]
    %v3417 = vld [vmem:[%s9 + $0x30] sm:$0xff]
    %v3418 = vld [vmem:[%s9 + $0x38] sm:$0xff]
    %v3419 = vld [vmem:[%s9 + $0x40] sm:$0xff]
    %v3420 = vld [vmem:[%s9 + $0x48] sm:$0xff]
    %v3421 = vld [vmem:[%s9 + $0x50] sm:$0xff]
    %v3422 = vld [vmem:[%s9 + $0x58] sm:$0xff]
    %v3423 = vld [vmem:[%s9 + $0x60] sm:$0xff]
    %v3424 = vld [vmem:[%s9 + $0x68] sm:$0xff]
    %v3425 = vld [vmem:[%s9 + $0x70] sm:$0xff]
    %v3426 = vld [vmem:[%s9 + $0x78] sm:$0xff]
    %3427 = vmatpush.msra.mxu0 %v3426
    %3428 = vmatpush.msra.mxu0 %v3425
    %3429 = vmatpush.msra.mxu0 %v3424
    %3430 = vmatpush.msra.mxu0 %v3423
    %3431 = vmatpush.msra.mxu0 %v3422
    %3432 = vmatpush.msra.mxu0 %v3421
    %3433 = vmatpush.msra.mxu0 %v3420
    %3434 = vmatpush.msra.mxu0 %v3419
    %3435 = vmatpush.msra.mxu0 %v3418
    %3436 = vmatpush.msra.mxu0 %v3417
    %3437 = vmatpush.msra.mxu0 %v3416
    %3438 = vmatpush.msra.mxu0 %v3415
    %3439 = vmatpush.msra.mxu0 %v3414
    %3440 = vmatpush.msra.mxu0 %v3413
    %3441 = vmatpush.msra.mxu0 %v3412
    %3442 = vmatpush.msra.mxu0 %v3411
    %3443 = vmatmul.f32.gmra.mxu0 %v3391
    %v3444 = vpop.f32.mrf.mxu0
    %v3445 = vadd.f32 0.0, %v3444
    %3446 = vmatmul.f32.gmra.mxu0 %v3394
    %v3447 = vpop.f32.mrf.mxu0
    %v3448 = vadd.f32 0.0, %v3447
    %3449 = vdwg.mxu0
    %3450 = vmatpush.msra.mxu0 %v3410
    %3451 = vmatpush.msra.mxu0 %v3409
    %3452 = vmatpush.msra.mxu0 %v3408
    %3453 = vmatpush.msra.mxu0 %v3407
    %3454 = vmatpush.msra.mxu0 %v3406
    %3455 = vmatpush.msra.mxu0 %v3405
    %3456 = vmatpush.msra.mxu0 %v3404
    %3457 = vmatpush.msra.mxu0 %v3403
    %3458 = vmatpush.msra.mxu0 %v3402
    %3459 = vmatpush.msra.mxu0 %v3401
    %3460 = vmatpush.msra.mxu0 %v3400
    %3461 = vmatpush.msra.mxu0 %v3399
    %3462 = vmatpush.msra.mxu0 %v3398
    %3463 = vmatpush.msra.mxu0 %v3397
    %3464 = vmatpush.msra.mxu0 %v3396
    %3465 = vmatpush.msra.mxu0 %v3395
    %3466 = vmatmul.f32.gmra.mxu0 %v3379
    %v3467 = vpop.f32.mrf.mxu0
    %v3468 = vadd.f32 %v3445, %v3467
    %3469 = vmatmul.f32.gmra.mxu0 %v3382
    %v3470 = vpop.f32.mrf.mxu0
    %v3471 = vadd.f32 %v3448, %v3470
    %3472 = vdwg.mxu0
    %v3473 = vld [vmem:[%s10] sm:$0xff]
    %v3474 = vld [vmem:[%s10 + $0x8] sm:$0xff]
    %v3475 = vld [vmem:[%s10 + $0x10] sm:$0xff]
    %v3476 = vld [vmem:[%s10 + $0x18] sm:$0xff]
    %v3477 = vld [vmem:[%s10 + $0x20] sm:$0xff]
    %v3478 = vld [vmem:[%s10 + $0x28] sm:$0xff]
    %v3479 = vld [vmem:[%s10 + $0x30] sm:$0x3]
    %v3481 = vsel %vm789, %v3479, 0
    %3483 = vmatpush.msra.mxu0 0.0
    %3484 = vmatpush.msra.mxu0 0.0
    %3485 = vmatpush.msra.mxu0 0.0
    %3486 = vmatpush.msra.mxu0 0.0
    %3487 = vmatpush.msra.mxu0 0.0
    %3488 = vmatpush.msra.mxu0 0.0
    %3489 = vmatpush.msra.mxu0 0.0
    %3490 = vmatpush.msra.mxu0 0.0
    %3491 = vmatpush.msra.mxu0 0.0
    %3492 = vmatpush.msra.mxu0 %v3481
    %3493 = vmatpush.msra.mxu0 %v3478
    %3494 = vmatpush.msra.mxu0 %v3477
    %3495 = vmatpush.msra.mxu0 %v3476
    %3496 = vmatpush.msra.mxu0 %v3475
    %3497 = vmatpush.msra.mxu0 %v3474
    %3498 = vmatpush.msra.mxu0 %v3473
    %3499 = vmatmul.f32.gmra.mxu0 %v785
    %v3500 = vpop.f32.mrf.mxu0
    %v3501 = vadd.f32 0.0, %v3500
    %3502 = vmatmul.f32.gmra.mxu0 %v787
    %v3503 = vpop.f32.mrf.mxu0
    %v3504 = vadd.f32 0.0, %v3503
    %3505 = vdwg.mxu0
    %v3506 = vadd.f32 %v3468, %v3501
    %v3507 = vadd.f32 %v3471, %v3504
    %v3508 = vld [vmem:[%s11] sm:$0x1]
    %v3510 = vperm.slane %v3508, 0
    %v3512 = vadd.f32 %v3506, %v3510
    %v3513 = vadd.f32 %v3507, %v3510
    %v3514 = vmax.f32 %v3512, 0.0
    %v3515 = vmax.f32 %v3513, 0.0
    %v3516 = vld [vmem:[%s12] sm:$0xff]
    %v3517 = vld [vmem:[%s12 + $0x8] sm:$0xff]
    %v3518 = vld [vmem:[%s12 + $0x10] sm:$0xff]
    %v3519 = vld [vmem:[%s12 + $0x18] sm:$0xff]
    %v3520 = vld [vmem:[%s12 + $0x20] sm:$0xff]
    %v3521 = vld [vmem:[%s12 + $0x28] sm:$0xff]
    %v3522 = vld [vmem:[%s12 + $0x30] sm:$0xff]
    %v3523 = vld [vmem:[%s12 + $0x38] sm:$0xff]
    %v3524 = vld [vmem:[%s12 + $0x40] sm:$0xff]
    %v3525 = vld [vmem:[%s12 + $0x48] sm:$0xff]
    %v3526 = vld [vmem:[%s12 + $0x50] sm:$0xff]
    %v3527 = vld [vmem:[%s12 + $0x58] sm:$0xff]
    %v3528 = vld [vmem:[%s12 + $0x60] sm:$0xf]
    %v3529 = vld [vmem:[%s13] sm:$0x1]
    %v3531 = vperm.slane %v3529, 0
    %vm3533 = vcmask 818176
    %v3535 = vsel %vm3533, %v3514, 0
    %v3538 = vsel %vm3533, %v3515, 0
    %v3541 = vsel %vm1005, %v3528, 0
    %3543 = vmatpush.msra.mxu0 0.0
    %3544 = vmatpush.msra.mxu0 0.0
    %3545 = vmatpush.msra.mxu0 0.0
    %3546 = vmatpush.msra.mxu0 %v3541
    %3547 = vmatpush.msra.mxu0 %v3527
    %3548 = vmatpush.msra.mxu0 %v3526
    %3549 = vmatpush.msra.mxu0 %v3525
    %3550 = vmatpush.msra.mxu0 %v3524
    %3551 = vmatpush.msra.mxu0 %v3523
    %3552 = vmatpush.msra.mxu0 %v3522
    %3553 = vmatpush.msra.mxu0 %v3521
    %3554 = vmatpush.msra.mxu0 %v3520
    %3555 = vmatpush.msra.mxu0 %v3519
    %3556 = vmatpush.msra.mxu0 %v3518
    %3557 = vmatpush.msra.mxu0 %v3517
    %3558 = vmatpush.msra.mxu0 %v3516
    %3559 = vmatmul.f32.gmra.mxu0 %v3535
    %v3560 = vpop.f32.mrf.mxu0
    %v3561 = vadd.f32 %v3531, %v3560
    %3562 = vmatmul.f32.gmra.mxu0 %v3538
    %v3563 = vpop.f32.mrf.mxu0
    %v3564 = vadd.f32 %v3531, %v3563
    %3565 = vdwg.mxu0
    %v3566 = vmax.f32 %v3561, 0.0
    %v3567 = vmax.f32 %v3564, 0.0
    %v3568 = vld [vmem:[%s14] sm:$0xff]
    %v3569 = vld [vmem:[%s14 + $0x8] sm:$0xff]
    %v3570 = vld [vmem:[%s14 + $0x10] sm:$0xff]
    %v3571 = vld [vmem:[%s14 + $0x18] sm:$0x3f]
    %v3572 = vld [vmem:[%s15] sm:$0x1]
    %v3574 = vperm.slane %v3572, 0
    %vm3576 = vcmask 244736
    %v3578 = vsel %vm3576, %v3566, 0
    %v3581 = vsel %vm3576, %v3567, 0
    %v3584 = vsel %vm3378, %v3571, 0
    %3586 = vmatpush.msra.mxu0 0.0
    %3587 = vmatpush.msra.mxu0 0.0
    %3588 = vmatpush.msra.mxu0 0.0
    %3589 = vmatpush.msra.mxu0 0.0
    %3590 = vmatpush.msra.mxu0 0.0
    %3591 = vmatpush.msra.mxu0 0.0
    %3592 = vmatpush.msra.mxu0 0.0
    %3593 = vmatpush.msra.mxu0 0.0
    %3594 = vmatpush.msra.mxu0 0.0
    %3595 = vmatpush.msra.mxu0 0.0
    %3596 = vmatpush.msra.mxu0 0.0
    %3597 = vmatpush.msra.mxu0 0.0
    %3598 = vmatpush.msra.mxu0 %v3584
    %3599 = vmatpush.msra.mxu0 %v3570
    %3600 = vmatpush.msra.mxu0 %v3569
    %3601 = vmatpush.msra.mxu0 %v3568
    %3602 = vmatmul.f32.gmra.mxu0 %v3578
    %v3603 = vpop.f32.mrf.mxu0
    %v3604 = vadd.f32 %v3574, %v3603
    %3605 = vmatmul.f32.gmra.mxu0 %v3581
    %v3606 = vpop.f32.mrf.mxu0
    %v3607 = vadd.f32 %v3574, %v3606
    %3608 = vdwg.mxu0
    %3609 = vst [vmem:[%s16] sm:$0xff] %v3604
    %3610 = vst [vmem:[%s16 + $0x8] sm:$0xff] %v3607
    // Predicated region
    $region70: #{interffe_forward.1} parent=1 // pred_check
      _
    $region71: #{interffe_forward.1} parent=1 // pred_check_branch
      %3612 = sbr.rel (0) target = $region73
    $region72: #{interffe_forward.1} parent=1 // pred_region
      _
    $region73: #{interffe_forward.1} parent=1 // pred_fallthru
      _
    // Predicated region
    $region74: #{interffe_forward.1} parent=1 // pred_check
      _
    $region75: #{interffe_forward.1} parent=1 // pred_check_branch
      %3614 = sbr.rel (0) target = $region77
    $region76: #{interffe_forward.1} parent=1 // pred_region
      _
    $region77: #{interffe_forward.1} parent=1 // pred_fallthru
      _
    %3615 = vsyncpa [#allocation3], 1

</llo_original>
